<compile_context>
chip_gen: v7x
topology: tpu7x:2x2x1
jax: 0.10.0
libtpu: 0.0.40
codegen_flags: <defaults>
</compile_context>

<pallas_src>
import jax
import jax.numpy as jnp
from jax.experimental import pallas as pl
from jax.experimental.pallas import tpu as pltpu

# ---- small, TPU-friendly shapes (PyTorch ref used 128 x 1 x 512 x 256) ----
B = 2                  # batch / number of detected objects
F = 16                 # frequency bins (sublane-ish axis)
T = 128                # time frames (lane axis)
OBJ_C, OBJ_H, OBJ_W = 3, 16, 16
OBJ_FLAT = OBJ_C * OBJ_H * OBJ_W          # 768
VIS_DIM = 64
HID = 32
NUM_CLASSES = 16
NUM_CLASSES_PAD = 128                     # lane-dense classifier output

_VMEM = pl.BlockSpec(memory_space=pltpu.MemorySpace.VMEM)
_SMEM = pl.BlockSpec(memory_space=pltpu.MemorySpace.SMEM)


# ----------------------------------------------------------------------------
# Single fused kernel: prep + visual + mask predictor + mask apply + classify
# ----------------------------------------------------------------------------
def _fused_kernel(mixed_ref, mags_ref, obj_ref,
                  vis_w_ref, vis_b_ref, w1v_ref, b1_ref,
                  cls_w_ref, cls_b_ref,
                  w1a_ref, w2_ref, b2_ref,          # SMEM scalar tables
                  gmask_ref, vis_ref, mask_ref, applied_ref, cls_ref):
    mixed = mixed_ref[...]                                     # (B, F, T)

    # ground_mask = clamp(audio_mags / mixed_audio, 0, 5)
    gmask_ref[...] = jnp.clip(mags_ref[...] / mixed, 0.0, 5.0)

    # log_mixed_audio = log(mixed_audio)   (.detach() is a forward no-op)
    log_mixed = jnp.log(mixed)                                 # (B, F, T)

    # ---- visual feature extractor (stand-in for Visual()) ----------------
    # TODO(synk): Visual() is undefined in the reference; approximated by a
    #             single dense projection + ReLU on the flattened detections.
    vis = jnp.maximum(
        jnp.dot(obj_ref[...], vis_w_ref[...],
                preferred_element_type=jnp.float32) + vis_b_ref[...],
        0.0)                                                   # (B, VIS_DIM)
    vis_ref[...] = vis

    # ---- mask predictor (stand-in for UNet7Layer), lane-dense HID loop ----
    # TODO(synk): UNet7Layer is undefined in the reference; approximated with
    #             a per-pixel MLP conditioned on the visual vector + sigmoid.
    vp = jnp.dot(vis, w1v_ref[...],
                 preferred_element_type=jnp.float32) + b1_ref[...]  # (B, HID)
    acc = jnp.zeros_like(log_mixed)                            # (B, F, T)
    for h in range(HID):                                       # static unroll
        vph = vp[:, h].reshape(B, 1, 1)                        # per-batch bias
        hidden_h = jnp.maximum(log_mixed * w1a_ref[h] + vph, 0.0)
        acc = acc + hidden_h * w2_ref[h]
    mask = jax.nn.sigmoid(acc + b2_ref[0])                     # (B, F, T)
    mask_ref[...] = mask

    # masks_applied = mixed_audio * mask_preds ; spectro = log(applied+1e-10)
    applied = mixed * mask
    applied_ref[...] = applied
    spectro = jnp.log(applied + 1e-10)                         # (B, F, T)

    # ---- audio classifier (stand-in for Classifier) -----------------------
    # TODO(synk): Classifier.get_audio_classification is undefined in the
    #             reference; approximated by a single dense layer.  Flatten
    #             over (F, T) is expressed as a sum of per-F matmuls so no
    #             in-kernel reshape/relayout is needed.
    logits = jnp.dot(spectro[:, 0, :], cls_w_ref[0],
                     preferred_element_type=jnp.float32)       # (B, NC_PAD)
    for f in range(1, F):
        logits = logits + jnp.dot(spectro[:, f, :], cls_w_ref[f],
                                  preferred_element_type=jnp.float32)
    cls_ref[...] = logits + cls_b_ref[...]


def fused_forward(mixed, mags, obj_flat, params):
    out_shapes = (
        jax.ShapeDtypeStruct((B, F, T), jnp.float32),           # ground_mask
        jax.ShapeDtypeStruct((B, VIS_DIM), jnp.float32),        # visual vecs
        jax.ShapeDtypeStruct((B, F, T), jnp.float32),           # mask_preds
        jax.ShapeDtypeStruct((B, F, T), jnp.float32),           # masks_applied
        jax.ShapeDtypeStruct((B, NUM_CLASSES_PAD), jnp.float32) # class logits (padded)
    )
    return pl.pallas_call(
        _fused_kernel,
        out_shape=out_shapes,
        in_specs=[_VMEM] * 9 + [_SMEM] * 3,
        out_specs=(_VMEM,) * 5,
    )(mixed, mags, obj_flat,
      params["vis_w"], params["vis_b"], params["w1v"], params["b1"],
      params["cls_w"], params["cls_b"],
      params["w1a"], params["w2"], params["b2"])


# ----------------------------------------------------------------------------
# Parameters (deterministic, in-script)
# ----------------------------------------------------------------------------
def init_params(key):
    ks = jax.random.split(key, 8)
    s = lambda fan_in: 1.0 / jnp.sqrt(jnp.float32(fan_in))
    return {
        "vis_w": jax.random.normal(ks[0], (OBJ_FLAT, VIS_DIM), jnp.float32) * s(OBJ_FLAT),
        "vis_b": jnp.zeros((1, VIS_DIM), jnp.float32),
        # per-hidden-unit scalars live in SMEM inside the kernel
        "w1a":   jax.random.normal(ks[1], (HID,), jnp.float32),
        "w1v":   jax.random.normal(ks[2], (VIS_DIM, HID), jnp.float32) * s(VIS_DIM),
        "b1":    jnp.zeros((1, HID), jnp.float32),
        "w2":    jax.random.normal(ks[3], (HID,), jnp.float32) * s(HID),
        "b2":    jnp.zeros((1,), jnp.float32),
        # classifier weight stored (F, T, NUM_CLASSES_PAD); columns beyond
        # NUM_CLASSES are discarded by the host-side slice.
        "cls_w": jax.random.normal(ks[4], (F, T, NUM_CLASSES_PAD), jnp.float32) * s(F * T),
        "cls_b": jnp.zeros((1, NUM_CLASSES_PAD), jnp.float32),
    }


# ----------------------------------------------------------------------------
# Full forward (mirrors AudioVisualSeparator.forward)
# ----------------------------------------------------------------------------
def audio_visual_separator(X, params):
    vid_ids = X['ids']
    audio_mags = X['audio_mags']          # (B, 1, F, T)
    mixed_audio = X['mixed_audio']        # (B, 1, F, T)
    detected_objects = X['detections']    # (B, 3, 16, 16)
    classes = X['classes']

    mixed3 = mixed_audio.reshape(B, F, T)
    mags3 = audio_mags.reshape(B, F, T)
    obj_flat = detected_objects.reshape(B, OBJ_FLAT)

    ground_mask, visual_vecs, mask_preds, masks_applied, cls_pad = fused_forward(
        mixed3, mags3, obj_flat, params)

    audio_label_preds = cls_pad[:, :NUM_CLASSES]   # drop lane padding

    return {
        'ground_masks': ground_mask.reshape(B, 1, F, T),
        'ground_labels': classes,
        'predicted_audio_labels': audio_label_preds,
        'predicted_masks': mask_preds.reshape(B, 1, F, T),
        'predicted_spectrograms': masks_applied.reshape(B, 1, F, T),
        'visual_objects': visual_vecs,
        'mixed_audios': mixed_audio,
        'videos': vid_ids,
    }


if __name__ == "__main__":
    key = jax.random.PRNGKey(0)
    k_in, k_par = jax.random.split(key)
    k1, k2, k3 = jax.random.split(k_in, 3)

    # magnitudes must be strictly positive (log / division in the forward)
    mixed_audio = jax.random.uniform(k1, (B, 1, F, T), jnp.float32, 0.1, 2.0)
    audio_mags = jax.random.uniform(k2, (B, 1, F, T), jnp.float32, 0.0, 2.0)
    detections = jax.random.uniform(k3, (B, OBJ_C, OBJ_H, OBJ_W), jnp.float32)
    classes = jnp.arange(B, dtype=jnp.int32) % NUM_CLASSES
    vid_ids = jnp.arange(B, dtype=jnp.int32)

    X = {
        'ids': vid_ids,
        'audio_mags': audio_mags,
        'mixed_audio': mixed_audio,
        'detections': detections,
        'classes': classes,
    }
    params = init_params(k_par)

    out = audio_visual_separator(X, params)
    jax.block_until_ready(out)
    print("KERNEL_OK")
</pallas_src>

<mosaic_0001>
module attributes {stable_mosaic.version = 11 : i64} {
  func.func @_fused_kernel(%arg0: memref<2x16x128xf32, #tpu.memory_space<vmem>>, %arg1: memref<2x16x128xf32, #tpu.memory_space<vmem>>, %arg2: memref<2x768xf32, #tpu.memory_space<vmem>>, %arg3: memref<768x64xf32, #tpu.memory_space<vmem>>, %arg4: memref<1x64xf32, #tpu.memory_space<vmem>>, %arg5: memref<64x32xf32, #tpu.memory_space<vmem>>, %arg6: memref<1x32xf32, #tpu.memory_space<vmem>>, %arg7: memref<16x128x128xf32, #tpu.memory_space<vmem>>, %arg8: memref<1x128xf32, #tpu.memory_space<vmem>>, %arg9: memref<32xf32, #tpu.memory_space<smem>>, %arg10: memref<32xf32, #tpu.memory_space<smem>>, %arg11: memref<1xf32, #tpu.memory_space<smem>>, %arg12: memref<2x16x128xf32, #tpu.memory_space<vmem>>, %arg13: memref<2x64xf32, #tpu.memory_space<vmem>>, %arg14: memref<2x16x128xf32, #tpu.memory_space<vmem>>, %arg15: memref<2x16x128xf32, #tpu.memory_space<vmem>>, %arg16: memref<2x128xf32, #tpu.memory_space<vmem>>) attributes {dimension_semantics = [], scalar_prefetch = 0 : i64, scratch_operands = 0 : i64, tpu.core_type = #tpu.core_type<tc>} {
    %c0 = arith.constant 0 : index
    %c0_0 = arith.constant 0 : index
    %c0_1 = arith.constant 0 : index
    %0 = vector.load %arg0[%c0, %c0_0, %c0_1] : memref<2x16x128xf32, #tpu.memory_space<vmem>>, vector<2x16x128xf32>
    %c0_2 = arith.constant 0 : index
    %c0_3 = arith.constant 0 : index
    %c0_4 = arith.constant 0 : index
    %1 = vector.load %arg1[%c0_2, %c0_3, %c0_4] : memref<2x16x128xf32, #tpu.memory_space<vmem>>, vector<2x16x128xf32>
    %2 = arith.divf %1, %0 : vector<2x16x128xf32>
    %cst = arith.constant 0.000000e+00 : f32
    %cst_5 = arith.constant 5.000000e+00 : f32
    %3 = vector.broadcast %cst : f32 to vector<2x16x128xf32>
    %4 = arith.maximumf %3, %2 : vector<2x16x128xf32>
    %5 = vector.broadcast %cst_5 : f32 to vector<2x16x128xf32>
    %6 = arith.minimumf %5, %4 : vector<2x16x128xf32>
    %c0_6 = arith.constant 0 : index
    %c0_7 = arith.constant 0 : index
    %c0_8 = arith.constant 0 : index
    %7 = vector.load %arg12[%c0_6, %c0_7, %c0_8] : memref<2x16x128xf32, #tpu.memory_space<vmem>>, vector<2x16x128xf32>
    tpu.vector_store %arg12[%c0_6, %c0_7, %c0_8], %6 {strides = array<i32>} : memref<2x16x128xf32, #tpu.memory_space<vmem>>, vector<2x16x128xf32>,
    %8 = math.log %0 : vector<2x16x128xf32>
    %c0_9 = arith.constant 0 : index
    %c0_10 = arith.constant 0 : index
    %9 = vector.load %arg2[%c0_9, %c0_10] : memref<2x768xf32, #tpu.memory_space<vmem>>, vector<2x768xf32>
    %c0_11 = arith.constant 0 : index
    %c0_12 = arith.constant 0 : index
    %10 = vector.load %arg3[%c0_11, %c0_12] : memref<768x64xf32, #tpu.memory_space<vmem>>, vector<768x64xf32>
    %cst_13 = arith.constant dense<0.000000e+00> : vector<2x64xf32>
    %11 = tpu.matmul %9, %10, %cst_13 {dimension_numbers = #tpu.dot_dimension_numbers<[1], [0], [0], [1], [0, 0, 1, 1], [], []>} : vector<2x768xf32>, vector<768x64xf32>, vector<2x64xf32> -> vector<2x64xf32>
    %c0_14 = arith.constant 0 : index
    %c0_15 = arith.constant 0 : index
    %12 = vector.load %arg4[%c0_14, %c0_15] : memref<1x64xf32, #tpu.memory_space<vmem>>, vector<1x64xf32>
    %13 = vector.broadcast %12 : vector<1x64xf32> to vector<2x64xf32>
    %14 = arith.addf %11, %13 : vector<2x64xf32>
    %cst_16 = arith.constant 0.000000e+00 : f32
    %15 = vector.broadcast %cst_16 : f32 to vector<2x64xf32>
    %16 = arith.maximumf %14, %15 : vector<2x64xf32>
    %c0_17 = arith.constant 0 : index
    %c0_18 = arith.constant 0 : index
    %17 = vector.load %arg13[%c0_17, %c0_18] : memref<2x64xf32, #tpu.memory_space<vmem>>, vector<2x64xf32>
    tpu.vector_store %arg13[%c0_17, %c0_18], %16 {strides = array<i32>} : memref<2x64xf32, #tpu.memory_space<vmem>>, vector<2x64xf32>,
    %c0_19 = arith.constant 0 : index
    %c0_20 = arith.constant 0 : index
    %18 = vector.load %arg5[%c0_19, %c0_20] : memref<64x32xf32, #tpu.memory_space<vmem>>, vector<64x32xf32>
    %cst_21 = arith.constant dense<0.000000e+00> : vector<2x32xf32>
    %19 = tpu.matmul %16, %18, %cst_21 {dimension_numbers = #tpu.dot_dimension_numbers<[1], [0], [0], [1], [0, 0, 1, 1], [], []>} : vector<2x64xf32>, vector<64x32xf32>, vector<2x32xf32> -> vector<2x32xf32>
    %c0_22 = arith.constant 0 : index
    %c0_23 = arith.constant 0 : index
    %20 = vector.load %arg6[%c0_22, %c0_23] : memref<1x32xf32, #tpu.memory_space<vmem>>, vector<1x32xf32>
    %21 = vector.broadcast %20 : vector<1x32xf32> to vector<2x32xf32>
    %22 = arith.addf %19, %21 : vector<2x32xf32>
    %cst_24 = arith.constant 0.000000e+00 : f32
    %23 = vector.broadcast %cst_24 : f32 to vector<2x16x128xf32>
    %24 = vector.extract_strided_slice %22 {offsets = [0, 0], sizes = [2, 1], strides = [1, 1]} : vector<2x32xf32> to vector<2x1xf32>
    %25 = vector.shape_cast %24 : vector<2x1xf32> to vector<2xf32>
    %26 = vector.shape_cast %25 : vector<2xf32> to vector<2x1x1xf32>
    %c0_25 = arith.constant 0 : index
    %27 = memref.load %arg9[%c0_25] : memref<32xf32, #tpu.memory_space<smem>>
    %28 = vector.broadcast %27 : f32 to vector<2x16x128xf32>
    %29 = arith.mulf %8, %28 : vector<2x16x128xf32>
    %30 = vector.broadcast %26 : vector<2x1x1xf32> to vector<2x16x128xf32>
    %31 = arith.addf %29, %30 : vector<2x16x128xf32>
    %cst_26 = arith.constant 0.000000e+00 : f32
    %32 = vector.broadcast %cst_26 : f32 to vector<2x16x128xf32>
    %33 = arith.maximumf %31, %32 : vector<2x16x128xf32>
    %c0_27 = arith.constant 0 : index
    %34 = memref.load %arg10[%c0_27] : memref<32xf32, #tpu.memory_space<smem>>
    %35 = vector.broadcast %34 : f32 to vector<2x16x128xf32>
    %36 = arith.mulf %33, %35 : vector<2x16x128xf32>
    %37 = arith.addf %23, %36 : vector<2x16x128xf32>
    %38 = vector.extract_strided_slice %22 {offsets = [0, 1], sizes = [2, 1], strides = [1, 1]} : vector<2x32xf32> to vector<2x1xf32>
    %39 = vector.shape_cast %38 : vector<2x1xf32> to vector<2xf32>
    %40 = vector.shape_cast %39 : vector<2xf32> to vector<2x1x1xf32>
    %c1 = arith.constant 1 : index
    %41 = memref.load %arg9[%c1] : memref<32xf32, #tpu.memory_space<smem>>
    %42 = vector.broadcast %41 : f32 to vector<2x16x128xf32>
    %43 = arith.mulf %8, %42 : vector<2x16x128xf32>
    %44 = vector.broadcast %40 : vector<2x1x1xf32> to vector<2x16x128xf32>
    %45 = arith.addf %43, %44 : vector<2x16x128xf32>
    %cst_28 = arith.constant 0.000000e+00 : f32
    %46 = vector.broadcast %cst_28 : f32 to vector<2x16x128xf32>
    %47 = arith.maximumf %45, %46 : vector<2x16x128xf32>
    %c1_29 = arith.constant 1 : index
    %48 = memref.load %arg10[%c1_29] : memref<32xf32, #tpu.memory_space<smem>>
    %49 = vector.broadcast %48 : f32 to vector<2x16x128xf32>
    %50 = arith.mulf %47, %49 : vector<2x16x128xf32>
    %51 = arith.addf %37, %50 : vector<2x16x128xf32>
    %52 = vector.extract_strided_slice %22 {offsets = [0, 2], sizes = [2, 1], strides = [1, 1]} : vector<2x32xf32> to vector<2x1xf32>
    %53 = vector.shape_cast %52 : vector<2x1xf32> to vector<2xf32>
    %54 = vector.shape_cast %53 : vector<2xf32> to vector<2x1x1xf32>
    %c2 = arith.constant 2 : index
    %55 = memref.load %arg9[%c2] : memref<32xf32, #tpu.memory_space<smem>>
    %56 = vector.broadcast %55 : f32 to vector<2x16x128xf32>
    %57 = arith.mulf %8, %56 : vector<2x16x128xf32>
    %58 = vector.broadcast %54 : vector<2x1x1xf32> to vector<2x16x128xf32>
    %59 = arith.addf %57, %58 : vector<2x16x128xf32>
    %cst_30 = arith.constant 0.000000e+00 : f32
    %60 = vector.broadcast %cst_30 : f32 to vector<2x16x128xf32>
    %61 = arith.maximumf %59, %60 : vector<2x16x128xf32>
    %c2_31 = arith.constant 2 : index
    %62 = memref.load %arg10[%c2_31] : memref<32xf32, #tpu.memory_space<smem>>
    %63 = vector.broadcast %62 : f32 to vector<2x16x128xf32>
    %64 = arith.mulf %61, %63 : vector<2x16x128xf32>
    %65 = arith.addf %51, %64 : vector<2x16x128xf32>
    %66 = vector.extract_strided_slice %22 {offsets = [0, 3], sizes = [2, 1], strides = [1, 1]} : vector<2x32xf32> to vector<2x1xf32>
    %67 = vector.shape_cast %66 : vector<2x1xf32> to vector<2xf32>
    %68 = vector.shape_cast %67 : vector<2xf32> to vector<2x1x1xf32>
    %c3 = arith.constant 3 : index
    %69 = memref.load %arg9[%c3] : memref<32xf32, #tpu.memory_space<smem>>
    %70 = vector.broadcast %69 : f32 to vector<2x16x128xf32>
    %71 = arith.mulf %8, %70 : vector<2x16x128xf32>
    %72 = vector.broadcast %68 : vector<2x1x1xf32> to vector<2x16x128xf32>
    %73 = arith.addf %71, %72 : vector<2x16x128xf32>
    %cst_32 = arith.constant 0.000000e+00 : f32
    %74 = vector.broadcast %cst_32 : f32 to vector<2x16x128xf32>
    %75 = arith.maximumf %73, %74 : vector<2x16x128xf32>
    %c3_33 = arith.constant 3 : index
    %76 = memref.load %arg10[%c3_33] : memref<32xf32, #tpu.memory_space<smem>>
    %77 = vector.broadcast %76 : f32 to vector<2x16x128xf32>
    %78 = arith.mulf %75, %77 : vector<2x16x128xf32>
    %79 = arith.addf %65, %78 : vector<2x16x128xf32>
    %80 = vector.extract_strided_slice %22 {offsets = [0, 4], sizes = [2, 1], strides = [1, 1]} : vector<2x32xf32> to vector<2x1xf32>
    %81 = vector.shape_cast %80 : vector<2x1xf32> to vector<2xf32>
    %82 = vector.shape_cast %81 : vector<2xf32> to vector<2x1x1xf32>
    %c4 = arith.constant 4 : index
    %83 = memref.load %arg9[%c4] : memref<32xf32, #tpu.memory_space<smem>>
    %84 = vector.broadcast %83 : f32 to vector<2x16x128xf32>
    %85 = arith.mulf %8, %84 : vector<2x16x128xf32>
    %86 = vector.broadcast %82 : vector<2x1x1xf32> to vector<2x16x128xf32>
    %87 = arith.addf %85, %86 : vector<2x16x128xf32>
    %cst_34 = arith.constant 0.000000e+00 : f32
    %88 = vector.broadcast %cst_34 : f32 to vector<2x16x128xf32>
    %89 = arith.maximumf %87, %88 : vector<2x16x128xf32>
    %c4_35 = arith.constant 4 : index
    %90 = memref.load %arg10[%c4_35] : memref<32xf32, #tpu.memory_space<smem>>
    %91 = vector.broadcast %90 : f32 to vector<2x16x128xf32>
    %92 = arith.mulf %89, %91 : vector<2x16x128xf32>
    %93 = arith.addf %79, %92 : vector<2x16x128xf32>
    %94 = vector.extract_strided_slice %22 {offsets = [0, 5], sizes = [2, 1], strides = [1, 1]} : vector<2x32xf32> to vector<2x1xf32>
    %95 = vector.shape_cast %94 : vector<2x1xf32> to vector<2xf32>
    %96 = vector.shape_cast %95 : vector<2xf32> to vector<2x1x1xf32>
    %c5 = arith.constant 5 : index
    %97 = memref.load %arg9[%c5] : memref<32xf32, #tpu.memory_space<smem>>
    %98 = vector.broadcast %97 : f32 to vector<2x16x128xf32>
    %99 = arith.mulf %8, %98 : vector<2x16x128xf32>
    %100 = vector.broadcast %96 : vector<2x1x1xf32> to vector<2x16x128xf32>
    %101 = arith.addf %99, %100 : vector<2x16x128xf32>
    %cst_36 = arith.constant 0.000000e+00 : f32
    %102 = vector.broadcast %cst_36 : f32 to vector<2x16x128xf32>
    %103 = arith.maximumf %101, %102 : vector<2x16x128xf32>
    %c5_37 = arith.constant 5 : index
    %104 = memref.load %arg10[%c5_37] : memref<32xf32, #tpu.memory_space<smem>>
    %105 = vector.broadcast %104 : f32 to vector<2x16x128xf32>
    %106 = arith.mulf %103, %105 : vector<2x16x128xf32>
    %107 = arith.addf %93, %106 : vector<2x16x128xf32>
    %108 = vector.extract_strided_slice %22 {offsets = [0, 6], sizes = [2, 1], strides = [1, 1]} : vector<2x32xf32> to vector<2x1xf32>
    %109 = vector.shape_cast %108 : vector<2x1xf32> to vector<2xf32>
    %110 = vector.shape_cast %109 : vector<2xf32> to vector<2x1x1xf32>
    %c6 = arith.constant 6 : index
    %111 = memref.load %arg9[%c6] : memref<32xf32, #tpu.memory_space<smem>>
    %112 = vector.broadcast %111 : f32 to vector<2x16x128xf32>
    %113 = arith.mulf %8, %112 : vector<2x16x128xf32>
    %114 = vector.broadcast %110 : vector<2x1x1xf32> to vector<2x16x128xf32>
    %115 = arith.addf %113, %114 : vector<2x16x128xf32>
    %cst_38 = arith.constant 0.000000e+00 : f32
    %116 = vector.broadcast %cst_38 : f32 to vector<2x16x128xf32>
    %117 = arith.maximumf %115, %116 : vector<2x16x128xf32>
    %c6_39 = arith.constant 6 : index
    %118 = memref.load %arg10[%c6_39] : memref<32xf32, #tpu.memory_space<smem>>
    %119 = vector.broadcast %118 : f32 to vector<2x16x128xf32>
    %120 = arith.mulf %117, %119 : vector<2x16x128xf32>
    %121 = arith.addf %107, %120 : vector<2x16x128xf32>
    %122 = vector.extract_strided_slice %22 {offsets = [0, 7], sizes = [2, 1], strides = [1, 1]} : vector<2x32xf32> to vector<2x1xf32>
    %123 = vector.shape_cast %122 : vector<2x1xf32> to vector<2xf32>
    %124 = vector.shape_cast %123 : vector<2xf32> to vector<2x1x1xf32>
    %c7 = arith.constant 7 : index
    %125 = memref.load %arg9[%c7] : memref<32xf32, #tpu.memory_space<smem>>
    %126 = vector.broadcast %125 : f32 to vector<2x16x128xf32>
    %127 = arith.mulf %8, %126 : vector<2x16x128xf32>
    %128 = vector.broadcast %124 : vector<2x1x1xf32> to vector<2x16x128xf32>
    %129 = arith.addf %127, %128 : vector<2x16x128xf32>
    %cst_40 = arith.constant 0.000000e+00 : f32
    %130 = vector.broadcast %cst_40 : f32 to vector<2x16x128xf32>
    %131 = arith.maximumf %129, %130 : vector<2x16x128xf32>
    %c7_41 = arith.constant 7 : index
    %132 = memref.load %arg10[%c7_41] : memref<32xf32, #tpu.memory_space<smem>>
    %133 = vector.broadcast %132 : f32 to vector<2x16x128xf32>
    %134 = arith.mulf %131, %133 : vector<2x16x128xf32>
    %135 = arith.addf %121, %134 : vector<2x16x128xf32>
    %136 = vector.extract_strided_slice %22 {offsets = [0, 8], sizes = [2, 1], strides = [1, 1]} : vector<2x32xf32> to vector<2x1xf32>
    %137 = vector.shape_cast %136 : vector<2x1xf32> to vector<2xf32>
    %138 = vector.shape_cast %137 : vector<2xf32> to vector<2x1x1xf32>
    %c8 = arith.constant 8 : index
    %139 = memref.load %arg9[%c8] : memref<32xf32, #tpu.memory_space<smem>>
    %140 = vector.broadcast %139 : f32 to vector<2x16x128xf32>
    %141 = arith.mulf %8, %140 : vector<2x16x128xf32>
    %142 = vector.broadcast %138 : vector<2x1x1xf32> to vector<2x16x128xf32>
    %143 = arith.addf %141, %142 : vector<2x16x128xf32>
    %cst_42 = arith.constant 0.000000e+00 : f32
    %144 = vector.broadcast %cst_42 : f32 to vector<2x16x128xf32>
    %145 = arith.maximumf %143, %144 : vector<2x16x128xf32>
    %c8_43 = arith.constant 8 : index
    %146 = memref.load %arg10[%c8_43] : memref<32xf32, #tpu.memory_space<smem>>
    %147 = vector.broadcast %146 : f32 to vector<2x16x128xf32>
    %148 = arith.mulf %145, %147 : vector<2x16x128xf32>
    %149 = arith.addf %135, %148 : vector<2x16x128xf32>
    %150 = vector.extract_strided_slice %22 {offsets = [0, 9], sizes = [2, 1], strides = [1, 1]} : vector<2x32xf32> to vector<2x1xf32>
    %151 = vector.shape_cast %150 : vector<2x1xf32> to vector<2xf32>
    %152 = vector.shape_cast %151 : vector<2xf32> to vector<2x1x1xf32>
    %c9 = arith.constant 9 : index
    %153 = memref.load %arg9[%c9] : memref<32xf32, #tpu.memory_space<smem>>
    %154 = vector.broadcast %153 : f32 to vector<2x16x128xf32>
    %155 = arith.mulf %8, %154 : vector<2x16x128xf32>
    %156 = vector.broadcast %152 : vector<2x1x1xf32> to vector<2x16x128xf32>
    %157 = arith.addf %155, %156 : vector<2x16x128xf32>
    %cst_44 = arith.constant 0.000000e+00 : f32
    %158 = vector.broadcast %cst_44 : f32 to vector<2x16x128xf32>
    %159 = arith.maximumf %157, %158 : vector<2x16x128xf32>
    %c9_45 = arith.constant 9 : index
    %160 = memref.load %arg10[%c9_45] : memref<32xf32, #tpu.memory_space<smem>>
    %161 = vector.broadcast %160 : f32 to vector<2x16x128xf32>
    %162 = arith.mulf %159, %161 : vector<2x16x128xf32>
    %163 = arith.addf %149, %162 : vector<2x16x128xf32>
    %164 = vector.extract_strided_slice %22 {offsets = [0, 10], sizes = [2, 1], strides = [1, 1]} : vector<2x32xf32> to vector<2x1xf32>
    %165 = vector.shape_cast %164 : vector<2x1xf32> to vector<2xf32>
    %166 = vector.shape_cast %165 : vector<2xf32> to vector<2x1x1xf32>
    %c10 = arith.constant 10 : index
    %167 = memref.load %arg9[%c10] : memref<32xf32, #tpu.memory_space<smem>>
    %168 = vector.broadcast %167 : f32 to vector<2x16x128xf32>
    %169 = arith.mulf %8, %168 : vector<2x16x128xf32>
    %170 = vector.broadcast %166 : vector<2x1x1xf32> to vector<2x16x128xf32>
    %171 = arith.addf %169, %170 : vector<2x16x128xf32>
    %cst_46 = arith.constant 0.000000e+00 : f32
    %172 = vector.broadcast %cst_46 : f32 to vector<2x16x128xf32>
    %173 = arith.maximumf %171, %172 : vector<2x16x128xf32>
    %c10_47 = arith.constant 10 : index
    %174 = memref.load %arg10[%c10_47] : memref<32xf32, #tpu.memory_space<smem>>
    %175 = vector.broadcast %174 : f32 to vector<2x16x128xf32>
    %176 = arith.mulf %173, %175 : vector<2x16x128xf32>
    %177 = arith.addf %163, %176 : vector<2x16x128xf32>
    %178 = vector.extract_strided_slice %22 {offsets = [0, 11], sizes = [2, 1], strides = [1, 1]} : vector<2x32xf32> to vector<2x1xf32>
    %179 = vector.shape_cast %178 : vector<2x1xf32> to vector<2xf32>
    %180 = vector.shape_cast %179 : vector<2xf32> to vector<2x1x1xf32>
    %c11 = arith.constant 11 : index
    %181 = memref.load %arg9[%c11] : memref<32xf32, #tpu.memory_space<smem>>
    %182 = vector.broadcast %181 : f32 to vector<2x16x128xf32>
    %183 = arith.mulf %8, %182 : vector<2x16x128xf32>
    %184 = vector.broadcast %180 : vector<2x1x1xf32> to vector<2x16x128xf32>
    %185 = arith.addf %183, %184 : vector<2x16x128xf32>
    %cst_48 = arith.constant 0.000000e+00 : f32
    %186 = vector.broadcast %cst_48 : f32 to vector<2x16x128xf32>
    %187 = arith.maximumf %185, %186 : vector<2x16x128xf32>
    %c11_49 = arith.constant 11 : index
    %188 = memref.load %arg10[%c11_49] : memref<32xf32, #tpu.memory_space<smem>>
    %189 = vector.broadcast %188 : f32 to vector<2x16x128xf32>
    %190 = arith.mulf %187, %189 : vector<2x16x128xf32>
    %191 = arith.addf %177, %190 : vector<2x16x128xf32>
    %192 = vector.extract_strided_slice %22 {offsets = [0, 12], sizes = [2, 1], strides = [1, 1]} : vector<2x32xf32> to vector<2x1xf32>
    %193 = vector.shape_cast %192 : vector<2x1xf32> to vector<2xf32>
    %194 = vector.shape_cast %193 : vector<2xf32> to vector<2x1x1xf32>
    %c12 = arith.constant 12 : index
    %195 = memref.load %arg9[%c12] : memref<32xf32, #tpu.memory_space<smem>>
    %196 = vector.broadcast %195 : f32 to vector<2x16x128xf32>
    %197 = arith.mulf %8, %196 : vector<2x16x128xf32>
    %198 = vector.broadcast %194 : vector<2x1x1xf32> to vector<2x16x128xf32>
    %199 = arith.addf %197, %198 : vector<2x16x128xf32>
    %cst_50 = arith.constant 0.000000e+00 : f32
    %200 = vector.broadcast %cst_50 : f32 to vector<2x16x128xf32>
    %201 = arith.maximumf %199, %200 : vector<2x16x128xf32>
    %c12_51 = arith.constant 12 : index
    %202 = memref.load %arg10[%c12_51] : memref<32xf32, #tpu.memory_space<smem>>
    %203 = vector.broadcast %202 : f32 to vector<2x16x128xf32>
    %204 = arith.mulf %201, %203 : vector<2x16x128xf32>
    %205 = arith.addf %191, %204 : vector<2x16x128xf32>
    %206 = vector.extract_strided_slice %22 {offsets = [0, 13], sizes = [2, 1], strides = [1, 1]} : vector<2x32xf32> to vector<2x1xf32>
    %207 = vector.shape_cast %206 : vector<2x1xf32> to vector<2xf32>
    %208 = vector.shape_cast %207 : vector<2xf32> to vector<2x1x1xf32>
    %c13 = arith.constant 13 : index
    %209 = memref.load %arg9[%c13] : memref<32xf32, #tpu.memory_space<smem>>
    %210 = vector.broadcast %209 : f32 to vector<2x16x128xf32>
    %211 = arith.mulf %8, %210 : vector<2x16x128xf32>
    %212 = vector.broadcast %208 : vector<2x1x1xf32> to vector<2x16x128xf32>
    %213 = arith.addf %211, %212 : vector<2x16x128xf32>
    %cst_52 = arith.constant 0.000000e+00 : f32
    %214 = vector.broadcast %cst_52 : f32 to vector<2x16x128xf32>
    %215 = arith.maximumf %213, %214 : vector<2x16x128xf32>
    %c13_53 = arith.constant 13 : index
    %216 = memref.load %arg10[%c13_53] : memref<32xf32, #tpu.memory_space<smem>>
    %217 = vector.broadcast %216 : f32 to vector<2x16x128xf32>
    %218 = arith.mulf %215, %217 : vector<2x16x128xf32>
    %219 = arith.addf %205, %218 : vector<2x16x128xf32>
    %220 = vector.extract_strided_slice %22 {offsets = [0, 14], sizes = [2, 1], strides = [1, 1]} : vector<2x32xf32> to vector<2x1xf32>
    %221 = vector.shape_cast %220 : vector<2x1xf32> to vector<2xf32>
    %222 = vector.shape_cast %221 : vector<2xf32> to vector<2x1x1xf32>
    %c14 = arith.constant 14 : index
    %223 = memref.load %arg9[%c14] : memref<32xf32, #tpu.memory_space<smem>>
    %224 = vector.broadcast %223 : f32 to vector<2x16x128xf32>
    %225 = arith.mulf %8, %224 : vector<2x16x128xf32>
    %226 = vector.broadcast %222 : vector<2x1x1xf32> to vector<2x16x128xf32>
    %227 = arith.addf %225, %226 : vector<2x16x128xf32>
    %cst_54 = arith.constant 0.000000e+00 : f32
    %228 = vector.broadcast %cst_54 : f32 to vector<2x16x128xf32>
    %229 = arith.maximumf %227, %228 : vector<2x16x128xf32>
    %c14_55 = arith.constant 14 : index
    %230 = memref.load %arg10[%c14_55] : memref<32xf32, #tpu.memory_space<smem>>
    %231 = vector.broadcast %230 : f32 to vector<2x16x128xf32>
    %232 = arith.mulf %229, %231 : vector<2x16x128xf32>
    %233 = arith.addf %219, %232 : vector<2x16x128xf32>
    %234 = vector.extract_strided_slice %22 {offsets = [0, 15], sizes = [2, 1], strides = [1, 1]} : vector<2x32xf32> to vector<2x1xf32>
    %235 = vector.shape_cast %234 : vector<2x1xf32> to vector<2xf32>
    %236 = vector.shape_cast %235 : vector<2xf32> to vector<2x1x1xf32>
    %c15 = arith.constant 15 : index
    %237 = memref.load %arg9[%c15] : memref<32xf32, #tpu.memory_space<smem>>
    %238 = vector.broadcast %237 : f32 to vector<2x16x128xf32>
    %239 = arith.mulf %8, %238 : vector<2x16x128xf32>
    %240 = vector.broadcast %236 : vector<2x1x1xf32> to vector<2x16x128xf32>
    %241 = arith.addf %239, %240 : vector<2x16x128xf32>
    %cst_56 = arith.constant 0.000000e+00 : f32
    %242 = vector.broadcast %cst_56 : f32 to vector<2x16x128xf32>
    %243 = arith.maximumf %241, %242 : vector<2x16x128xf32>
    %c15_57 = arith.constant 15 : index
    %244 = memref.load %arg10[%c15_57] : memref<32xf32, #tpu.memory_space<smem>>
    %245 = vector.broadcast %244 : f32 to vector<2x16x128xf32>
    %246 = arith.mulf %243, %245 : vector<2x16x128xf32>
    %247 = arith.addf %233, %246 : vector<2x16x128xf32>
    %248 = vector.extract_strided_slice %22 {offsets = [0, 16], sizes = [2, 1], strides = [1, 1]} : vector<2x32xf32> to vector<2x1xf32>
    %249 = vector.shape_cast %248 : vector<2x1xf32> to vector<2xf32>
    %250 = vector.shape_cast %249 : vector<2xf32> to vector<2x1x1xf32>
    %c16 = arith.constant 16 : index
    %251 = memref.load %arg9[%c16] : memref<32xf32, #tpu.memory_space<smem>>
    %252 = vector.broadcast %251 : f32 to vector<2x16x128xf32>
    %253 = arith.mulf %8, %252 : vector<2x16x128xf32>
    %254 = vector.broadcast %250 : vector<2x1x1xf32> to vector<2x16x128xf32>
    %255 = arith.addf %253, %254 : vector<2x16x128xf32>
    %cst_58 = arith.constant 0.000000e+00 : f32
    %256 = vector.broadcast %cst_58 : f32 to vector<2x16x128xf32>
    %257 = arith.maximumf %255, %256 : vector<2x16x128xf32>
    %c16_59 = arith.constant 16 : index
    %258 = memref.load %arg10[%c16_59] : memref<32xf32, #tpu.memory_space<smem>>
    %259 = vector.broadcast %258 : f32 to vector<2x16x128xf32>
    %260 = arith.mulf %257, %259 : vector<2x16x128xf32>
    %261 = arith.addf %247, %260 : vector<2x16x128xf32>
    %262 = vector.extract_strided_slice %22 {offsets = [0, 17], sizes = [2, 1], strides = [1, 1]} : vector<2x32xf32> to vector<2x1xf32>
    %263 = vector.shape_cast %262 : vector<2x1xf32> to vector<2xf32>
    %264 = vector.shape_cast %263 : vector<2xf32> to vector<2x1x1xf32>
    %c17 = arith.constant 17 : index
    %265 = memref.load %arg9[%c17] : memref<32xf32, #tpu.memory_space<smem>>
    %266 = vector.broadcast %265 : f32 to vector<2x16x128xf32>
    %267 = arith.mulf %8, %266 : vector<2x16x128xf32>
    %268 = vector.broadcast %264 : vector<2x1x1xf32> to vector<2x16x128xf32>
    %269 = arith.addf %267, %268 : vector<2x16x128xf32>
    %cst_60 = arith.constant 0.000000e+00 : f32
    %270 = vector.broadcast %cst_60 : f32 to vector<2x16x128xf32>
    %271 = arith.maximumf %269, %270 : vector<2x16x128xf32>
    %c17_61 = arith.constant 17 : index
    %272 = memref.load %arg10[%c17_61] : memref<32xf32, #tpu.memory_space<smem>>
    %273 = vector.broadcast %272 : f32 to vector<2x16x128xf32>
    %274 = arith.mulf %271, %273 : vector<2x16x128xf32>
    %275 = arith.addf %261, %274 : vector<2x16x128xf32>
    %276 = vector.extract_strided_slice %22 {offsets = [0, 18], sizes = [2, 1], strides = [1, 1]} : vector<2x32xf32> to vector<2x1xf32>
    %277 = vector.shape_cast %276 : vector<2x1xf32> to vector<2xf32>
    %278 = vector.shape_cast %277 : vector<2xf32> to vector<2x1x1xf32>
    %c18 = arith.constant 18 : index
    %279 = memref.load %arg9[%c18] : memref<32xf32, #tpu.memory_space<smem>>
    %280 = vector.broadcast %279 : f32 to vector<2x16x128xf32>
    %281 = arith.mulf %8, %280 : vector<2x16x128xf32>
    %282 = vector.broadcast %278 : vector<2x1x1xf32> to vector<2x16x128xf32>
    %283 = arith.addf %281, %282 : vector<2x16x128xf32>
    %cst_62 = arith.constant 0.000000e+00 : f32
    %284 = vector.broadcast %cst_62 : f32 to vector<2x16x128xf32>
    %285 = arith.maximumf %283, %284 : vector<2x16x128xf32>
    %c18_63 = arith.constant 18 : index
    %286 = memref.load %arg10[%c18_63] : memref<32xf32, #tpu.memory_space<smem>>
    %287 = vector.broadcast %286 : f32 to vector<2x16x128xf32>
    %288 = arith.mulf %285, %287 : vector<2x16x128xf32>
    %289 = arith.addf %275, %288 : vector<2x16x128xf32>
    %290 = vector.extract_strided_slice %22 {offsets = [0, 19], sizes = [2, 1], strides = [1, 1]} : vector<2x32xf32> to vector<2x1xf32>
    %291 = vector.shape_cast %290 : vector<2x1xf32> to vector<2xf32>
    %292 = vector.shape_cast %291 : vector<2xf32> to vector<2x1x1xf32>
    %c19 = arith.constant 19 : index
    %293 = memref.load %arg9[%c19] : memref<32xf32, #tpu.memory_space<smem>>
    %294 = vector.broadcast %293 : f32 to vector<2x16x128xf32>
    %295 = arith.mulf %8, %294 : vector<2x16x128xf32>
    %296 = vector.broadcast %292 : vector<2x1x1xf32> to vector<2x16x128xf32>
    %297 = arith.addf %295, %296 : vector<2x16x128xf32>
    %cst_64 = arith.constant 0.000000e+00 : f32
    %298 = vector.broadcast %cst_64 : f32 to vector<2x16x128xf32>
    %299 = arith.maximumf %297, %298 : vector<2x16x128xf32>
    %c19_65 = arith.constant 19 : index
    %300 = memref.load %arg10[%c19_65] : memref<32xf32, #tpu.memory_space<smem>>
    %301 = vector.broadcast %300 : f32 to vector<2x16x128xf32>
    %302 = arith.mulf %299, %301 : vector<2x16x128xf32>
    %303 = arith.addf %289, %302 : vector<2x16x128xf32>
    %304 = vector.extract_strided_slice %22 {offsets = [0, 20], sizes = [2, 1], strides = [1, 1]} : vector<2x32xf32> to vector<2x1xf32>
    %305 = vector.shape_cast %304 : vector<2x1xf32> to vector<2xf32>
    %306 = vector.shape_cast %305 : vector<2xf32> to vector<2x1x1xf32>
    %c20 = arith.constant 20 : index
    %307 = memref.load %arg9[%c20] : memref<32xf32, #tpu.memory_space<smem>>
    %308 = vector.broadcast %307 : f32 to vector<2x16x128xf32>
    %309 = arith.mulf %8, %308 : vector<2x16x128xf32>
    %310 = vector.broadcast %306 : vector<2x1x1xf32> to vector<2x16x128xf32>
    %311 = arith.addf %309, %310 : vector<2x16x128xf32>
    %cst_66 = arith.constant 0.000000e+00 : f32
    %312 = vector.broadcast %cst_66 : f32 to vector<2x16x128xf32>
    %313 = arith.maximumf %311, %312 : vector<2x16x128xf32>
    %c20_67 = arith.constant 20 : index
    %314 = memref.load %arg10[%c20_67] : memref<32xf32, #tpu.memory_space<smem>>
    %315 = vector.broadcast %314 : f32 to vector<2x16x128xf32>
    %316 = arith.mulf %313, %315 : vector<2x16x128xf32>
    %317 = arith.addf %303, %316 : vector<2x16x128xf32>
    %318 = vector.extract_strided_slice %22 {offsets = [0, 21], sizes = [2, 1], strides = [1, 1]} : vector<2x32xf32> to vector<2x1xf32>
    %319 = vector.shape_cast %318 : vector<2x1xf32> to vector<2xf32>
    %320 = vector.shape_cast %319 : vector<2xf32> to vector<2x1x1xf32>
    %c21 = arith.constant 21 : index
    %321 = memref.load %arg9[%c21] : memref<32xf32, #tpu.memory_space<smem>>
    %322 = vector.broadcast %321 : f32 to vector<2x16x128xf32>
    %323 = arith.mulf %8, %322 : vector<2x16x128xf32>
    %324 = vector.broadcast %320 : vector<2x1x1xf32> to vector<2x16x128xf32>
    %325 = arith.addf %323, %324 : vector<2x16x128xf32>
    %cst_68 = arith.constant 0.000000e+00 : f32
    %326 = vector.broadcast %cst_68 : f32 to vector<2x16x128xf32>
    %327 = arith.maximumf %325, %326 : vector<2x16x128xf32>
    %c21_69 = arith.constant 21 : index
    %328 = memref.load %arg10[%c21_69] : memref<32xf32, #tpu.memory_space<smem>>
    %329 = vector.broadcast %328 : f32 to vector<2x16x128xf32>
    %330 = arith.mulf %327, %329 : vector<2x16x128xf32>
    %331 = arith.addf %317, %330 : vector<2x16x128xf32>
    %332 = vector.extract_strided_slice %22 {offsets = [0, 22], sizes = [2, 1], strides = [1, 1]} : vector<2x32xf32> to vector<2x1xf32>
    %333 = vector.shape_cast %332 : vector<2x1xf32> to vector<2xf32>
    %334 = vector.shape_cast %333 : vector<2xf32> to vector<2x1x1xf32>
    %c22 = arith.constant 22 : index
    %335 = memref.load %arg9[%c22] : memref<32xf32, #tpu.memory_space<smem>>
    %336 = vector.broadcast %335 : f32 to vector<2x16x128xf32>
    %337 = arith.mulf %8, %336 : vector<2x16x128xf32>
    %338 = vector.broadcast %334 : vector<2x1x1xf32> to vector<2x16x128xf32>
    %339 = arith.addf %337, %338 : vector<2x16x128xf32>
    %cst_70 = arith.constant 0.000000e+00 : f32
    %340 = vector.broadcast %cst_70 : f32 to vector<2x16x128xf32>
    %341 = arith.maximumf %339, %340 : vector<2x16x128xf32>
    %c22_71 = arith.constant 22 : index
    %342 = memref.load %arg10[%c22_71] : memref<32xf32, #tpu.memory_space<smem>>
    %343 = vector.broadcast %342 : f32 to vector<2x16x128xf32>
    %344 = arith.mulf %341, %343 : vector<2x16x128xf32>
    %345 = arith.addf %331, %344 : vector<2x16x128xf32>
    %346 = vector.extract_strided_slice %22 {offsets = [0, 23], sizes = [2, 1], strides = [1, 1]} : vector<2x32xf32> to vector<2x1xf32>
    %347 = vector.shape_cast %346 : vector<2x1xf32> to vector<2xf32>
    %348 = vector.shape_cast %347 : vector<2xf32> to vector<2x1x1xf32>
    %c23 = arith.constant 23 : index
    %349 = memref.load %arg9[%c23] : memref<32xf32, #tpu.memory_space<smem>>
    %350 = vector.broadcast %349 : f32 to vector<2x16x128xf32>
    %351 = arith.mulf %8, %350 : vector<2x16x128xf32>
    %352 = vector.broadcast %348 : vector<2x1x1xf32> to vector<2x16x128xf32>
    %353 = arith.addf %351, %352 : vector<2x16x128xf32>
    %cst_72 = arith.constant 0.000000e+00 : f32
    %354 = vector.broadcast %cst_72 : f32 to vector<2x16x128xf32>
    %355 = arith.maximumf %353, %354 : vector<2x16x128xf32>
    %c23_73 = arith.constant 23 : index
    %356 = memref.load %arg10[%c23_73] : memref<32xf32, #tpu.memory_space<smem>>
    %357 = vector.broadcast %356 : f32 to vector<2x16x128xf32>
    %358 = arith.mulf %355, %357 : vector<2x16x128xf32>
    %359 = arith.addf %345, %358 : vector<2x16x128xf32>
    %360 = vector.extract_strided_slice %22 {offsets = [0, 24], sizes = [2, 1], strides = [1, 1]} : vector<2x32xf32> to vector<2x1xf32>
    %361 = vector.shape_cast %360 : vector<2x1xf32> to vector<2xf32>
    %362 = vector.shape_cast %361 : vector<2xf32> to vector<2x1x1xf32>
    %c24 = arith.constant 24 : index
    %363 = memref.load %arg9[%c24] : memref<32xf32, #tpu.memory_space<smem>>
    %364 = vector.broadcast %363 : f32 to vector<2x16x128xf32>
    %365 = arith.mulf %8, %364 : vector<2x16x128xf32>
    %366 = vector.broadcast %362 : vector<2x1x1xf32> to vector<2x16x128xf32>
    %367 = arith.addf %365, %366 : vector<2x16x128xf32>
    %cst_74 = arith.constant 0.000000e+00 : f32
    %368 = vector.broadcast %cst_74 : f32 to vector<2x16x128xf32>
    %369 = arith.maximumf %367, %368 : vector<2x16x128xf32>
    %c24_75 = arith.constant 24 : index
    %370 = memref.load %arg10[%c24_75] : memref<32xf32, #tpu.memory_space<smem>>
    %371 = vector.broadcast %370 : f32 to vector<2x16x128xf32>
    %372 = arith.mulf %369, %371 : vector<2x16x128xf32>
    %373 = arith.addf %359, %372 : vector<2x16x128xf32>
    %374 = vector.extract_strided_slice %22 {offsets = [0, 25], sizes = [2, 1], strides = [1, 1]} : vector<2x32xf32> to vector<2x1xf32>
    %375 = vector.shape_cast %374 : vector<2x1xf32> to vector<2xf32>
    %376 = vector.shape_cast %375 : vector<2xf32> to vector<2x1x1xf32>
    %c25 = arith.constant 25 : index
    %377 = memref.load %arg9[%c25] : memref<32xf32, #tpu.memory_space<smem>>
    %378 = vector.broadcast %377 : f32 to vector<2x16x128xf32>
    %379 = arith.mulf %8, %378 : vector<2x16x128xf32>
    %380 = vector.broadcast %376 : vector<2x1x1xf32> to vector<2x16x128xf32>
    %381 = arith.addf %379, %380 : vector<2x16x128xf32>
    %cst_76 = arith.constant 0.000000e+00 : f32
    %382 = vector.broadcast %cst_76 : f32 to vector<2x16x128xf32>
    %383 = arith.maximumf %381, %382 : vector<2x16x128xf32>
    %c25_77 = arith.constant 25 : index
    %384 = memref.load %arg10[%c25_77] : memref<32xf32, #tpu.memory_space<smem>>
    %385 = vector.broadcast %384 : f32 to vector<2x16x128xf32>
    %386 = arith.mulf %383, %385 : vector<2x16x128xf32>
    %387 = arith.addf %373, %386 : vector<2x16x128xf32>
    %388 = vector.extract_strided_slice %22 {offsets = [0, 26], sizes = [2, 1], strides = [1, 1]} : vector<2x32xf32> to vector<2x1xf32>
    %389 = vector.shape_cast %388 : vector<2x1xf32> to vector<2xf32>
    %390 = vector.shape_cast %389 : vector<2xf32> to vector<2x1x1xf32>
    %c26 = arith.constant 26 : index
    %391 = memref.load %arg9[%c26] : memref<32xf32, #tpu.memory_space<smem>>
    %392 = vector.broadcast %391 : f32 to vector<2x16x128xf32>
    %393 = arith.mulf %8, %392 : vector<2x16x128xf32>
    %394 = vector.broadcast %390 : vector<2x1x1xf32> to vector<2x16x128xf32>
    %395 = arith.addf %393, %394 : vector<2x16x128xf32>
    %cst_78 = arith.constant 0.000000e+00 : f32
    %396 = vector.broadcast %cst_78 : f32 to vector<2x16x128xf32>
    %397 = arith.maximumf %395, %396 : vector<2x16x128xf32>
    %c26_79 = arith.constant 26 : index
    %398 = memref.load %arg10[%c26_79] : memref<32xf32, #tpu.memory_space<smem>>
    %399 = vector.broadcast %398 : f32 to vector<2x16x128xf32>
    %400 = arith.mulf %397, %399 : vector<2x16x128xf32>
    %401 = arith.addf %387, %400 : vector<2x16x128xf32>
    %402 = vector.extract_strided_slice %22 {offsets = [0, 27], sizes = [2, 1], strides = [1, 1]} : vector<2x32xf32> to vector<2x1xf32>
    %403 = vector.shape_cast %402 : vector<2x1xf32> to vector<2xf32>
    %404 = vector.shape_cast %403 : vector<2xf32> to vector<2x1x1xf32>
    %c27 = arith.constant 27 : index
    %405 = memref.load %arg9[%c27] : memref<32xf32, #tpu.memory_space<smem>>
    %406 = vector.broadcast %405 : f32 to vector<2x16x128xf32>
    %407 = arith.mulf %8, %406 : vector<2x16x128xf32>
    %408 = vector.broadcast %404 : vector<2x1x1xf32> to vector<2x16x128xf32>
    %409 = arith.addf %407, %408 : vector<2x16x128xf32>
    %cst_80 = arith.constant 0.000000e+00 : f32
    %410 = vector.broadcast %cst_80 : f32 to vector<2x16x128xf32>
    %411 = arith.maximumf %409, %410 : vector<2x16x128xf32>
    %c27_81 = arith.constant 27 : index
    %412 = memref.load %arg10[%c27_81] : memref<32xf32, #tpu.memory_space<smem>>
    %413 = vector.broadcast %412 : f32 to vector<2x16x128xf32>
    %414 = arith.mulf %411, %413 : vector<2x16x128xf32>
    %415 = arith.addf %401, %414 : vector<2x16x128xf32>
    %416 = vector.extract_strided_slice %22 {offsets = [0, 28], sizes = [2, 1], strides = [1, 1]} : vector<2x32xf32> to vector<2x1xf32>
    %417 = vector.shape_cast %416 : vector<2x1xf32> to vector<2xf32>
    %418 = vector.shape_cast %417 : vector<2xf32> to vector<2x1x1xf32>
    %c28 = arith.constant 28 : index
    %419 = memref.load %arg9[%c28] : memref<32xf32, #tpu.memory_space<smem>>
    %420 = vector.broadcast %419 : f32 to vector<2x16x128xf32>
    %421 = arith.mulf %8, %420 : vector<2x16x128xf32>
    %422 = vector.broadcast %418 : vector<2x1x1xf32> to vector<2x16x128xf32>
    %423 = arith.addf %421, %422 : vector<2x16x128xf32>
    %cst_82 = arith.constant 0.000000e+00 : f32
    %424 = vector.broadcast %cst_82 : f32 to vector<2x16x128xf32>
    %425 = arith.maximumf %423, %424 : vector<2x16x128xf32>
    %c28_83 = arith.constant 28 : index
    %426 = memref.load %arg10[%c28_83] : memref<32xf32, #tpu.memory_space<smem>>
    %427 = vector.broadcast %426 : f32 to vector<2x16x128xf32>
    %428 = arith.mulf %425, %427 : vector<2x16x128xf32>
    %429 = arith.addf %415, %428 : vector<2x16x128xf32>
    %430 = vector.extract_strided_slice %22 {offsets = [0, 29], sizes = [2, 1], strides = [1, 1]} : vector<2x32xf32> to vector<2x1xf32>
    %431 = vector.shape_cast %430 : vector<2x1xf32> to vector<2xf32>
    %432 = vector.shape_cast %431 : vector<2xf32> to vector<2x1x1xf32>
    %c29 = arith.constant 29 : index
    %433 = memref.load %arg9[%c29] : memref<32xf32, #tpu.memory_space<smem>>
    %434 = vector.broadcast %433 : f32 to vector<2x16x128xf32>
    %435 = arith.mulf %8, %434 : vector<2x16x128xf32>
    %436 = vector.broadcast %432 : vector<2x1x1xf32> to vector<2x16x128xf32>
    %437 = arith.addf %435, %436 : vector<2x16x128xf32>
    %cst_84 = arith.constant 0.000000e+00 : f32
    %438 = vector.broadcast %cst_84 : f32 to vector<2x16x128xf32>
    %439 = arith.maximumf %437, %438 : vector<2x16x128xf32>
    %c29_85 = arith.constant 29 : index
    %440 = memref.load %arg10[%c29_85] : memref<32xf32, #tpu.memory_space<smem>>
    %441 = vector.broadcast %440 : f32 to vector<2x16x128xf32>
    %442 = arith.mulf %439, %441 : vector<2x16x128xf32>
    %443 = arith.addf %429, %442 : vector<2x16x128xf32>
    %444 = vector.extract_strided_slice %22 {offsets = [0, 30], sizes = [2, 1], strides = [1, 1]} : vector<2x32xf32> to vector<2x1xf32>
    %445 = vector.shape_cast %444 : vector<2x1xf32> to vector<2xf32>
    %446 = vector.shape_cast %445 : vector<2xf32> to vector<2x1x1xf32>
    %c30 = arith.constant 30 : index
    %447 = memref.load %arg9[%c30] : memref<32xf32, #tpu.memory_space<smem>>
    %448 = vector.broadcast %447 : f32 to vector<2x16x128xf32>
    %449 = arith.mulf %8, %448 : vector<2x16x128xf32>
    %450 = vector.broadcast %446 : vector<2x1x1xf32> to vector<2x16x128xf32>
    %451 = arith.addf %449, %450 : vector<2x16x128xf32>
    %cst_86 = arith.constant 0.000000e+00 : f32
    %452 = vector.broadcast %cst_86 : f32 to vector<2x16x128xf32>
    %453 = arith.maximumf %451, %452 : vector<2x16x128xf32>
    %c30_87 = arith.constant 30 : index
    %454 = memref.load %arg10[%c30_87] : memref<32xf32, #tpu.memory_space<smem>>
    %455 = vector.broadcast %454 : f32 to vector<2x16x128xf32>
    %456 = arith.mulf %453, %455 : vector<2x16x128xf32>
    %457 = arith.addf %443, %456 : vector<2x16x128xf32>
    %458 = vector.extract_strided_slice %22 {offsets = [0, 31], sizes = [2, 1], strides = [1, 1]} : vector<2x32xf32> to vector<2x1xf32>
    %459 = vector.shape_cast %458 : vector<2x1xf32> to vector<2xf32>
    %460 = vector.shape_cast %459 : vector<2xf32> to vector<2x1x1xf32>
    %c31 = arith.constant 31 : index
    %461 = memref.load %arg9[%c31] : memref<32xf32, #tpu.memory_space<smem>>
    %462 = vector.broadcast %461 : f32 to vector<2x16x128xf32>
    %463 = arith.mulf %8, %462 : vector<2x16x128xf32>
    %464 = vector.broadcast %460 : vector<2x1x1xf32> to vector<2x16x128xf32>
    %465 = arith.addf %463, %464 : vector<2x16x128xf32>
    %cst_88 = arith.constant 0.000000e+00 : f32
    %466 = vector.broadcast %cst_88 : f32 to vector<2x16x128xf32>
    %467 = arith.maximumf %465, %466 : vector<2x16x128xf32>
    %c31_89 = arith.constant 31 : index
    %468 = memref.load %arg10[%c31_89] : memref<32xf32, #tpu.memory_space<smem>>
    %469 = vector.broadcast %468 : f32 to vector<2x16x128xf32>
    %470 = arith.mulf %467, %469 : vector<2x16x128xf32>
    %471 = arith.addf %457, %470 : vector<2x16x128xf32>
    %c0_90 = arith.constant 0 : index
    %472 = memref.load %arg11[%c0_90] : memref<1xf32, #tpu.memory_space<smem>>
    %473 = vector.broadcast %472 : f32 to vector<2x16x128xf32>
    %474 = arith.addf %471, %473 : vector<2x16x128xf32>
    %475 = arith.negf %474 : vector<2x16x128xf32>
    %476 = math.exp %475 : vector<2x16x128xf32>
    %cst_91 = arith.constant 1.000000e+00 : f32
    %477 = vector.broadcast %cst_91 : f32 to vector<2x16x128xf32>
    %478 = arith.addf %477, %476 : vector<2x16x128xf32>
    %479 = arith.divf %477, %478 : vector<2x16x128xf32>
    %c0_92 = arith.constant 0 : index
    %c0_93 = arith.constant 0 : index
    %c0_94 = arith.constant 0 : index
    %480 = vector.load %arg14[%c0_92, %c0_93, %c0_94] : memref<2x16x128xf32, #tpu.memory_space<vmem>>, vector<2x16x128xf32>
    tpu.vector_store %arg14[%c0_92, %c0_93, %c0_94], %479 {strides = array<i32>} : memref<2x16x128xf32, #tpu.memory_space<vmem>>, vector<2x16x128xf32>,
    %481 = arith.mulf %0, %479 : vector<2x16x128xf32>
    %c0_95 = arith.constant 0 : index
    %c0_96 = arith.constant 0 : index
    %c0_97 = arith.constant 0 : index
    %482 = vector.load %arg15[%c0_95, %c0_96, %c0_97] : memref<2x16x128xf32, #tpu.memory_space<vmem>>, vector<2x16x128xf32>
    tpu.vector_store %arg15[%c0_95, %c0_96, %c0_97], %481 {strides = array<i32>} : memref<2x16x128xf32, #tpu.memory_space<vmem>>, vector<2x16x128xf32>,
    %cst_98 = arith.constant 1.000000e-10 : f32
    %483 = vector.broadcast %cst_98 : f32 to vector<2x16x128xf32>
    %484 = arith.addf %481, %483 : vector<2x16x128xf32>
    %485 = math.log %484 : vector<2x16x128xf32>
    %486 = vector.extract_strided_slice %485 {offsets = [0, 0, 0], sizes = [2, 1, 128], strides = [1, 1, 1]} : vector<2x16x128xf32> to vector<2x1x128xf32>
    %487 = vector.shape_cast %486 : vector<2x1x128xf32> to vector<2x128xf32>
    %c0_99 = arith.constant 0 : index
    %c0_100 = arith.constant 0 : index
    %c0_101 = arith.constant 0 : index
    %488 = vector.load %arg7[%c0_99, %c0_100, %c0_101] : memref<16x128x128xf32, #tpu.memory_space<vmem>>, vector<1x128x128xf32>
    %489 = vector.shape_cast %488 : vector<1x128x128xf32> to vector<128x128xf32>
    %cst_102 = arith.constant dense<0.000000e+00> : vector<2x128xf32>
    %490 = tpu.matmul %487, %489, %cst_102 {dimension_numbers = #tpu.dot_dimension_numbers<[1], [0], [0], [1], [0, 0, 1, 1], [], []>} : vector<2x128xf32>, vector<128x128xf32>, vector<2x128xf32> -> vector<2x128xf32>
    %491 = vector.extract_strided_slice %485 {offsets = [0, 1, 0], sizes = [2, 1, 128], strides = [1, 1, 1]} : vector<2x16x128xf32> to vector<2x1x128xf32>
    %492 = vector.shape_cast %491 : vector<2x1x128xf32> to vector<2x128xf32>
    %c1_103 = arith.constant 1 : index
    %c0_104 = arith.constant 0 : index
    %c0_105 = arith.constant 0 : index
    %493 = vector.load %arg7[%c1_103, %c0_104, %c0_105] : memref<16x128x128xf32, #tpu.memory_space<vmem>>, vector<1x128x128xf32>
    %494 = vector.shape_cast %493 : vector<1x128x128xf32> to vector<128x128xf32>
    %cst_106 = arith.constant dense<0.000000e+00> : vector<2x128xf32>
    %495 = tpu.matmul %492, %494, %cst_106 {dimension_numbers = #tpu.dot_dimension_numbers<[1], [0], [0], [1], [0, 0, 1, 1], [], []>} : vector<2x128xf32>, vector<128x128xf32>, vector<2x128xf32> -> vector<2x128xf32>
    %496 = arith.addf %490, %495 : vector<2x128xf32>
    %497 = vector.extract_strided_slice %485 {offsets = [0, 2, 0], sizes = [2, 1, 128], strides = [1, 1, 1]} : vector<2x16x128xf32> to vector<2x1x128xf32>
    %498 = vector.shape_cast %497 : vector<2x1x128xf32> to vector<2x128xf32>
    %c2_107 = arith.constant 2 : index
    %c0_108 = arith.constant 0 : index
    %c0_109 = arith.constant 0 : index
    %499 = vector.load %arg7[%c2_107, %c0_108, %c0_109] : memref<16x128x128xf32, #tpu.memory_space<vmem>>, vector<1x128x128xf32>
    %500 = vector.shape_cast %499 : vector<1x128x128xf32> to vector<128x128xf32>
    %cst_110 = arith.constant dense<0.000000e+00> : vector<2x128xf32>
    %501 = tpu.matmul %498, %500, %cst_110 {dimension_numbers = #tpu.dot_dimension_numbers<[1], [0], [0], [1], [0, 0, 1, 1], [], []>} : vector<2x128xf32>, vector<128x128xf32>, vector<2x128xf32> -> vector<2x128xf32>
    %502 = arith.addf %496, %501 : vector<2x128xf32>
    %503 = vector.extract_strided_slice %485 {offsets = [0, 3, 0], sizes = [2, 1, 128], strides = [1, 1, 1]} : vector<2x16x128xf32> to vector<2x1x128xf32>
    %504 = vector.shape_cast %503 : vector<2x1x128xf32> to vector<2x128xf32>
    %c3_111 = arith.constant 3 : index
    %c0_112 = arith.constant 0 : index
    %c0_113 = arith.constant 0 : index
    %505 = vector.load %arg7[%c3_111, %c0_112, %c0_113] : memref<16x128x128xf32, #tpu.memory_space<vmem>>, vector<1x128x128xf32>
    %506 = vector.shape_cast %505 : vector<1x128x128xf32> to vector<128x128xf32>
    %cst_114 = arith.constant dense<0.000000e+00> : vector<2x128xf32>
    %507 = tpu.matmul %504, %506, %cst_114 {dimension_numbers = #tpu.dot_dimension_numbers<[1], [0], [0], [1], [0, 0, 1, 1], [], []>} : vector<2x128xf32>, vector<128x128xf32>, vector<2x128xf32> -> vector<2x128xf32>
    %508 = arith.addf %502, %507 : vector<2x128xf32>
    %509 = vector.extract_strided_slice %485 {offsets = [0, 4, 0], sizes = [2, 1, 128], strides = [1, 1, 1]} : vector<2x16x128xf32> to vector<2x1x128xf32>
    %510 = vector.shape_cast %509 : vector<2x1x128xf32> to vector<2x128xf32>
    %c4_115 = arith.constant 4 : index
    %c0_116 = arith.constant 0 : index
    %c0_117 = arith.constant 0 : index
    %511 = vector.load %arg7[%c4_115, %c0_116, %c0_117] : memref<16x128x128xf32, #tpu.memory_space<vmem>>, vector<1x128x128xf32>
    %512 = vector.shape_cast %511 : vector<1x128x128xf32> to vector<128x128xf32>
    %cst_118 = arith.constant dense<0.000000e+00> : vector<2x128xf32>
    %513 = tpu.matmul %510, %512, %cst_118 {dimension_numbers = #tpu.dot_dimension_numbers<[1], [0], [0], [1], [0, 0, 1, 1], [], []>} : vector<2x128xf32>, vector<128x128xf32>, vector<2x128xf32> -> vector<2x128xf32>
    %514 = arith.addf %508, %513 : vector<2x128xf32>
    %515 = vector.extract_strided_slice %485 {offsets = [0, 5, 0], sizes = [2, 1, 128], strides = [1, 1, 1]} : vector<2x16x128xf32> to vector<2x1x128xf32>
    %516 = vector.shape_cast %515 : vector<2x1x128xf32> to vector<2x128xf32>
    %c5_119 = arith.constant 5 : index
    %c0_120 = arith.constant 0 : index
    %c0_121 = arith.constant 0 : index
    %517 = vector.load %arg7[%c5_119, %c0_120, %c0_121] : memref<16x128x128xf32, #tpu.memory_space<vmem>>, vector<1x128x128xf32>
    %518 = vector.shape_cast %517 : vector<1x128x128xf32> to vector<128x128xf32>
    %cst_122 = arith.constant dense<0.000000e+00> : vector<2x128xf32>
    %519 = tpu.matmul %516, %518, %cst_122 {dimension_numbers = #tpu.dot_dimension_numbers<[1], [0], [0], [1], [0, 0, 1, 1], [], []>} : vector<2x128xf32>, vector<128x128xf32>, vector<2x128xf32> -> vector<2x128xf32>
    %520 = arith.addf %514, %519 : vector<2x128xf32>
    %521 = vector.extract_strided_slice %485 {offsets = [0, 6, 0], sizes = [2, 1, 128], strides = [1, 1, 1]} : vector<2x16x128xf32> to vector<2x1x128xf32>
    %522 = vector.shape_cast %521 : vector<2x1x128xf32> to vector<2x128xf32>
    %c6_123 = arith.constant 6 : index
    %c0_124 = arith.constant 0 : index
    %c0_125 = arith.constant 0 : index
    %523 = vector.load %arg7[%c6_123, %c0_124, %c0_125] : memref<16x128x128xf32, #tpu.memory_space<vmem>>, vector<1x128x128xf32>
    %524 = vector.shape_cast %523 : vector<1x128x128xf32> to vector<128x128xf32>
    %cst_126 = arith.constant dense<0.000000e+00> : vector<2x128xf32>
    %525 = tpu.matmul %522, %524, %cst_126 {dimension_numbers = #tpu.dot_dimension_numbers<[1], [0], [0], [1], [0, 0, 1, 1], [], []>} : vector<2x128xf32>, vector<128x128xf32>, vector<2x128xf32> -> vector<2x128xf32>
    %526 = arith.addf %520, %525 : vector<2x128xf32>
    %527 = vector.extract_strided_slice %485 {offsets = [0, 7, 0], sizes = [2, 1, 128], strides = [1, 1, 1]} : vector<2x16x128xf32> to vector<2x1x128xf32>
    %528 = vector.shape_cast %527 : vector<2x1x128xf32> to vector<2x128xf32>
    %c7_127 = arith.constant 7 : index
    %c0_128 = arith.constant 0 : index
    %c0_129 = arith.constant 0 : index
    %529 = vector.load %arg7[%c7_127, %c0_128, %c0_129] : memref<16x128x128xf32, #tpu.memory_space<vmem>>, vector<1x128x128xf32>
    %530 = vector.shape_cast %529 : vector<1x128x128xf32> to vector<128x128xf32>
    %cst_130 = arith.constant dense<0.000000e+00> : vector<2x128xf32>
    %531 = tpu.matmul %528, %530, %cst_130 {dimension_numbers = #tpu.dot_dimension_numbers<[1], [0], [0], [1], [0, 0, 1, 1], [], []>} : vector<2x128xf32>, vector<128x128xf32>, vector<2x128xf32> -> vector<2x128xf32>
    %532 = arith.addf %526, %531 : vector<2x128xf32>
    %533 = vector.extract_strided_slice %485 {offsets = [0, 8, 0], sizes = [2, 1, 128], strides = [1, 1, 1]} : vector<2x16x128xf32> to vector<2x1x128xf32>
    %534 = vector.shape_cast %533 : vector<2x1x128xf32> to vector<2x128xf32>
    %c8_131 = arith.constant 8 : index
    %c0_132 = arith.constant 0 : index
    %c0_133 = arith.constant 0 : index
    %535 = vector.load %arg7[%c8_131, %c0_132, %c0_133] : memref<16x128x128xf32, #tpu.memory_space<vmem>>, vector<1x128x128xf32>
    %536 = vector.shape_cast %535 : vector<1x128x128xf32> to vector<128x128xf32>
    %cst_134 = arith.constant dense<0.000000e+00> : vector<2x128xf32>
    %537 = tpu.matmul %534, %536, %cst_134 {dimension_numbers = #tpu.dot_dimension_numbers<[1], [0], [0], [1], [0, 0, 1, 1], [], []>} : vector<2x128xf32>, vector<128x128xf32>, vector<2x128xf32> -> vector<2x128xf32>
    %538 = arith.addf %532, %537 : vector<2x128xf32>
    %539 = vector.extract_strided_slice %485 {offsets = [0, 9, 0], sizes = [2, 1, 128], strides = [1, 1, 1]} : vector<2x16x128xf32> to vector<2x1x128xf32>
    %540 = vector.shape_cast %539 : vector<2x1x128xf32> to vector<2x128xf32>
    %c9_135 = arith.constant 9 : index
    %c0_136 = arith.constant 0 : index
    %c0_137 = arith.constant 0 : index
    %541 = vector.load %arg7[%c9_135, %c0_136, %c0_137] : memref<16x128x128xf32, #tpu.memory_space<vmem>>, vector<1x128x128xf32>
    %542 = vector.shape_cast %541 : vector<1x128x128xf32> to vector<128x128xf32>
    %cst_138 = arith.constant dense<0.000000e+00> : vector<2x128xf32>
    %543 = tpu.matmul %540, %542, %cst_138 {dimension_numbers = #tpu.dot_dimension_numbers<[1], [0], [0], [1], [0, 0, 1, 1], [], []>} : vector<2x128xf32>, vector<128x128xf32>, vector<2x128xf32> -> vector<2x128xf32>
    %544 = arith.addf %538, %543 : vector<2x128xf32>
    %545 = vector.extract_strided_slice %485 {offsets = [0, 10, 0], sizes = [2, 1, 128], strides = [1, 1, 1]} : vector<2x16x128xf32> to vector<2x1x128xf32>
    %546 = vector.shape_cast %545 : vector<2x1x128xf32> to vector<2x128xf32>
    %c10_139 = arith.constant 10 : index
    %c0_140 = arith.constant 0 : index
    %c0_141 = arith.constant 0 : index
    %547 = vector.load %arg7[%c10_139, %c0_140, %c0_141] : memref<16x128x128xf32, #tpu.memory_space<vmem>>, vector<1x128x128xf32>
    %548 = vector.shape_cast %547 : vector<1x128x128xf32> to vector<128x128xf32>
    %cst_142 = arith.constant dense<0.000000e+00> : vector<2x128xf32>
    %549 = tpu.matmul %546, %548, %cst_142 {dimension_numbers = #tpu.dot_dimension_numbers<[1], [0], [0], [1], [0, 0, 1, 1], [], []>} : vector<2x128xf32>, vector<128x128xf32>, vector<2x128xf32> -> vector<2x128xf32>
    %550 = arith.addf %544, %549 : vector<2x128xf32>
    %551 = vector.extract_strided_slice %485 {offsets = [0, 11, 0], sizes = [2, 1, 128], strides = [1, 1, 1]} : vector<2x16x128xf32> to vector<2x1x128xf32>
    %552 = vector.shape_cast %551 : vector<2x1x128xf32> to vector<2x128xf32>
    %c11_143 = arith.constant 11 : index
    %c0_144 = arith.constant 0 : index
    %c0_145 = arith.constant 0 : index
    %553 = vector.load %arg7[%c11_143, %c0_144, %c0_145] : memref<16x128x128xf32, #tpu.memory_space<vmem>>, vector<1x128x128xf32>
    %554 = vector.shape_cast %553 : vector<1x128x128xf32> to vector<128x128xf32>
    %cst_146 = arith.constant dense<0.000000e+00> : vector<2x128xf32>
    %555 = tpu.matmul %552, %554, %cst_146 {dimension_numbers = #tpu.dot_dimension_numbers<[1], [0], [0], [1], [0, 0, 1, 1], [], []>} : vector<2x128xf32>, vector<128x128xf32>, vector<2x128xf32> -> vector<2x128xf32>
    %556 = arith.addf %550, %555 : vector<2x128xf32>
    %557 = vector.extract_strided_slice %485 {offsets = [0, 12, 0], sizes = [2, 1, 128], strides = [1, 1, 1]} : vector<2x16x128xf32> to vector<2x1x128xf32>
    %558 = vector.shape_cast %557 : vector<2x1x128xf32> to vector<2x128xf32>
    %c12_147 = arith.constant 12 : index
    %c0_148 = arith.constant 0 : index
    %c0_149 = arith.constant 0 : index
    %559 = vector.load %arg7[%c12_147, %c0_148, %c0_149] : memref<16x128x128xf32, #tpu.memory_space<vmem>>, vector<1x128x128xf32>
    %560 = vector.shape_cast %559 : vector<1x128x128xf32> to vector<128x128xf32>
    %cst_150 = arith.constant dense<0.000000e+00> : vector<2x128xf32>
    %561 = tpu.matmul %558, %560, %cst_150 {dimension_numbers = #tpu.dot_dimension_numbers<[1], [0], [0], [1], [0, 0, 1, 1], [], []>} : vector<2x128xf32>, vector<128x128xf32>, vector<2x128xf32> -> vector<2x128xf32>
    %562 = arith.addf %556, %561 : vector<2x128xf32>
    %563 = vector.extract_strided_slice %485 {offsets = [0, 13, 0], sizes = [2, 1, 128], strides = [1, 1, 1]} : vector<2x16x128xf32> to vector<2x1x128xf32>
    %564 = vector.shape_cast %563 : vector<2x1x128xf32> to vector<2x128xf32>
    %c13_151 = arith.constant 13 : index
    %c0_152 = arith.constant 0 : index
    %c0_153 = arith.constant 0 : index
    %565 = vector.load %arg7[%c13_151, %c0_152, %c0_153] : memref<16x128x128xf32, #tpu.memory_space<vmem>>, vector<1x128x128xf32>
    %566 = vector.shape_cast %565 : vector<1x128x128xf32> to vector<128x128xf32>
    %cst_154 = arith.constant dense<0.000000e+00> : vector<2x128xf32>
    %567 = tpu.matmul %564, %566, %cst_154 {dimension_numbers = #tpu.dot_dimension_numbers<[1], [0], [0], [1], [0, 0, 1, 1], [], []>} : vector<2x128xf32>, vector<128x128xf32>, vector<2x128xf32> -> vector<2x128xf32>
    %568 = arith.addf %562, %567 : vector<2x128xf32>
    %569 = vector.extract_strided_slice %485 {offsets = [0, 14, 0], sizes = [2, 1, 128], strides = [1, 1, 1]} : vector<2x16x128xf32> to vector<2x1x128xf32>
    %570 = vector.shape_cast %569 : vector<2x1x128xf32> to vector<2x128xf32>
    %c14_155 = arith.constant 14 : index
    %c0_156 = arith.constant 0 : index
    %c0_157 = arith.constant 0 : index
    %571 = vector.load %arg7[%c14_155, %c0_156, %c0_157] : memref<16x128x128xf32, #tpu.memory_space<vmem>>, vector<1x128x128xf32>
    %572 = vector.shape_cast %571 : vector<1x128x128xf32> to vector<128x128xf32>
    %cst_158 = arith.constant dense<0.000000e+00> : vector<2x128xf32>
    %573 = tpu.matmul %570, %572, %cst_158 {dimension_numbers = #tpu.dot_dimension_numbers<[1], [0], [0], [1], [0, 0, 1, 1], [], []>} : vector<2x128xf32>, vector<128x128xf32>, vector<2x128xf32> -> vector<2x128xf32>
    %574 = arith.addf %568, %573 : vector<2x128xf32>
    %575 = vector.extract_strided_slice %485 {offsets = [0, 15, 0], sizes = [2, 1, 128], strides = [1, 1, 1]} : vector<2x16x128xf32> to vector<2x1x128xf32>
    %576 = vector.shape_cast %575 : vector<2x1x128xf32> to vector<2x128xf32>
    %c15_159 = arith.constant 15 : index
    %c0_160 = arith.constant 0 : index
    %c0_161 = arith.constant 0 : index
    %577 = vector.load %arg7[%c15_159, %c0_160, %c0_161] : memref<16x128x128xf32, #tpu.memory_space<vmem>>, vector<1x128x128xf32>
    %578 = vector.shape_cast %577 : vector<1x128x128xf32> to vector<128x128xf32>
    %cst_162 = arith.constant dense<0.000000e+00> : vector<2x128xf32>
    %579 = tpu.matmul %576, %578, %cst_162 {dimension_numbers = #tpu.dot_dimension_numbers<[1], [0], [0], [1], [0, 0, 1, 1], [], []>} : vector<2x128xf32>, vector<128x128xf32>, vector<2x128xf32> -> vector<2x128xf32>
    %580 = arith.addf %574, %579 : vector<2x128xf32>
    %c0_163 = arith.constant 0 : index
    %c0_164 = arith.constant 0 : index
    %581 = vector.load %arg8[%c0_163, %c0_164] : memref<1x128xf32, #tpu.memory_space<vmem>>, vector<1x128xf32>
    %582 = vector.broadcast %581 : vector<1x128xf32> to vector<2x128xf32>
    %583 = arith.addf %580, %582 : vector<2x128xf32>
    %c0_165 = arith.constant 0 : index
    %c0_166 = arith.constant 0 : index
    %584 = vector.load %arg16[%c0_165, %c0_166] : memref<2x128xf32, #tpu.memory_space<vmem>>, vector<2x128xf32>
    tpu.vector_store %arg16[%c0_165, %c0_166], %583 {strides = array<i32>} : memref<2x128xf32, #tpu.memory_space<vmem>>, vector<2x128xf32>,
    return
  }
}

</mosaic_0001>

<llo_original>
// kernel: tpu_custom_call.1
$region0: #{tpu_custom_call.1}
  #allocation0 [shape = 'u32[]', space=smem, size = 0x4, offset = 0x4, fixed_abs, tag = 'smem constant byte address 0x4 - core index']
  #allocation1 [shape = 'u32[144,128]{1,0:T(1,128)}', space=vmem, size = 0x12000, scoped, tag = 'internal scratch']
  #allocation2 [shape = 'f32[1]{0:T(128)S(6)}', space=smem, size = 0x200, scoped, tag = 'scoped memory for tpu_custom_call.1']
  %s0 = inlined_call_operand.vmem [shape: f32[2,16,128], index: 0, kind: input, shape index: {}]
  %s1 = inlined_call_operand.vmem [shape: f32[2,16,128], index: 1, kind: input, shape index: {}]
  %s2 = inlined_call_operand.vmem [shape: f32[2,768], index: 2, kind: input, shape index: {}]
  %s3 = inlined_call_operand.vmem [shape: f32[768,64], index: 3, kind: input, shape index: {}]
  %s4 = inlined_call_operand.vmem [shape: f32[1,64], index: 4, kind: input, shape index: {}]
  %s5 = inlined_call_operand.vmem [shape: f32[64,32], index: 5, kind: input, shape index: {}]
  %s6 = inlined_call_operand.vmem [shape: f32[1,32], index: 6, kind: input, shape index: {}]
  %s7 = inlined_call_operand.hbm [shape: f32[16,128,128], index: 7, kind: input, shape index: {}]
  %s8 = inlined_call_operand.vmem [shape: f32[1,128], index: 8, kind: input, shape index: {}]
  %s9 = inlined_call_operand.vmem [shape: f32[32], index: 9, kind: input, shape index: {}]
  %s10 = inlined_call_operand.vmem [shape: f32[32], index: 10, kind: input, shape index: {}]
  %s11 = inlined_call_operand.<no memory space> [shape: f32[1], index: 11, kind: input, shape index: {}]
  %s12 = inlined_call_operand.hbm [shape: f32[2,16,128], index: 12, kind: output, shape index: {0}]
  %s13 = inlined_call_operand.hbm [shape: f32[2,64], index: 13, kind: output, shape index: {1}]
  %s14 = inlined_call_operand.hbm [shape: f32[2,16,128], index: 14, kind: output, shape index: {2}]
  %s15 = inlined_call_operand.hbm [shape: f32[2,16,128], index: 15, kind: output, shape index: {3}]
  %s16 = inlined_call_operand.hbm [shape: f32[2,128], index: 16, kind: output, shape index: {4}]
  %17 = xla_tuple %s12, %s13, %s14, %s15, %s16
  %s18 = sld [smem:[#allocation0]]
  $region102: #{tpu_custom_call.1} parent=0
    _
  %s20 = ssub.s32 1, %s18
  %s21 = scalar_select 0, %s20, %s18
  %22 = sst [smem:[#allocation2]] %s11
  $region1: #{tpu_custom_call.1} parent=0
    #allocation3 [shape = 'u8[1048576]{0}', space=vmem, size = 0x100000, scoped, tag = 'input window, operand 7, single buffered']
    #allocation4 [shape = 's32[1]{0}', space=sflag, size = 0x4, scoped, tag = 'scoped memory for tpu_custom_call.1']
    #allocation5 [shape = 's32[1]{0}', space=sflag, size = 0x4, scoped, tag = 'scoped memory for tpu_custom_call.1']
    #allocation6 [shape = 's32[1]{0}', space=sflag, size = 0x4, scoped, tag = 'scoped memory for tpu_custom_call.1']
    #allocation7 [shape = 'u8[512]{0}', space=smem, size = 0x200, scoped, tag = 'input window, operand 9, single buffered']
    #allocation8 [shape = 'u8[512]{0}', space=smem, size = 0x200, scoped, tag = 'input window, operand 10, single buffered']
    #allocation9 [shape = 's32[1]{0}', space=sflag, size = 0x4, scoped, tag = 'scoped memory for tpu_custom_call.1']
    #allocation10 [shape = 'u8[16384]{0}', space=vmem, size = 0x4000, scoped, tag = 'output window, operand 0, single buffered']
    #allocation11 [shape = 'u8[1024]{0}', space=vmem, size = 0x400, scoped, tag = 'output window, operand 1, single buffered']
    #allocation12 [shape = 's32[1]{0}', space=sflag, size = 0x4, scoped, tag = 'scoped memory for tpu_custom_call.1']
    #allocation13 [shape = 'u8[16384]{0}', space=vmem, size = 0x4000, scoped, tag = 'output window, operand 2, single buffered']
    #allocation14 [shape = 'u8[16384]{0}', space=vmem, size = 0x4000, scoped, tag = 'output window, operand 3, single buffered']
    #allocation15 [shape = 's32[1]{0}', space=sflag, size = 0x4, scoped, tag = 'scoped memory for tpu_custom_call.1']
    #allocation16 [shape = 'u8[1024]{0}', space=vmem, size = 0x400, scoped, tag = 'output window, operand 4, single buffered']
    %23 = vsyncpa [#allocation4], 0
    %24 = vsyncpa [#allocation6], 0
    %25 = vsyncpa [#allocation9], 0
    %26 = vsyncpa [#allocation5], 0
    %27 = vsyncpa [#allocation12], 0
    %28 = vsyncpa [#allocation15], 0
    // Predicated region
    $region2: #{tpu_custom_call.1} parent=1 // pred_check
      _
    $region3: #{tpu_custom_call.1} parent=1 // pred_check_branch
      %30 = sbr.rel (0) target = $region5
    $region4: #{tpu_custom_call.1} parent=1 // pred_region
      _
    $region5: #{tpu_custom_call.1} parent=1 // pred_fallthru
      _
    // Predicated region
    $region6: #{tpu_custom_call.1} parent=1 // pred_check
      _
    $region7: #{tpu_custom_call.1} parent=1 // pred_check_branch
      %32 = sbr.rel (0) target = $region9
    $region8: #{tpu_custom_call.1} parent=1 // pred_region
      _
    $region9: #{tpu_custom_call.1} parent=1 // pred_fallthru
      _
    // Predicated region
    $region10: #{tpu_custom_call.1} parent=1 // pred_check
      _
    $region11: #{tpu_custom_call.1} parent=1 // pred_check_branch
      %34 = sbr.rel (0) target = $region13
    $region12: #{tpu_custom_call.1} parent=1 // pred_region
      _
    $region13: #{tpu_custom_call.1} parent=1 // pred_fallthru
      _
    // Predicated region
    $region14: #{tpu_custom_call.1} parent=1 // pred_check
      _
    $region15: #{tpu_custom_call.1} parent=1 // pred_check_branch
      %36 = sbr.rel (0) target = $region17
    $region16: #{tpu_custom_call.1} parent=1 // pred_region
      _
    $region17: #{tpu_custom_call.1} parent=1 // pred_fallthru
      _
    // Predicated region
    $region18: #{tpu_custom_call.1} parent=1 // pred_check
      _
    $region19: #{tpu_custom_call.1} parent=1 // pred_check_branch
      %38 = sbr.rel (0) target = $region21
    $region20: #{tpu_custom_call.1} parent=1 // pred_region
      _
    $region21: #{tpu_custom_call.1} parent=1 // pred_fallthru
      _
    // Predicated region
    $region22: #{tpu_custom_call.1} parent=1 // pred_check
      _
    $region23: #{tpu_custom_call.1} parent=1 // pred_check_branch
      %40 = sbr.rel (0) target = $region25
    $region24: #{tpu_custom_call.1} parent=1 // pred_region
      _
    $region25: #{tpu_custom_call.1} parent=1 // pred_fallthru
      _
    // Predicated region
    $region26: #{tpu_custom_call.1} parent=1 // pred_check
      _
    $region27: #{tpu_custom_call.1} parent=1 // pred_check_branch
      %42 = sbr.rel (0) target = $region29
    $region28: #{tpu_custom_call.1} parent=1 // pred_region
      _
    $region29: #{tpu_custom_call.1} parent=1 // pred_fallthru
      _
    // Predicated region
    $region30: #{tpu_custom_call.1} parent=1 // pred_check
      _
    $region31: #{tpu_custom_call.1} parent=1 // pred_check_branch
      %44 = sbr.rel (0) target = $region33
    $region32: #{tpu_custom_call.1} parent=1 // pred_region
      %s46 = ssub.s32 32768, 32768
      %47 = vsyncadd [#allocation4], %s46
      %s48 = sshll.u32 [#allocation3], 4
      %s49 = int_to_ptr.vmem [resolvable:$true] %s48
      %54 = dma.hbm_to_vmem [thread:$0]  %s7, 32768, %s49, [#allocation4], 128, 128, 8
    $region33: #{tpu_custom_call.1} parent=1 // pred_fallthru
      _
    // Predicated region
    $region34: #{tpu_custom_call.1} parent=1 // pred_check
      _
    $region35: #{tpu_custom_call.1} parent=1 // pred_check_branch
      %56 = sbr.rel (0) target = $region37
    $region36: #{tpu_custom_call.1} parent=1 // pred_region
      _
    $region37: #{tpu_custom_call.1} parent=1 // pred_fallthru
      _
    // Predicated region
    $region38: #{tpu_custom_call.1} parent=1 // pred_check
      _
    $region39: #{tpu_custom_call.1} parent=1 // pred_check_branch
      %58 = sbr.rel (0) target = $region41
    $region40: #{tpu_custom_call.1} parent=1 // pred_region
      %s60 = ssub.s32 16, 16
      %61 = vsyncadd [#allocation6], %s60
      %s63 = sshll.u32 %s9, 4
      %s64 = int_to_ptr.vmem [resolvable:$true] %s63
      %66 = dma.vmem_to_smem %s64, 16, [#allocation7], [#allocation6]
    $region41: #{tpu_custom_call.1} parent=1 // pred_fallthru
      _
    // Predicated region
    $region42: #{tpu_custom_call.1} parent=1 // pred_check
      _
    $region43: #{tpu_custom_call.1} parent=1 // pred_check_branch
      %68 = sbr.rel (0) target = $region45
    $region44: #{tpu_custom_call.1} parent=1 // pred_region
      %s70 = ssub.s32 16, 16
      %71 = vsyncadd [#allocation9], %s70
      %s73 = sshll.u32 %s10, 4
      %s74 = int_to_ptr.vmem [resolvable:$true] %s73
      %76 = dma.vmem_to_smem %s74, 16, [#allocation8], [#allocation9]
    $region45: #{tpu_custom_call.1} parent=1 // pred_fallthru
      _
    // Predicated region
    $region46: #{tpu_custom_call.1} parent=1 // pred_check
      _
    $region47: #{tpu_custom_call.1} parent=1 // pred_check_branch
      %78 = sbr.rel (0) target = $region49
    $region48: #{tpu_custom_call.1} parent=1 // pred_region
      _
    $region49: #{tpu_custom_call.1} parent=1 // pred_fallthru
      _
    // Predicated region
    $region50: #{tpu_custom_call.1} parent=1 // pred_check
      _
    $region51: #{tpu_custom_call.1} parent=1 // pred_check_branch
      %80 = sbr.rel (0) target = $region53
    $region52: #{tpu_custom_call.1} parent=1 // pred_region
      %81 = dma.done [#allocation4], 32768
    $region53: #{tpu_custom_call.1} parent=1 // pred_fallthru
      _
    // Predicated region
    $region54: #{tpu_custom_call.1} parent=1 // pred_check
      _
    $region55: #{tpu_custom_call.1} parent=1 // pred_check_branch
      %83 = sbr.rel (0) target = $region57
    $region56: #{tpu_custom_call.1} parent=1 // pred_region
      %84 = dma.done [#allocation6], 16
    $region57: #{tpu_custom_call.1} parent=1 // pred_fallthru
      _
    // Predicated region
    $region58: #{tpu_custom_call.1} parent=1 // pred_check
      _
    $region59: #{tpu_custom_call.1} parent=1 // pred_check_branch
      %86 = sbr.rel (0) target = $region61
    $region60: #{tpu_custom_call.1} parent=1 // pred_region
      %87 = dma.done [#allocation9], 16
    $region61: #{tpu_custom_call.1} parent=1 // pred_fallthru
      _
    %88 = sfence
    %v89 = vld [vmem:[%s0] sm:$0xff]
    %v90 = vld [vmem:[%s0 + $0x8] sm:$0xff]
    %v91 = vld [vmem:[%s0 + $0x10] sm:$0xff]
    %v92 = vld [vmem:[%s0 + $0x18] sm:$0xff]
    %v93 = vld [vmem:[%s1] sm:$0xff]
    %v94 = vld [vmem:[%s1 + $0x8] sm:$0xff]
    %v95 = vld [vmem:[%s1 + $0x10] sm:$0xff]
    %v96 = vld [vmem:[%s1 + $0x18] sm:$0xff]
    %v97 = vrcp.pop %v89
    %v98 = vmul.f32 %v93, %v97
    %v99 = vrcp.pop %v90
    %v100 = vmul.f32 %v94, %v99
    %v101 = vrcp.pop %v91
    %v102 = vmul.f32 %v95, %v101
    %v103 = vrcp.pop %v92
    %v104 = vmul.f32 %v96, %v103
    %v105 = vmax.f32 %v98, 0.0
    %v106 = vmax.f32 %v100, 0.0
    %v107 = vmax.f32 %v102, 0.0
    %v108 = vmax.f32 %v104, 0.0
    %v109 = vmin.f32 %v105, 5.0
    %v110 = vmin.f32 %v106, 5.0
    %v111 = vmin.f32 %v107, 5.0
    %v112 = vmin.f32 %v108, 5.0
    %113 = vst [vmem:[#allocation10] sm:$0xff] %v109
    %114 = vst [vmem:[#allocation10 + $0x8] sm:$0xff] %v110
    %115 = vst [vmem:[#allocation10 + $0x10] sm:$0xff] %v111
    %116 = vst [vmem:[#allocation10 + $0x18] sm:$0xff] %v112
    %v117 = vlog2.pop %v89
    %v118 = vmul.f32 %v117, 0.6931472
    %v119 = vlog2.pop %v90
    %v120 = vmul.f32 %v119, 0.6931472
    %v121 = vlog2.pop %v91
    %v122 = vmul.f32 %v121, 0.6931472
    %v123 = vlog2.pop %v92
    %v124 = vmul.f32 %v123, 0.6931472
    %v125 = vld [vmem:[%s2] sm:$0xff]
    %v126 = vld [vmem:[%s2 + $0x8] sm:$0xf]
    %v127 = vld [vmem:[%s3] sm:$0xff]
    %v128 = vld [vmem:[%s3 + $0x8] sm:$0xff]
    %v129 = vld [vmem:[%s3 + $0x10] sm:$0xff]
    %v130 = vld [vmem:[%s3 + $0x18] sm:$0xff]
    %v131 = vld [vmem:[%s3 + $0x20] sm:$0xff]
    %v132 = vld [vmem:[%s3 + $0x28] sm:$0xff]
    %v133 = vld [vmem:[%s3 + $0x30] sm:$0xff]
    %v134 = vld [vmem:[%s3 + $0x38] sm:$0xff]
    %v135 = vld [vmem:[%s3 + $0x40] sm:$0xff]
    %v136 = vld [vmem:[%s3 + $0x48] sm:$0xff]
    %v137 = vld [vmem:[%s3 + $0x50] sm:$0xff]
    %v138 = vld [vmem:[%s3 + $0x58] sm:$0xff]
    %v139 = vld [vmem:[%s3 + $0x60] sm:$0xff]
    %v140 = vld [vmem:[%s3 + $0x68] sm:$0xff]
    %v141 = vld [vmem:[%s3 + $0x70] sm:$0xff]
    %v142 = vld [vmem:[%s3 + $0x78] sm:$0xff]
    %v143 = vld [vmem:[%s3 + $0x80] sm:$0xff]
    %v144 = vld [vmem:[%s3 + $0x88] sm:$0xff]
    %v145 = vld [vmem:[%s3 + $0x90] sm:$0xff]
    %v146 = vld [vmem:[%s3 + $0x98] sm:$0xff]
    %v147 = vld [vmem:[%s3 + $0xa0] sm:$0xff]
    %v148 = vld [vmem:[%s3 + $0xa8] sm:$0xff]
    %v149 = vld [vmem:[%s3 + $0xb0] sm:$0xff]
    %v150 = vld [vmem:[%s3 + $0xb8] sm:$0xff]
    %v151 = vld [vmem:[%s3 + $0xc0] sm:$0xff]
    %v152 = vld [vmem:[%s3 + $0xc8] sm:$0xff]
    %v153 = vld [vmem:[%s3 + $0xd0] sm:$0xff]
    %v154 = vld [vmem:[%s3 + $0xd8] sm:$0xff]
    %v155 = vld [vmem:[%s3 + $0xe0] sm:$0xff]
    %v156 = vld [vmem:[%s3 + $0xe8] sm:$0xff]
    %v157 = vld [vmem:[%s3 + $0xf0] sm:$0xff]
    %v158 = vld [vmem:[%s3 + $0xf8] sm:$0xff]
    %v159 = vld [vmem:[%s3 + $0x100] sm:$0xff]
    %v160 = vld [vmem:[%s3 + $0x108] sm:$0xff]
    %v161 = vld [vmem:[%s3 + $0x110] sm:$0xff]
    %v162 = vld [vmem:[%s3 + $0x118] sm:$0xff]
    %v163 = vld [vmem:[%s3 + $0x120] sm:$0xff]
    %v164 = vld [vmem:[%s3 + $0x128] sm:$0xff]
    %v165 = vld [vmem:[%s3 + $0x130] sm:$0xff]
    %v166 = vld [vmem:[%s3 + $0x138] sm:$0xff]
    %v167 = vld [vmem:[%s3 + $0x140] sm:$0xff]
    %v168 = vld [vmem:[%s3 + $0x148] sm:$0xff]
    %v169 = vld [vmem:[%s3 + $0x150] sm:$0xff]
    %v170 = vld [vmem:[%s3 + $0x158] sm:$0xff]
    %v171 = vld [vmem:[%s3 + $0x160] sm:$0xff]
    %v172 = vld [vmem:[%s3 + $0x168] sm:$0xff]
    %v173 = vld [vmem:[%s3 + $0x170] sm:$0xff]
    %v174 = vld [vmem:[%s3 + $0x178] sm:$0xff]
    %v175 = vld [vmem:[%s3 + $0x180] sm:$0xff]
    %v176 = vld [vmem:[%s3 + $0x188] sm:$0xff]
    %v177 = vld [vmem:[%s3 + $0x190] sm:$0xff]
    %v178 = vld [vmem:[%s3 + $0x198] sm:$0xff]
    %v179 = vld [vmem:[%s3 + $0x1a0] sm:$0xff]
    %v180 = vld [vmem:[%s3 + $0x1a8] sm:$0xff]
    %v181 = vld [vmem:[%s3 + $0x1b0] sm:$0xff]
    %v182 = vld [vmem:[%s3 + $0x1b8] sm:$0xff]
    %v183 = vld [vmem:[%s3 + $0x1c0] sm:$0xff]
    %v184 = vld [vmem:[%s3 + $0x1c8] sm:$0xff]
    %v185 = vld [vmem:[%s3 + $0x1d0] sm:$0xff]
    %v186 = vld [vmem:[%s3 + $0x1d8] sm:$0xff]
    %v187 = vld [vmem:[%s3 + $0x1e0] sm:$0xff]
    %v188 = vld [vmem:[%s3 + $0x1e8] sm:$0xff]
    %v189 = vld [vmem:[%s3 + $0x1f0] sm:$0xff]
    %v190 = vld [vmem:[%s3 + $0x1f8] sm:$0xff]
    %v191 = vld [vmem:[%s3 + $0x200] sm:$0xff]
    %v192 = vld [vmem:[%s3 + $0x208] sm:$0xff]
    %v193 = vld [vmem:[%s3 + $0x210] sm:$0xff]
    %v194 = vld [vmem:[%s3 + $0x218] sm:$0xff]
    %v195 = vld [vmem:[%s3 + $0x220] sm:$0xff]
    %v196 = vld [vmem:[%s3 + $0x228] sm:$0xff]
    %v197 = vld [vmem:[%s3 + $0x230] sm:$0xff]
    %v198 = vld [vmem:[%s3 + $0x238] sm:$0xff]
    %v199 = vld [vmem:[%s3 + $0x240] sm:$0xff]
    %v200 = vld [vmem:[%s3 + $0x248] sm:$0xff]
    %v201 = vld [vmem:[%s3 + $0x250] sm:$0xff]
    %v202 = vld [vmem:[%s3 + $0x258] sm:$0xff]
    %v203 = vld [vmem:[%s3 + $0x260] sm:$0xff]
    %v204 = vld [vmem:[%s3 + $0x268] sm:$0xff]
    %v205 = vld [vmem:[%s3 + $0x270] sm:$0xff]
    %v206 = vld [vmem:[%s3 + $0x278] sm:$0xff]
    %v207 = vld [vmem:[%s3 + $0x280] sm:$0xff]
    %v208 = vld [vmem:[%s3 + $0x288] sm:$0xff]
    %v209 = vld [vmem:[%s3 + $0x290] sm:$0xff]
    %v210 = vld [vmem:[%s3 + $0x298] sm:$0xff]
    %v211 = vld [vmem:[%s3 + $0x2a0] sm:$0xff]
    %v212 = vld [vmem:[%s3 + $0x2a8] sm:$0xff]
    %v213 = vld [vmem:[%s3 + $0x2b0] sm:$0xff]
    %v214 = vld [vmem:[%s3 + $0x2b8] sm:$0xff]
    %v215 = vld [vmem:[%s3 + $0x2c0] sm:$0xff]
    %v216 = vld [vmem:[%s3 + $0x2c8] sm:$0xff]
    %v217 = vld [vmem:[%s3 + $0x2d0] sm:$0xff]
    %v218 = vld [vmem:[%s3 + $0x2d8] sm:$0xff]
    %v219 = vld [vmem:[%s3 + $0x2e0] sm:$0xff]
    %v220 = vld [vmem:[%s3 + $0x2e8] sm:$0xff]
    %v221 = vld [vmem:[%s3 + $0x2f0] sm:$0xff]
    %v222 = vld [vmem:[%s3 + $0x2f8] sm:$0xff]
    %v223 = vld [vmem:[%s4] sm:$0x1]
    %v225 = vlaneseq
    %v226 = vshrl.u32 %v225, 7
    %v227 = vsub.s32 0, %v226
    %v228 = vrot.slane %v223, %v227
    %v232 = vcombine.high %v125, %v125
    %v234 = vunpack.c.l.s4 1983009808
    %v235 = vunpack.c.0.s8 %v234
    %v236 = vlaneseq
    %v237 = vshrl.u32 %v236, 7
    %v238 = vsub.s32 %v235, %v237
    %v239 = vrot.slane %v125, %v238
    %v241 = vunpack.c.l.s4 1983009808
    %v242 = vunpack.c.0.s8 %v241
    %v243 = vlaneseq
    %v244 = vshrl.u32 %v243, 7
    %v245 = vsub.s32 %v242, %v244
    %v246 = vrot.slane %v232, %v245
    %v247 = vcombine.high %v239, %v239
    %v248 = vcombine.high %v246, %v246
    %v250 = vunpack.c.l.s4 1983009808
    %v251 = vunpack.c.0.s8 %v250
    %v252 = vlaneseq
    %v253 = vshrl.u32 %v252, 7
    %v254 = vsub.s32 %v251, %v253
    %v255 = vrot.slane %v126, %v254
    %v256 = vcombine.high %v255, %v255
    %263 = vmatprep.subr.mxu0 0.0
    %264 = vmatpush1.msra.mxu0 %v127
    %265 = vmatprep.subr.mxu0 0.0
    %266 = vmatpush1.msra.mxu0 %v128
    %267 = vmatprep.subr.mxu0 0.0
    %268 = vmatpush1.msra.mxu0 %v129
    %269 = vmatprep.subr.mxu0 0.0
    %270 = vmatpush1.msra.mxu0 %v130
    %271 = vmatprep.subr.mxu0 0.0
    %272 = vmatpush1.msra.mxu0 %v131
    %273 = vmatprep.subr.mxu0 0.0
    %274 = vmatpush1.msra.mxu0 %v132
    %275 = vmatprep.subr.mxu0 0.0
    %276 = vmatpush1.msra.mxu0 %v133
    %277 = vmatprep.subr.mxu0 0.0
    %278 = vmatpush1.msra.mxu0 %v134
    %279 = vmatprep.subr.mxu0 0.0
    %280 = vmatpush1.msra.mxu0 %v135
    %281 = vmatprep.subr.mxu0 0.0
    %282 = vmatpush1.msra.mxu0 %v136
    %283 = vmatprep.subr.mxu0 0.0
    %284 = vmatpush1.msra.mxu0 %v137
    %285 = vmatprep.subr.mxu0 0.0
    %286 = vmatpush1.msra.mxu0 %v138
    %287 = vmatprep.subr.mxu0 0.0
    %288 = vmatpush1.msra.mxu0 %v139
    %289 = vmatprep.subr.mxu0 0.0
    %290 = vmatpush1.msra.mxu0 %v140
    %291 = vmatprep.subr.mxu0 0.0
    %292 = vmatpush1.msra.mxu0 %v141
    %293 = vmatprep.subr.mxu0 0.0
    %294 = vmatpush1.msra.mxu0 %v142
    %295 = vmatprep.subr.mxu0 0.0
    %296 = vmatpush1.msra.mxu0 %v143
    %297 = vmatprep.subr.mxu0 0.0
    %298 = vmatpush1.msra.mxu0 %v144
    %299 = vmatprep.subr.mxu0 0.0
    %300 = vmatpush1.msra.mxu0 %v145
    %301 = vmatprep.subr.mxu0 0.0
    %302 = vmatpush1.msra.mxu0 %v146
    %303 = vmatprep.subr.mxu0 0.0
    %304 = vmatpush1.msra.mxu0 %v147
    %305 = vmatprep.subr.mxu0 0.0
    %306 = vmatpush1.msra.mxu0 %v148
    %307 = vmatprep.subr.mxu0 0.0
    %308 = vmatpush1.msra.mxu0 %v149
    %309 = vmatprep.subr.mxu0 0.0
    %310 = vmatpush1.msra.mxu0 %v150
    %311 = vmatprep.subr.mxu0 0.0
    %312 = vmatpush1.msra.mxu0 %v151
    %313 = vmatprep.subr.mxu0 0.0
    %314 = vmatpush1.msra.mxu0 %v152
    %315 = vmatprep.subr.mxu0 0.0
    %316 = vmatpush1.msra.mxu0 %v153
    %317 = vmatprep.subr.mxu0 0.0
    %318 = vmatpush1.msra.mxu0 %v154
    %319 = vmatprep.subr.mxu0 0.0
    %320 = vmatpush1.msra.mxu0 %v155
    %321 = vmatprep.subr.mxu0 0.0
    %322 = vmatpush1.msra.mxu0 %v156
    %323 = vmatprep.subr.mxu0 0.0
    %324 = vmatpush1.msra.mxu0 %v157
    %325 = vmatprep.subr.mxu0 0.0
    %326 = vmatpush1.msra.mxu0 %v158
    %327 = vmatprep.mubr.f32.mxu0 %v247
    %328 = vmatmul.mubr.f32.gmra.mrb[0].mxu0 %v239
    %v329 = vpop.f32.mrb[0].mxu0
    %v330 = vadd.f32 %v228, %v329
    %v331 = vpop.f32.mrb[0].mxu0
    %332 = vdwg.mxu0
    %333 = vmatprep.subr.mxu0 0.0
    %334 = vmatpush1.msra.mxu0 %v159
    %335 = vmatprep.subr.mxu0 0.0
    %336 = vmatpush1.msra.mxu0 %v160
    %337 = vmatprep.subr.mxu0 0.0
    %338 = vmatpush1.msra.mxu0 %v161
    %339 = vmatprep.subr.mxu0 0.0
    %340 = vmatpush1.msra.mxu0 %v162
    %341 = vmatprep.subr.mxu0 0.0
    %342 = vmatpush1.msra.mxu0 %v163
    %343 = vmatprep.subr.mxu0 0.0
    %344 = vmatpush1.msra.mxu0 %v164
    %345 = vmatprep.subr.mxu0 0.0
    %346 = vmatpush1.msra.mxu0 %v165
    %347 = vmatprep.subr.mxu0 0.0
    %348 = vmatpush1.msra.mxu0 %v166
    %349 = vmatprep.subr.mxu0 0.0
    %350 = vmatpush1.msra.mxu0 %v167
    %351 = vmatprep.subr.mxu0 0.0
    %352 = vmatpush1.msra.mxu0 %v168
    %353 = vmatprep.subr.mxu0 0.0
    %354 = vmatpush1.msra.mxu0 %v169
    %355 = vmatprep.subr.mxu0 0.0
    %356 = vmatpush1.msra.mxu0 %v170
    %357 = vmatprep.subr.mxu0 0.0
    %358 = vmatpush1.msra.mxu0 %v171
    %359 = vmatprep.subr.mxu0 0.0
    %360 = vmatpush1.msra.mxu0 %v172
    %361 = vmatprep.subr.mxu0 0.0
    %362 = vmatpush1.msra.mxu0 %v173
    %363 = vmatprep.subr.mxu0 0.0
    %364 = vmatpush1.msra.mxu0 %v174
    %365 = vmatprep.subr.mxu0 0.0
    %366 = vmatpush1.msra.mxu0 %v175
    %367 = vmatprep.subr.mxu0 0.0
    %368 = vmatpush1.msra.mxu0 %v176
    %369 = vmatprep.subr.mxu0 0.0
    %370 = vmatpush1.msra.mxu0 %v177
    %371 = vmatprep.subr.mxu0 0.0
    %372 = vmatpush1.msra.mxu0 %v178
    %373 = vmatprep.subr.mxu0 0.0
    %374 = vmatpush1.msra.mxu0 %v179
    %375 = vmatprep.subr.mxu0 0.0
    %376 = vmatpush1.msra.mxu0 %v180
    %377 = vmatprep.subr.mxu0 0.0
    %378 = vmatpush1.msra.mxu0 %v181
    %379 = vmatprep.subr.mxu0 0.0
    %380 = vmatpush1.msra.mxu0 %v182
    %381 = vmatprep.subr.mxu0 0.0
    %382 = vmatpush1.msra.mxu0 %v183
    %383 = vmatprep.subr.mxu0 0.0
    %384 = vmatpush1.msra.mxu0 %v184
    %385 = vmatprep.subr.mxu0 0.0
    %386 = vmatpush1.msra.mxu0 %v185
    %387 = vmatprep.subr.mxu0 0.0
    %388 = vmatpush1.msra.mxu0 %v186
    %389 = vmatprep.subr.mxu0 0.0
    %390 = vmatpush1.msra.mxu0 %v187
    %391 = vmatprep.subr.mxu0 0.0
    %392 = vmatpush1.msra.mxu0 %v188
    %393 = vmatprep.subr.mxu0 0.0
    %394 = vmatpush1.msra.mxu0 %v189
    %395 = vmatprep.subr.mxu0 0.0
    %396 = vmatpush1.msra.mxu0 %v190
    %397 = vmatprep.mubr.f32.mxu0 %v248
    %398 = vmatmul.mubr.f32.gmra.mrb[0].mxu0 %v246
    %v399 = vpop.f32.mrb[0].mxu0
    %v400 = vadd.f32 %v330, %v399
    %v401 = vpop.f32.mrb[0].mxu0
    %402 = vdwg.mxu0
    %403 = vmatprep.subr.mxu0 0.0
    %404 = vmatpush1.msra.mxu0 %v191
    %405 = vmatprep.subr.mxu0 0.0
    %406 = vmatpush1.msra.mxu0 %v192
    %407 = vmatprep.subr.mxu0 0.0
    %408 = vmatpush1.msra.mxu0 %v193
    %409 = vmatprep.subr.mxu0 0.0
    %410 = vmatpush1.msra.mxu0 %v194
    %411 = vmatprep.subr.mxu0 0.0
    %412 = vmatpush1.msra.mxu0 %v195
    %413 = vmatprep.subr.mxu0 0.0
    %414 = vmatpush1.msra.mxu0 %v196
    %415 = vmatprep.subr.mxu0 0.0
    %416 = vmatpush1.msra.mxu0 %v197
    %417 = vmatprep.subr.mxu0 0.0
    %418 = vmatpush1.msra.mxu0 %v198
    %419 = vmatprep.subr.mxu0 0.0
    %420 = vmatpush1.msra.mxu0 %v199
    %421 = vmatprep.subr.mxu0 0.0
    %422 = vmatpush1.msra.mxu0 %v200
    %423 = vmatprep.subr.mxu0 0.0
    %424 = vmatpush1.msra.mxu0 %v201
    %425 = vmatprep.subr.mxu0 0.0
    %426 = vmatpush1.msra.mxu0 %v202
    %427 = vmatprep.subr.mxu0 0.0
    %428 = vmatpush1.msra.mxu0 %v203
    %429 = vmatprep.subr.mxu0 0.0
    %430 = vmatpush1.msra.mxu0 %v204
    %431 = vmatprep.subr.mxu0 0.0
    %432 = vmatpush1.msra.mxu0 %v205
    %433 = vmatprep.subr.mxu0 0.0
    %434 = vmatpush1.msra.mxu0 %v206
    %435 = vmatprep.subr.mxu0 0.0
    %436 = vmatpush1.msra.mxu0 %v207
    %437 = vmatprep.subr.mxu0 0.0
    %438 = vmatpush1.msra.mxu0 %v208
    %439 = vmatprep.subr.mxu0 0.0
    %440 = vmatpush1.msra.mxu0 %v209
    %441 = vmatprep.subr.mxu0 0.0
    %442 = vmatpush1.msra.mxu0 %v210
    %443 = vmatprep.subr.mxu0 0.0
    %444 = vmatpush1.msra.mxu0 %v211
    %445 = vmatprep.subr.mxu0 0.0
    %446 = vmatpush1.msra.mxu0 %v212
    %447 = vmatprep.subr.mxu0 0.0
    %448 = vmatpush1.msra.mxu0 %v213
    %449 = vmatprep.subr.mxu0 0.0
    %450 = vmatpush1.msra.mxu0 %v214
    %451 = vmatprep.subr.mxu0 0.0
    %452 = vmatpush1.msra.mxu0 %v215
    %453 = vmatprep.subr.mxu0 0.0
    %454 = vmatpush1.msra.mxu0 %v216
    %455 = vmatprep.subr.mxu0 0.0
    %456 = vmatpush1.msra.mxu0 %v217
    %457 = vmatprep.subr.mxu0 0.0
    %458 = vmatpush1.msra.mxu0 %v218
    %459 = vmatprep.subr.mxu0 0.0
    %460 = vmatpush1.msra.mxu0 %v219
    %461 = vmatprep.subr.mxu0 0.0
    %462 = vmatpush1.msra.mxu0 %v220
    %463 = vmatprep.subr.mxu0 0.0
    %464 = vmatpush1.msra.mxu0 %v221
    %465 = vmatprep.subr.mxu0 0.0
    %466 = vmatpush1.msra.mxu0 %v222
    %467 = vmatprep.mubr.f32.mxu0 %v256
    %468 = vmatmul.mubr.f32.gmra.mrb[0].mxu0 %v255
    %v469 = vpop.f32.mrb[0].mxu0
    %v470 = vadd.f32 %v400, %v469
    %v471 = vpop.f32.mrb[0].mxu0
    %472 = vdwg.mxu0
    %v473 = vmax.f32 %v470, 0.0
    %vm474 = vcmask 517120
    %475 = vst.msk [vmem:[#allocation11] sm:$0x3] %vm474, %v473
    %v476 = vld [vmem:[%s5] sm:$0xff]
    %v477 = vld [vmem:[%s5 + $0x8] sm:$0xff]
    %v478 = vld [vmem:[%s5 + $0x10] sm:$0xff]
    %v479 = vld [vmem:[%s5 + $0x18] sm:$0xff]
    %v480 = vld [vmem:[%s5 + $0x20] sm:$0xff]
    %v481 = vld [vmem:[%s5 + $0x28] sm:$0xff]
    %v482 = vld [vmem:[%s5 + $0x30] sm:$0xff]
    %v483 = vld [vmem:[%s5 + $0x38] sm:$0xff]
    %v484 = vld [vmem:[%s6] sm:$0x1]
    %v486 = vlaneseq
    %v487 = vshrl.u32 %v486, 7
    %v488 = vsub.s32 0, %v487
    %v489 = vrot.slane %v484, %v488
    %vm491 = vcmask 523264
    %v493 = vsel %vm491, %v473, 0
    %495 = vmatprep.subr.mxu0 0.0
    %496 = vmatpush1.msra.mxu0 %v476
    %497 = vmatprep.subr.mxu0 0.0
    %498 = vmatpush1.msra.mxu0 %v477
    %499 = vmatprep.subr.mxu0 0.0
    %500 = vmatpush1.msra.mxu0 %v478
    %501 = vmatprep.subr.mxu0 0.0
    %502 = vmatpush1.msra.mxu0 %v479
    %503 = vmatprep.subr.mxu0 0.0
    %504 = vmatpush1.msra.mxu0 %v480
    %505 = vmatprep.subr.mxu0 0.0
    %506 = vmatpush1.msra.mxu0 %v481
    %507 = vmatprep.subr.mxu0 0.0
    %508 = vmatpush1.msra.mxu0 %v482
    %509 = vmatprep.subr.mxu0 0.0
    %510 = vmatpush1.msra.mxu0 %v483
    %511 = vmatprep.subr.mxu0 0.0
    %512 = vmatpush1.msra.mxu0 0.0
    %513 = vmatprep.subr.mxu0 0.0
    %514 = vmatpush1.msra.mxu0 0.0
    %515 = vmatprep.subr.mxu0 0.0
    %516 = vmatpush1.msra.mxu0 0.0
    %517 = vmatprep.subr.mxu0 0.0
    %518 = vmatpush1.msra.mxu0 0.0
    %519 = vmatprep.subr.mxu0 0.0
    %520 = vmatpush1.msra.mxu0 0.0
    %521 = vmatprep.subr.mxu0 0.0
    %522 = vmatpush1.msra.mxu0 0.0
    %523 = vmatprep.subr.mxu0 0.0
    %524 = vmatpush1.msra.mxu0 0.0
    %525 = vmatprep.subr.mxu0 0.0
    %526 = vmatpush1.msra.mxu0 0.0
    %527 = vmatprep.subr.mxu0 0.0
    %528 = vmatpush1.msra.mxu0 0.0
    %529 = vmatprep.subr.mxu0 0.0
    %530 = vmatpush1.msra.mxu0 0.0
    %531 = vmatprep.subr.mxu0 0.0
    %532 = vmatpush1.msra.mxu0 0.0
    %533 = vmatprep.subr.mxu0 0.0
    %534 = vmatpush1.msra.mxu0 0.0
    %535 = vmatprep.subr.mxu0 0.0
    %536 = vmatpush1.msra.mxu0 0.0
    %537 = vmatprep.subr.mxu0 0.0
    %538 = vmatpush1.msra.mxu0 0.0
    %539 = vmatprep.subr.mxu0 0.0
    %540 = vmatpush1.msra.mxu0 0.0
    %541 = vmatprep.subr.mxu0 0.0
    %542 = vmatpush1.msra.mxu0 0.0
    %543 = vmatprep.subr.mxu0 0.0
    %544 = vmatpush1.msra.mxu0 0.0
    %545 = vmatprep.subr.mxu0 0.0
    %546 = vmatpush1.msra.mxu0 0.0
    %547 = vmatprep.subr.mxu0 0.0
    %548 = vmatpush1.msra.mxu0 0.0
    %549 = vmatprep.subr.mxu0 0.0
    %550 = vmatpush1.msra.mxu0 0.0
    %551 = vmatprep.subr.mxu0 0.0
    %552 = vmatpush1.msra.mxu0 0.0
    %553 = vmatprep.subr.mxu0 0.0
    %554 = vmatpush1.msra.mxu0 0.0
    %555 = vmatprep.subr.mxu0 0.0
    %556 = vmatpush1.msra.mxu0 0.0
    %557 = vmatprep.subr.mxu0 0.0
    %558 = vmatpush1.msra.mxu0 0.0
    %559 = vmatprep.mubr.f32.mxu0 0.0
    %560 = vmatmul.mubr.f32.gmra.mrb[0].mxu0 %v493
    %v561 = vpop.f32.mrb[0].mxu0
    %v562 = vadd.f32 %v489, %v561
    %v563 = vpop.f32.mrb[0].mxu0
    %564 = vdwg.mxu0
    %v567 = vunpack.c.l.s4 1966171168
    %v568 = vunpack.c.0.s8 %v567
    %v569 = vlaneseq
    %v570 = vshrl.u32 %v569, 7
    %v571 = vsub.s32 %v568, %v570
    %v572 = vrot.slane %v562, %v571
    %v573 = vcombine.high %v572, %v572
    %v575 = vunpack.c.l.s4 1966171168
    %v576 = vunpack.c.0.s8 %v575
    %v577 = vlaneseq
    %v578 = vshrl.u32 %v577, 7
    %v579 = vsub.s32 %v576, %v578
    %v580 = vrot.slane %v572, %v579
    %v582 = vunpack.c.l.s4 1966171168
    %v583 = vunpack.c.0.s8 %v582
    %v584 = vlaneseq
    %v585 = vshrl.u32 %v584, 7
    %v586 = vsub.s32 %v583, %v585
    %v587 = vrot.slane %v573, %v586
    %s588 = sld [smem:[#allocation7]]
    %v589 = vstv %s588
    %v590 = vmul.f32 %v118, %v589
    %v591 = vmul.f32 %v120, %v589
    %v592 = vmul.f32 %v122, %v589
    %v593 = vmul.f32 %v124, %v589
    %v594 = vlaneseq
    %v595 = vshrl.u32 %v594, 7
    %v596 = vsub.s32 0, %v595
    %v597 = vrot.slane %v580, %v596
    %v598 = vlaneseq
    %v599 = vshrl.u32 %v598, 7
    %v600 = vsub.s32 0, %v599
    %v601 = vrot.slane %v587, %v600
    %602 = vset.pattern.permute.xlu0 0
    %603 = vperm.xlu0 %602, %v597
    %v604 = vpop.permute.xlu0 %603
    %606 = vset.pattern.permute.xlu0 0
    %607 = vperm.xlu0 %606, %v601
    %v608 = vpop.permute.xlu0 %607
    %v610 = vadd.f32 %v590, %v604
    %v611 = vadd.f32 %v591, %v604
    %v612 = vadd.f32 %v592, %v608
    %v613 = vadd.f32 %v593, %v608
    %v614 = vmax.f32 %v610, 0.0
    %v615 = vmax.f32 %v611, 0.0
    %v616 = vmax.f32 %v612, 0.0
    %v617 = vmax.f32 %v613, 0.0
    %s618 = sld [smem:[#allocation8]]
    %v619 = vstv %s618
    %v620 = vmul.f32 %v614, %v619
    %v621 = vmul.f32 %v615, %v619
    %v622 = vmul.f32 %v616, %v619
    %v623 = vmul.f32 %v617, %v619
    %v624 = vadd.f32 %v620, 0.0
    %v625 = vadd.f32 %v621, 0.0
    %v626 = vadd.f32 %v622, 0.0
    %v627 = vadd.f32 %v623, 0.0
    %s628 = sld [smem:[#allocation7 + $0x1]]
    %v629 = vstv %s628
    %v630 = vmul.f32 %v118, %v629
    %v631 = vmul.f32 %v120, %v629
    %v632 = vmul.f32 %v122, %v629
    %v633 = vmul.f32 %v124, %v629
    %634 = vset.pattern.permute.xlu0 1
    %635 = vperm.xlu0 %634, %v597
    %v636 = vpop.permute.xlu0 %635
    %638 = vset.pattern.permute.xlu0 1
    %639 = vperm.xlu0 %638, %v601
    %v640 = vpop.permute.xlu0 %639
    %v642 = vadd.f32 %v630, %v636
    %v643 = vadd.f32 %v631, %v636
    %v644 = vadd.f32 %v632, %v640
    %v645 = vadd.f32 %v633, %v640
    %v646 = vmax.f32 %v642, 0.0
    %v647 = vmax.f32 %v643, 0.0
    %v648 = vmax.f32 %v644, 0.0
    %v649 = vmax.f32 %v645, 0.0
    %s650 = sld [smem:[#allocation8 + $0x1]]
    %v651 = vstv %s650
    %v652 = vmul.f32 %v646, %v651
    %v653 = vmul.f32 %v647, %v651
    %v654 = vmul.f32 %v648, %v651
    %v655 = vmul.f32 %v649, %v651
    %v656 = vadd.f32 %v624, %v652
    %v657 = vadd.f32 %v625, %v653
    %v658 = vadd.f32 %v626, %v654
    %v659 = vadd.f32 %v627, %v655
    %s660 = sld [smem:[#allocation7 + $0x2]]
    %v661 = vstv %s660
    %v662 = vmul.f32 %v118, %v661
    %v663 = vmul.f32 %v120, %v661
    %v664 = vmul.f32 %v122, %v661
    %v665 = vmul.f32 %v124, %v661
    %666 = vset.pattern.permute.xlu0 2
    %667 = vperm.xlu0 %666, %v597
    %v668 = vpop.permute.xlu0 %667
    %670 = vset.pattern.permute.xlu0 2
    %671 = vperm.xlu0 %670, %v601
    %v672 = vpop.permute.xlu0 %671
    %v674 = vadd.f32 %v662, %v668
    %v675 = vadd.f32 %v663, %v668
    %v676 = vadd.f32 %v664, %v672
    %v677 = vadd.f32 %v665, %v672
    %v678 = vmax.f32 %v674, 0.0
    %v679 = vmax.f32 %v675, 0.0
    %v680 = vmax.f32 %v676, 0.0
    %v681 = vmax.f32 %v677, 0.0
    %s682 = sld [smem:[#allocation8 + $0x2]]
    %v683 = vstv %s682
    %v684 = vmul.f32 %v678, %v683
    %v685 = vmul.f32 %v679, %v683
    %v686 = vmul.f32 %v680, %v683
    %v687 = vmul.f32 %v681, %v683
    %v688 = vadd.f32 %v656, %v684
    %v689 = vadd.f32 %v657, %v685
    %v690 = vadd.f32 %v658, %v686
    %v691 = vadd.f32 %v659, %v687
    %s692 = sld [smem:[#allocation7 + $0x3]]
    %v693 = vstv %s692
    %v694 = vmul.f32 %v118, %v693
    %v695 = vmul.f32 %v120, %v693
    %v696 = vmul.f32 %v122, %v693
    %v697 = vmul.f32 %v124, %v693
    %698 = vset.pattern.permute.xlu0 3
    %699 = vperm.xlu0 %698, %v597
    %v700 = vpop.permute.xlu0 %699
    %702 = vset.pattern.permute.xlu0 3
    %703 = vperm.xlu0 %702, %v601
    %v704 = vpop.permute.xlu0 %703
    %v706 = vadd.f32 %v694, %v700
    %v707 = vadd.f32 %v695, %v700
    %v708 = vadd.f32 %v696, %v704
    %v709 = vadd.f32 %v697, %v704
    %v710 = vmax.f32 %v706, 0.0
    %v711 = vmax.f32 %v707, 0.0
    %v712 = vmax.f32 %v708, 0.0
    %v713 = vmax.f32 %v709, 0.0
    %s714 = sld [smem:[#allocation8 + $0x3]]
    %v715 = vstv %s714
    %v716 = vmul.f32 %v710, %v715
    %v717 = vmul.f32 %v711, %v715
    %v718 = vmul.f32 %v712, %v715
    %v719 = vmul.f32 %v713, %v715
    %v720 = vadd.f32 %v688, %v716
    %v721 = vadd.f32 %v689, %v717
    %v722 = vadd.f32 %v690, %v718
    %v723 = vadd.f32 %v691, %v719
    %s724 = sld [smem:[#allocation7 + $0x4]]
    %v725 = vstv %s724
    %v726 = vmul.f32 %v118, %v725
    %v727 = vmul.f32 %v120, %v725
    %v728 = vmul.f32 %v122, %v725
    %v729 = vmul.f32 %v124, %v725
    %730 = vset.pattern.permute.xlu0 4
    %731 = vperm.xlu0 %730, %v597
    %v732 = vpop.permute.xlu0 %731
    %734 = vset.pattern.permute.xlu0 4
    %735 = vperm.xlu0 %734, %v601
    %v736 = vpop.permute.xlu0 %735
    %v738 = vadd.f32 %v726, %v732
    %v739 = vadd.f32 %v727, %v732
    %v740 = vadd.f32 %v728, %v736
    %v741 = vadd.f32 %v729, %v736
    %v742 = vmax.f32 %v738, 0.0
    %v743 = vmax.f32 %v739, 0.0
    %v744 = vmax.f32 %v740, 0.0
    %v745 = vmax.f32 %v741, 0.0
    %s746 = sld [smem:[#allocation8 + $0x4]]
    %v747 = vstv %s746
    %v748 = vmul.f32 %v742, %v747
    %v749 = vmul.f32 %v743, %v747
    %v750 = vmul.f32 %v744, %v747
    %v751 = vmul.f32 %v745, %v747
    %v752 = vadd.f32 %v720, %v748
    %v753 = vadd.f32 %v721, %v749
    %v754 = vadd.f32 %v722, %v750
    %v755 = vadd.f32 %v723, %v751
    %s756 = sld [smem:[#allocation7 + $0x5]]
    %v757 = vstv %s756
    %v758 = vmul.f32 %v118, %v757
    %v759 = vmul.f32 %v120, %v757
    %v760 = vmul.f32 %v122, %v757
    %v761 = vmul.f32 %v124, %v757
    %762 = vset.pattern.permute.xlu0 5
    %763 = vperm.xlu0 %762, %v597
    %v764 = vpop.permute.xlu0 %763
    %766 = vset.pattern.permute.xlu0 5
    %767 = vperm.xlu0 %766, %v601
    %v768 = vpop.permute.xlu0 %767
    %v770 = vadd.f32 %v758, %v764
    %v771 = vadd.f32 %v759, %v764
    %v772 = vadd.f32 %v760, %v768
    %v773 = vadd.f32 %v761, %v768
    %v774 = vmax.f32 %v770, 0.0
    %v775 = vmax.f32 %v771, 0.0
    %v776 = vmax.f32 %v772, 0.0
    %v777 = vmax.f32 %v773, 0.0
    %s778 = sld [smem:[#allocation8 + $0x5]]
    %v779 = vstv %s778
    %v780 = vmul.f32 %v774, %v779
    %v781 = vmul.f32 %v775, %v779
    %v782 = vmul.f32 %v776, %v779
    %v783 = vmul.f32 %v777, %v779
    %v784 = vadd.f32 %v752, %v780
    %v785 = vadd.f32 %v753, %v781
    %v786 = vadd.f32 %v754, %v782
    %v787 = vadd.f32 %v755, %v783
    %s788 = sld [smem:[#allocation7 + $0x6]]
    %v789 = vstv %s788
    %v790 = vmul.f32 %v118, %v789
    %v791 = vmul.f32 %v120, %v789
    %v792 = vmul.f32 %v122, %v789
    %v793 = vmul.f32 %v124, %v789
    %794 = vset.pattern.permute.xlu0 6
    %795 = vperm.xlu0 %794, %v597
    %v796 = vpop.permute.xlu0 %795
    %798 = vset.pattern.permute.xlu0 6
    %799 = vperm.xlu0 %798, %v601
    %v800 = vpop.permute.xlu0 %799
    %v802 = vadd.f32 %v790, %v796
    %v803 = vadd.f32 %v791, %v796
    %v804 = vadd.f32 %v792, %v800
    %v805 = vadd.f32 %v793, %v800
    %v806 = vmax.f32 %v802, 0.0
    %v807 = vmax.f32 %v803, 0.0
    %v808 = vmax.f32 %v804, 0.0
    %v809 = vmax.f32 %v805, 0.0
    %s810 = sld [smem:[#allocation8 + $0x6]]
    %v811 = vstv %s810
    %v812 = vmul.f32 %v806, %v811
    %v813 = vmul.f32 %v807, %v811
    %v814 = vmul.f32 %v808, %v811
    %v815 = vmul.f32 %v809, %v811
    %v816 = vadd.f32 %v784, %v812
    %v817 = vadd.f32 %v785, %v813
    %v818 = vadd.f32 %v786, %v814
    %v819 = vadd.f32 %v787, %v815
    %s820 = sld [smem:[#allocation7 + $0x7]]
    %v821 = vstv %s820
    %v822 = vmul.f32 %v118, %v821
    %v823 = vmul.f32 %v120, %v821
    %v824 = vmul.f32 %v122, %v821
    %v825 = vmul.f32 %v124, %v821
    %826 = vset.pattern.permute.xlu0 7
    %827 = vperm.xlu0 %826, %v597
    %v828 = vpop.permute.xlu0 %827
    %830 = vset.pattern.permute.xlu0 7
    %831 = vperm.xlu0 %830, %v601
    %v832 = vpop.permute.xlu0 %831
    %v834 = vadd.f32 %v822, %v828
    %v835 = vadd.f32 %v823, %v828
    %v836 = vadd.f32 %v824, %v832
    %v837 = vadd.f32 %v825, %v832
    %v838 = vmax.f32 %v834, 0.0
    %v839 = vmax.f32 %v835, 0.0
    %v840 = vmax.f32 %v836, 0.0
    %v841 = vmax.f32 %v837, 0.0
    %s842 = sld [smem:[#allocation8 + $0x7]]
    %v843 = vstv %s842
    %v844 = vmul.f32 %v838, %v843
    %v845 = vmul.f32 %v839, %v843
    %v846 = vmul.f32 %v840, %v843
    %v847 = vmul.f32 %v841, %v843
    %v848 = vadd.f32 %v816, %v844
    %v849 = vadd.f32 %v817, %v845
    %v850 = vadd.f32 %v818, %v846
    %v851 = vadd.f32 %v819, %v847
    %s852 = sld [smem:[#allocation7 + $0x8]]
    %v853 = vstv %s852
    %v854 = vmul.f32 %v118, %v853
    %v855 = vmul.f32 %v120, %v853
    %v856 = vmul.f32 %v122, %v853
    %v857 = vmul.f32 %v124, %v853
    %858 = vset.pattern.permute.xlu0 8
    %859 = vperm.xlu0 %858, %v597
    %v860 = vpop.permute.xlu0 %859
    %862 = vset.pattern.permute.xlu0 8
    %863 = vperm.xlu0 %862, %v601
    %v864 = vpop.permute.xlu0 %863
    %v866 = vadd.f32 %v854, %v860
    %v867 = vadd.f32 %v855, %v860
    %v868 = vadd.f32 %v856, %v864
    %v869 = vadd.f32 %v857, %v864
    %v870 = vmax.f32 %v866, 0.0
    %v871 = vmax.f32 %v867, 0.0
    %v872 = vmax.f32 %v868, 0.0
    %v873 = vmax.f32 %v869, 0.0
    %s874 = sld [smem:[#allocation8 + $0x8]]
    %v875 = vstv %s874
    %v876 = vmul.f32 %v870, %v875
    %v877 = vmul.f32 %v871, %v875
    %v878 = vmul.f32 %v872, %v875
    %v879 = vmul.f32 %v873, %v875
    %v880 = vadd.f32 %v848, %v876
    %v881 = vadd.f32 %v849, %v877
    %v882 = vadd.f32 %v850, %v878
    %v883 = vadd.f32 %v851, %v879
    %s884 = sld [smem:[#allocation7 + $0x9]]
    %v885 = vstv %s884
    %v886 = vmul.f32 %v118, %v885
    %v887 = vmul.f32 %v120, %v885
    %v888 = vmul.f32 %v122, %v885
    %v889 = vmul.f32 %v124, %v885
    %890 = vset.pattern.permute.xlu0 9
    %891 = vperm.xlu0 %890, %v597
    %v892 = vpop.permute.xlu0 %891
    %894 = vset.pattern.permute.xlu0 9
    %895 = vperm.xlu0 %894, %v601
    %v896 = vpop.permute.xlu0 %895
    %v898 = vadd.f32 %v886, %v892
    %v899 = vadd.f32 %v887, %v892
    %v900 = vadd.f32 %v888, %v896
    %v901 = vadd.f32 %v889, %v896
    %v902 = vmax.f32 %v898, 0.0
    %v903 = vmax.f32 %v899, 0.0
    %v904 = vmax.f32 %v900, 0.0
    %v905 = vmax.f32 %v901, 0.0
    %s906 = sld [smem:[#allocation8 + $0x9]]
    %v907 = vstv %s906
    %v908 = vmul.f32 %v902, %v907
    %v909 = vmul.f32 %v903, %v907
    %v910 = vmul.f32 %v904, %v907
    %v911 = vmul.f32 %v905, %v907
    %v912 = vadd.f32 %v880, %v908
    %v913 = vadd.f32 %v881, %v909
    %v914 = vadd.f32 %v882, %v910
    %v915 = vadd.f32 %v883, %v911
    %s916 = sld [smem:[#allocation7 + $0xa]]
    %v917 = vstv %s916
    %v918 = vmul.f32 %v118, %v917
    %v919 = vmul.f32 %v120, %v917
    %v920 = vmul.f32 %v122, %v917
    %v921 = vmul.f32 %v124, %v917
    %922 = vset.pattern.permute.xlu0 10
    %923 = vperm.xlu0 %922, %v597
    %v924 = vpop.permute.xlu0 %923
    %926 = vset.pattern.permute.xlu0 10
    %927 = vperm.xlu0 %926, %v601
    %v928 = vpop.permute.xlu0 %927
    %v930 = vadd.f32 %v918, %v924
    %v931 = vadd.f32 %v919, %v924
    %v932 = vadd.f32 %v920, %v928
    %v933 = vadd.f32 %v921, %v928
    %v934 = vmax.f32 %v930, 0.0
    %v935 = vmax.f32 %v931, 0.0
    %v936 = vmax.f32 %v932, 0.0
    %v937 = vmax.f32 %v933, 0.0
    %s938 = sld [smem:[#allocation8 + $0xa]]
    %v939 = vstv %s938
    %v940 = vmul.f32 %v934, %v939
    %v941 = vmul.f32 %v935, %v939
    %v942 = vmul.f32 %v936, %v939
    %v943 = vmul.f32 %v937, %v939
    %v944 = vadd.f32 %v912, %v940
    %v945 = vadd.f32 %v913, %v941
    %v946 = vadd.f32 %v914, %v942
    %v947 = vadd.f32 %v915, %v943
    %s948 = sld [smem:[#allocation7 + $0xb]]
    %v949 = vstv %s948
    %v950 = vmul.f32 %v118, %v949
    %v951 = vmul.f32 %v120, %v949
    %v952 = vmul.f32 %v122, %v949
    %v953 = vmul.f32 %v124, %v949
    %954 = vset.pattern.permute.xlu0 11
    %955 = vperm.xlu0 %954, %v597
    %v956 = vpop.permute.xlu0 %955
    %958 = vset.pattern.permute.xlu0 11
    %959 = vperm.xlu0 %958, %v601
    %v960 = vpop.permute.xlu0 %959
    %v962 = vadd.f32 %v950, %v956
    %v963 = vadd.f32 %v951, %v956
    %v964 = vadd.f32 %v952, %v960
    %v965 = vadd.f32 %v953, %v960
    %v966 = vmax.f32 %v962, 0.0
    %v967 = vmax.f32 %v963, 0.0
    %v968 = vmax.f32 %v964, 0.0
    %v969 = vmax.f32 %v965, 0.0
    %s970 = sld [smem:[#allocation8 + $0xb]]
    %v971 = vstv %s970
    %v972 = vmul.f32 %v966, %v971
    %v973 = vmul.f32 %v967, %v971
    %v974 = vmul.f32 %v968, %v971
    %v975 = vmul.f32 %v969, %v971
    %v976 = vadd.f32 %v944, %v972
    %v977 = vadd.f32 %v945, %v973
    %v978 = vadd.f32 %v946, %v974
    %v979 = vadd.f32 %v947, %v975
    %s980 = sld [smem:[#allocation7 + $0xc]]
    %v981 = vstv %s980
    %v982 = vmul.f32 %v118, %v981
    %v983 = vmul.f32 %v120, %v981
    %v984 = vmul.f32 %v122, %v981
    %v985 = vmul.f32 %v124, %v981
    %986 = vset.pattern.permute.xlu0 12
    %987 = vperm.xlu0 %986, %v597
    %v988 = vpop.permute.xlu0 %987
    %990 = vset.pattern.permute.xlu0 12
    %991 = vperm.xlu0 %990, %v601
    %v992 = vpop.permute.xlu0 %991
    %v994 = vadd.f32 %v982, %v988
    %v995 = vadd.f32 %v983, %v988
    %v996 = vadd.f32 %v984, %v992
    %v997 = vadd.f32 %v985, %v992
    %v998 = vmax.f32 %v994, 0.0
    %v999 = vmax.f32 %v995, 0.0
    %v1000 = vmax.f32 %v996, 0.0
    %v1001 = vmax.f32 %v997, 0.0
    %s1002 = sld [smem:[#allocation8 + $0xc]]
    %v1003 = vstv %s1002
    %v1004 = vmul.f32 %v998, %v1003
    %v1005 = vmul.f32 %v999, %v1003
    %v1006 = vmul.f32 %v1000, %v1003
    %v1007 = vmul.f32 %v1001, %v1003
    %v1008 = vadd.f32 %v976, %v1004
    %v1009 = vadd.f32 %v977, %v1005
    %v1010 = vadd.f32 %v978, %v1006
    %v1011 = vadd.f32 %v979, %v1007
    %s1012 = sld [smem:[#allocation7 + $0xd]]
    %v1013 = vstv %s1012
    %v1014 = vmul.f32 %v118, %v1013
    %v1015 = vmul.f32 %v120, %v1013
    %v1016 = vmul.f32 %v122, %v1013
    %v1017 = vmul.f32 %v124, %v1013
    %1018 = vset.pattern.permute.xlu0 13
    %1019 = vperm.xlu0 %1018, %v597
    %v1020 = vpop.permute.xlu0 %1019
    %1022 = vset.pattern.permute.xlu0 13
    %1023 = vperm.xlu0 %1022, %v601
    %v1024 = vpop.permute.xlu0 %1023
    %v1026 = vadd.f32 %v1014, %v1020
    %v1027 = vadd.f32 %v1015, %v1020
    %v1028 = vadd.f32 %v1016, %v1024
    %v1029 = vadd.f32 %v1017, %v1024
    %v1030 = vmax.f32 %v1026, 0.0
    %v1031 = vmax.f32 %v1027, 0.0
    %v1032 = vmax.f32 %v1028, 0.0
    %v1033 = vmax.f32 %v1029, 0.0
    %s1034 = sld [smem:[#allocation8 + $0xd]]
    %v1035 = vstv %s1034
    %v1036 = vmul.f32 %v1030, %v1035
    %v1037 = vmul.f32 %v1031, %v1035
    %v1038 = vmul.f32 %v1032, %v1035
    %v1039 = vmul.f32 %v1033, %v1035
    %v1040 = vadd.f32 %v1008, %v1036
    %v1041 = vadd.f32 %v1009, %v1037
    %v1042 = vadd.f32 %v1010, %v1038
    %v1043 = vadd.f32 %v1011, %v1039
    %s1044 = sld [smem:[#allocation7 + $0xe]]
    %v1045 = vstv %s1044
    %v1046 = vmul.f32 %v118, %v1045
    %v1047 = vmul.f32 %v120, %v1045
    %v1048 = vmul.f32 %v122, %v1045
    %v1049 = vmul.f32 %v124, %v1045
    %1050 = vset.pattern.permute.xlu0 14
    %1051 = vperm.xlu0 %1050, %v597
    %v1052 = vpop.permute.xlu0 %1051
    %1054 = vset.pattern.permute.xlu0 14
    %1055 = vperm.xlu0 %1054, %v601
    %v1056 = vpop.permute.xlu0 %1055
    %v1058 = vadd.f32 %v1046, %v1052
    %v1059 = vadd.f32 %v1047, %v1052
    %v1060 = vadd.f32 %v1048, %v1056
    %v1061 = vadd.f32 %v1049, %v1056
    %v1062 = vmax.f32 %v1058, 0.0
    %v1063 = vmax.f32 %v1059, 0.0
    %v1064 = vmax.f32 %v1060, 0.0
    %v1065 = vmax.f32 %v1061, 0.0
    %s1066 = sld [smem:[#allocation8 + $0xe]]
    %v1067 = vstv %s1066
    %v1068 = vmul.f32 %v1062, %v1067
    %v1069 = vmul.f32 %v1063, %v1067
    %v1070 = vmul.f32 %v1064, %v1067
    %v1071 = vmul.f32 %v1065, %v1067
    %v1072 = vadd.f32 %v1040, %v1068
    %v1073 = vadd.f32 %v1041, %v1069
    %v1074 = vadd.f32 %v1042, %v1070
    %v1075 = vadd.f32 %v1043, %v1071
    %s1076 = sld [smem:[#allocation7 + $0xf]]
    %v1077 = vstv %s1076
    %v1078 = vmul.f32 %v118, %v1077
    %v1079 = vmul.f32 %v120, %v1077
    %v1080 = vmul.f32 %v122, %v1077
    %v1081 = vmul.f32 %v124, %v1077
    %1082 = vset.pattern.permute.xlu0 15
    %1083 = vperm.xlu0 %1082, %v597
    %v1084 = vpop.permute.xlu0 %1083
    %1086 = vset.pattern.permute.xlu0 15
    %1087 = vperm.xlu0 %1086, %v601
    %v1088 = vpop.permute.xlu0 %1087
    %v1090 = vadd.f32 %v1078, %v1084
    %v1091 = vadd.f32 %v1079, %v1084
    %v1092 = vadd.f32 %v1080, %v1088
    %v1093 = vadd.f32 %v1081, %v1088
    %v1094 = vmax.f32 %v1090, 0.0
    %v1095 = vmax.f32 %v1091, 0.0
    %v1096 = vmax.f32 %v1092, 0.0
    %v1097 = vmax.f32 %v1093, 0.0
    %s1098 = sld [smem:[#allocation8 + $0xf]]
    %v1099 = vstv %s1098
    %v1100 = vmul.f32 %v1094, %v1099
    %v1101 = vmul.f32 %v1095, %v1099
    %v1102 = vmul.f32 %v1096, %v1099
    %v1103 = vmul.f32 %v1097, %v1099
    %v1104 = vadd.f32 %v1072, %v1100
    %v1105 = vadd.f32 %v1073, %v1101
    %v1106 = vadd.f32 %v1074, %v1102
    %v1107 = vadd.f32 %v1075, %v1103
    %s1108 = sld [smem:[#allocation7 + $0x10]]
    %v1109 = vstv %s1108
    %v1110 = vmul.f32 %v118, %v1109
    %v1111 = vmul.f32 %v120, %v1109
    %v1112 = vmul.f32 %v122, %v1109
    %v1113 = vmul.f32 %v124, %v1109
    %1114 = vset.pattern.permute.xlu0 16
    %1115 = vperm.xlu0 %1114, %v597
    %v1116 = vpop.permute.xlu0 %1115
    %1118 = vset.pattern.permute.xlu0 16
    %1119 = vperm.xlu0 %1118, %v601
    %v1120 = vpop.permute.xlu0 %1119
    %v1122 = vadd.f32 %v1110, %v1116
    %v1123 = vadd.f32 %v1111, %v1116
    %v1124 = vadd.f32 %v1112, %v1120
    %v1125 = vadd.f32 %v1113, %v1120
    %v1126 = vmax.f32 %v1122, 0.0
    %v1127 = vmax.f32 %v1123, 0.0
    %v1128 = vmax.f32 %v1124, 0.0
    %v1129 = vmax.f32 %v1125, 0.0
    %s1130 = sld [smem:[#allocation8 + $0x10]]
    %v1131 = vstv %s1130
    %v1132 = vmul.f32 %v1126, %v1131
    %v1133 = vmul.f32 %v1127, %v1131
    %v1134 = vmul.f32 %v1128, %v1131
    %v1135 = vmul.f32 %v1129, %v1131
    %v1136 = vadd.f32 %v1104, %v1132
    %v1137 = vadd.f32 %v1105, %v1133
    %v1138 = vadd.f32 %v1106, %v1134
    %v1139 = vadd.f32 %v1107, %v1135
    %s1140 = sld [smem:[#allocation7 + $0x11]]
    %v1141 = vstv %s1140
    %v1142 = vmul.f32 %v118, %v1141
    %v1143 = vmul.f32 %v120, %v1141
    %v1144 = vmul.f32 %v122, %v1141
    %v1145 = vmul.f32 %v124, %v1141
    %1146 = vset.pattern.permute.xlu0 17
    %1147 = vperm.xlu0 %1146, %v597
    %v1148 = vpop.permute.xlu0 %1147
    %1150 = vset.pattern.permute.xlu0 17
    %1151 = vperm.xlu0 %1150, %v601
    %v1152 = vpop.permute.xlu0 %1151
    %v1154 = vadd.f32 %v1142, %v1148
    %v1155 = vadd.f32 %v1143, %v1148
    %v1156 = vadd.f32 %v1144, %v1152
    %v1157 = vadd.f32 %v1145, %v1152
    %v1158 = vmax.f32 %v1154, 0.0
    %v1159 = vmax.f32 %v1155, 0.0
    %v1160 = vmax.f32 %v1156, 0.0
    %v1161 = vmax.f32 %v1157, 0.0
    %s1162 = sld [smem:[#allocation8 + $0x11]]
    %v1163 = vstv %s1162
    %v1164 = vmul.f32 %v1158, %v1163
    %v1165 = vmul.f32 %v1159, %v1163
    %v1166 = vmul.f32 %v1160, %v1163
    %v1167 = vmul.f32 %v1161, %v1163
    %v1168 = vadd.f32 %v1136, %v1164
    %v1169 = vadd.f32 %v1137, %v1165
    %v1170 = vadd.f32 %v1138, %v1166
    %v1171 = vadd.f32 %v1139, %v1167
    %s1172 = sld [smem:[#allocation7 + $0x12]]
    %v1173 = vstv %s1172
    %v1174 = vmul.f32 %v118, %v1173
    %v1175 = vmul.f32 %v120, %v1173
    %v1176 = vmul.f32 %v122, %v1173
    %v1177 = vmul.f32 %v124, %v1173
    %1178 = vset.pattern.permute.xlu0 18
    %1179 = vperm.xlu0 %1178, %v597
    %v1180 = vpop.permute.xlu0 %1179
    %1182 = vset.pattern.permute.xlu0 18
    %1183 = vperm.xlu0 %1182, %v601
    %v1184 = vpop.permute.xlu0 %1183
    %v1186 = vadd.f32 %v1174, %v1180
    %v1187 = vadd.f32 %v1175, %v1180
    %v1188 = vadd.f32 %v1176, %v1184
    %v1189 = vadd.f32 %v1177, %v1184
    %v1190 = vmax.f32 %v1186, 0.0
    %v1191 = vmax.f32 %v1187, 0.0
    %v1192 = vmax.f32 %v1188, 0.0
    %v1193 = vmax.f32 %v1189, 0.0
    %s1194 = sld [smem:[#allocation8 + $0x12]]
    %v1195 = vstv %s1194
    %v1196 = vmul.f32 %v1190, %v1195
    %v1197 = vmul.f32 %v1191, %v1195
    %v1198 = vmul.f32 %v1192, %v1195
    %v1199 = vmul.f32 %v1193, %v1195
    %v1200 = vadd.f32 %v1168, %v1196
    %v1201 = vadd.f32 %v1169, %v1197
    %v1202 = vadd.f32 %v1170, %v1198
    %v1203 = vadd.f32 %v1171, %v1199
    %s1204 = sld [smem:[#allocation7 + $0x13]]
    %v1205 = vstv %s1204
    %v1206 = vmul.f32 %v118, %v1205
    %v1207 = vmul.f32 %v120, %v1205
    %v1208 = vmul.f32 %v122, %v1205
    %v1209 = vmul.f32 %v124, %v1205
    %1210 = vset.pattern.permute.xlu0 19
    %1211 = vperm.xlu0 %1210, %v597
    %v1212 = vpop.permute.xlu0 %1211
    %1214 = vset.pattern.permute.xlu0 19
    %1215 = vperm.xlu0 %1214, %v601
    %v1216 = vpop.permute.xlu0 %1215
    %v1218 = vadd.f32 %v1206, %v1212
    %v1219 = vadd.f32 %v1207, %v1212
    %v1220 = vadd.f32 %v1208, %v1216
    %v1221 = vadd.f32 %v1209, %v1216
    %v1222 = vmax.f32 %v1218, 0.0
    %v1223 = vmax.f32 %v1219, 0.0
    %v1224 = vmax.f32 %v1220, 0.0
    %v1225 = vmax.f32 %v1221, 0.0
    %s1226 = sld [smem:[#allocation8 + $0x13]]
    %v1227 = vstv %s1226
    %v1228 = vmul.f32 %v1222, %v1227
    %v1229 = vmul.f32 %v1223, %v1227
    %v1230 = vmul.f32 %v1224, %v1227
    %v1231 = vmul.f32 %v1225, %v1227
    %v1232 = vadd.f32 %v1200, %v1228
    %v1233 = vadd.f32 %v1201, %v1229
    %v1234 = vadd.f32 %v1202, %v1230
    %v1235 = vadd.f32 %v1203, %v1231
    %s1236 = sld [smem:[#allocation7 + $0x14]]
    %v1237 = vstv %s1236
    %v1238 = vmul.f32 %v118, %v1237
    %v1239 = vmul.f32 %v120, %v1237
    %v1240 = vmul.f32 %v122, %v1237
    %v1241 = vmul.f32 %v124, %v1237
    %1242 = vset.pattern.permute.xlu0 20
    %1243 = vperm.xlu0 %1242, %v597
    %v1244 = vpop.permute.xlu0 %1243
    %1246 = vset.pattern.permute.xlu0 20
    %1247 = vperm.xlu0 %1246, %v601
    %v1248 = vpop.permute.xlu0 %1247
    %v1250 = vadd.f32 %v1238, %v1244
    %v1251 = vadd.f32 %v1239, %v1244
    %v1252 = vadd.f32 %v1240, %v1248
    %v1253 = vadd.f32 %v1241, %v1248
    %v1254 = vmax.f32 %v1250, 0.0
    %v1255 = vmax.f32 %v1251, 0.0
    %v1256 = vmax.f32 %v1252, 0.0
    %v1257 = vmax.f32 %v1253, 0.0
    %s1258 = sld [smem:[#allocation8 + $0x14]]
    %v1259 = vstv %s1258
    %v1260 = vmul.f32 %v1254, %v1259
    %v1261 = vmul.f32 %v1255, %v1259
    %v1262 = vmul.f32 %v1256, %v1259
    %v1263 = vmul.f32 %v1257, %v1259
    %v1264 = vadd.f32 %v1232, %v1260
    %v1265 = vadd.f32 %v1233, %v1261
    %v1266 = vadd.f32 %v1234, %v1262
    %v1267 = vadd.f32 %v1235, %v1263
    %s1268 = sld [smem:[#allocation7 + $0x15]]
    %v1269 = vstv %s1268
    %v1270 = vmul.f32 %v118, %v1269
    %v1271 = vmul.f32 %v120, %v1269
    %v1272 = vmul.f32 %v122, %v1269
    %v1273 = vmul.f32 %v124, %v1269
    %1274 = vset.pattern.permute.xlu0 21
    %1275 = vperm.xlu0 %1274, %v597
    %v1276 = vpop.permute.xlu0 %1275
    %1278 = vset.pattern.permute.xlu0 21
    %1279 = vperm.xlu0 %1278, %v601
    %v1280 = vpop.permute.xlu0 %1279
    %v1282 = vadd.f32 %v1270, %v1276
    %v1283 = vadd.f32 %v1271, %v1276
    %v1284 = vadd.f32 %v1272, %v1280
    %v1285 = vadd.f32 %v1273, %v1280
    %v1286 = vmax.f32 %v1282, 0.0
    %v1287 = vmax.f32 %v1283, 0.0
    %v1288 = vmax.f32 %v1284, 0.0
    %v1289 = vmax.f32 %v1285, 0.0
    %s1290 = sld [smem:[#allocation8 + $0x15]]
    %v1291 = vstv %s1290
    %v1292 = vmul.f32 %v1286, %v1291
    %v1293 = vmul.f32 %v1287, %v1291
    %v1294 = vmul.f32 %v1288, %v1291
    %v1295 = vmul.f32 %v1289, %v1291
    %v1296 = vadd.f32 %v1264, %v1292
    %v1297 = vadd.f32 %v1265, %v1293
    %v1298 = vadd.f32 %v1266, %v1294
    %v1299 = vadd.f32 %v1267, %v1295
    %s1300 = sld [smem:[#allocation7 + $0x16]]
    %v1301 = vstv %s1300
    %v1302 = vmul.f32 %v118, %v1301
    %v1303 = vmul.f32 %v120, %v1301
    %v1304 = vmul.f32 %v122, %v1301
    %v1305 = vmul.f32 %v124, %v1301
    %1306 = vset.pattern.permute.xlu0 22
    %1307 = vperm.xlu0 %1306, %v597
    %v1308 = vpop.permute.xlu0 %1307
    %1310 = vset.pattern.permute.xlu0 22
    %1311 = vperm.xlu0 %1310, %v601
    %v1312 = vpop.permute.xlu0 %1311
    %v1314 = vadd.f32 %v1302, %v1308
    %v1315 = vadd.f32 %v1303, %v1308
    %v1316 = vadd.f32 %v1304, %v1312
    %v1317 = vadd.f32 %v1305, %v1312
    %v1318 = vmax.f32 %v1314, 0.0
    %v1319 = vmax.f32 %v1315, 0.0
    %v1320 = vmax.f32 %v1316, 0.0
    %v1321 = vmax.f32 %v1317, 0.0
    %s1322 = sld [smem:[#allocation8 + $0x16]]
    %v1323 = vstv %s1322
    %v1324 = vmul.f32 %v1318, %v1323
    %v1325 = vmul.f32 %v1319, %v1323
    %v1326 = vmul.f32 %v1320, %v1323
    %v1327 = vmul.f32 %v1321, %v1323
    %v1328 = vadd.f32 %v1296, %v1324
    %v1329 = vadd.f32 %v1297, %v1325
    %v1330 = vadd.f32 %v1298, %v1326
    %v1331 = vadd.f32 %v1299, %v1327
    %s1332 = sld [smem:[#allocation7 + $0x17]]
    %v1333 = vstv %s1332
    %v1334 = vmul.f32 %v118, %v1333
    %v1335 = vmul.f32 %v120, %v1333
    %v1336 = vmul.f32 %v122, %v1333
    %v1337 = vmul.f32 %v124, %v1333
    %1338 = vset.pattern.permute.xlu0 23
    %1339 = vperm.xlu0 %1338, %v597
    %v1340 = vpop.permute.xlu0 %1339
    %1342 = vset.pattern.permute.xlu0 23
    %1343 = vperm.xlu0 %1342, %v601
    %v1344 = vpop.permute.xlu0 %1343
    %v1346 = vadd.f32 %v1334, %v1340
    %v1347 = vadd.f32 %v1335, %v1340
    %v1348 = vadd.f32 %v1336, %v1344
    %v1349 = vadd.f32 %v1337, %v1344
    %v1350 = vmax.f32 %v1346, 0.0
    %v1351 = vmax.f32 %v1347, 0.0
    %v1352 = vmax.f32 %v1348, 0.0
    %v1353 = vmax.f32 %v1349, 0.0
    %s1354 = sld [smem:[#allocation8 + $0x17]]
    %v1355 = vstv %s1354
    %v1356 = vmul.f32 %v1350, %v1355
    %v1357 = vmul.f32 %v1351, %v1355
    %v1358 = vmul.f32 %v1352, %v1355
    %v1359 = vmul.f32 %v1353, %v1355
    %v1360 = vadd.f32 %v1328, %v1356
    %v1361 = vadd.f32 %v1329, %v1357
    %v1362 = vadd.f32 %v1330, %v1358
    %v1363 = vadd.f32 %v1331, %v1359
    %s1364 = sld [smem:[#allocation7 + $0x18]]
    %v1365 = vstv %s1364
    %v1366 = vmul.f32 %v118, %v1365
    %v1367 = vmul.f32 %v120, %v1365
    %v1368 = vmul.f32 %v122, %v1365
    %v1369 = vmul.f32 %v124, %v1365
    %1370 = vset.pattern.permute.xlu0 24
    %1371 = vperm.xlu0 %1370, %v597
    %v1372 = vpop.permute.xlu0 %1371
    %1374 = vset.pattern.permute.xlu0 24
    %1375 = vperm.xlu0 %1374, %v601
    %v1376 = vpop.permute.xlu0 %1375
    %v1378 = vadd.f32 %v1366, %v1372
    %v1379 = vadd.f32 %v1367, %v1372
    %v1380 = vadd.f32 %v1368, %v1376
    %v1381 = vadd.f32 %v1369, %v1376
    %v1382 = vmax.f32 %v1378, 0.0
    %v1383 = vmax.f32 %v1379, 0.0
    %v1384 = vmax.f32 %v1380, 0.0
    %v1385 = vmax.f32 %v1381, 0.0
    %s1386 = sld [smem:[#allocation8 + $0x18]]
    %v1387 = vstv %s1386
    %v1388 = vmul.f32 %v1382, %v1387
    %v1389 = vmul.f32 %v1383, %v1387
    %v1390 = vmul.f32 %v1384, %v1387
    %v1391 = vmul.f32 %v1385, %v1387
    %v1392 = vadd.f32 %v1360, %v1388
    %v1393 = vadd.f32 %v1361, %v1389
    %v1394 = vadd.f32 %v1362, %v1390
    %v1395 = vadd.f32 %v1363, %v1391
    %s1396 = sld [smem:[#allocation7 + $0x19]]
    %v1397 = vstv %s1396
    %v1398 = vmul.f32 %v118, %v1397
    %v1399 = vmul.f32 %v120, %v1397
    %v1400 = vmul.f32 %v122, %v1397
    %v1401 = vmul.f32 %v124, %v1397
    %1402 = vset.pattern.permute.xlu0 25
    %1403 = vperm.xlu0 %1402, %v597
    %v1404 = vpop.permute.xlu0 %1403
    %1406 = vset.pattern.permute.xlu0 25
    %1407 = vperm.xlu0 %1406, %v601
    %v1408 = vpop.permute.xlu0 %1407
    %v1410 = vadd.f32 %v1398, %v1404
    %v1411 = vadd.f32 %v1399, %v1404
    %v1412 = vadd.f32 %v1400, %v1408
    %v1413 = vadd.f32 %v1401, %v1408
    %v1414 = vmax.f32 %v1410, 0.0
    %v1415 = vmax.f32 %v1411, 0.0
    %v1416 = vmax.f32 %v1412, 0.0
    %v1417 = vmax.f32 %v1413, 0.0
    %s1418 = sld [smem:[#allocation8 + $0x19]]
    %v1419 = vstv %s1418
    %v1420 = vmul.f32 %v1414, %v1419
    %v1421 = vmul.f32 %v1415, %v1419
    %v1422 = vmul.f32 %v1416, %v1419
    %v1423 = vmul.f32 %v1417, %v1419
    %v1424 = vadd.f32 %v1392, %v1420
    %v1425 = vadd.f32 %v1393, %v1421
    %v1426 = vadd.f32 %v1394, %v1422
    %v1427 = vadd.f32 %v1395, %v1423
    %s1428 = sld [smem:[#allocation7 + $0x1a]]
    %v1429 = vstv %s1428
    %v1430 = vmul.f32 %v118, %v1429
    %v1431 = vmul.f32 %v120, %v1429
    %v1432 = vmul.f32 %v122, %v1429
    %v1433 = vmul.f32 %v124, %v1429
    %1434 = vset.pattern.permute.xlu0 26
    %1435 = vperm.xlu0 %1434, %v597
    %v1436 = vpop.permute.xlu0 %1435
    %1438 = vset.pattern.permute.xlu0 26
    %1439 = vperm.xlu0 %1438, %v601
    %v1440 = vpop.permute.xlu0 %1439
    %v1442 = vadd.f32 %v1430, %v1436
    %v1443 = vadd.f32 %v1431, %v1436
    %v1444 = vadd.f32 %v1432, %v1440
    %v1445 = vadd.f32 %v1433, %v1440
    %v1446 = vmax.f32 %v1442, 0.0
    %v1447 = vmax.f32 %v1443, 0.0
    %v1448 = vmax.f32 %v1444, 0.0
    %v1449 = vmax.f32 %v1445, 0.0
    %s1450 = sld [smem:[#allocation8 + $0x1a]]
    %v1451 = vstv %s1450
    %v1452 = vmul.f32 %v1446, %v1451
    %v1453 = vmul.f32 %v1447, %v1451
    %v1454 = vmul.f32 %v1448, %v1451
    %v1455 = vmul.f32 %v1449, %v1451
    %v1456 = vadd.f32 %v1424, %v1452
    %v1457 = vadd.f32 %v1425, %v1453
    %v1458 = vadd.f32 %v1426, %v1454
    %v1459 = vadd.f32 %v1427, %v1455
    %s1460 = sld [smem:[#allocation7 + $0x1b]]
    %v1461 = vstv %s1460
    %v1462 = vmul.f32 %v118, %v1461
    %v1463 = vmul.f32 %v120, %v1461
    %v1464 = vmul.f32 %v122, %v1461
    %v1465 = vmul.f32 %v124, %v1461
    %1466 = vset.pattern.permute.xlu0 27
    %1467 = vperm.xlu0 %1466, %v597
    %v1468 = vpop.permute.xlu0 %1467
    %1470 = vset.pattern.permute.xlu0 27
    %1471 = vperm.xlu0 %1470, %v601
    %v1472 = vpop.permute.xlu0 %1471
    %v1474 = vadd.f32 %v1462, %v1468
    %v1475 = vadd.f32 %v1463, %v1468
    %v1476 = vadd.f32 %v1464, %v1472
    %v1477 = vadd.f32 %v1465, %v1472
    %v1478 = vmax.f32 %v1474, 0.0
    %v1479 = vmax.f32 %v1475, 0.0
    %v1480 = vmax.f32 %v1476, 0.0
    %v1481 = vmax.f32 %v1477, 0.0
    %s1482 = sld [smem:[#allocation8 + $0x1b]]
    %v1483 = vstv %s1482
    %v1484 = vmul.f32 %v1478, %v1483
    %v1485 = vmul.f32 %v1479, %v1483
    %v1486 = vmul.f32 %v1480, %v1483
    %v1487 = vmul.f32 %v1481, %v1483
    %v1488 = vadd.f32 %v1456, %v1484
    %v1489 = vadd.f32 %v1457, %v1485
    %v1490 = vadd.f32 %v1458, %v1486
    %v1491 = vadd.f32 %v1459, %v1487
    %s1492 = sld [smem:[#allocation7 + $0x1c]]
    %v1493 = vstv %s1492
    %v1494 = vmul.f32 %v118, %v1493
    %v1495 = vmul.f32 %v120, %v1493
    %v1496 = vmul.f32 %v122, %v1493
    %v1497 = vmul.f32 %v124, %v1493
    %1498 = vset.pattern.permute.xlu0 28
    %1499 = vperm.xlu0 %1498, %v597
    %v1500 = vpop.permute.xlu0 %1499
    %1502 = vset.pattern.permute.xlu0 28
    %1503 = vperm.xlu0 %1502, %v601
    %v1504 = vpop.permute.xlu0 %1503
    %v1506 = vadd.f32 %v1494, %v1500
    %v1507 = vadd.f32 %v1495, %v1500
    %v1508 = vadd.f32 %v1496, %v1504
    %v1509 = vadd.f32 %v1497, %v1504
    %v1510 = vmax.f32 %v1506, 0.0
    %v1511 = vmax.f32 %v1507, 0.0
    %v1512 = vmax.f32 %v1508, 0.0
    %v1513 = vmax.f32 %v1509, 0.0
    %s1514 = sld [smem:[#allocation8 + $0x1c]]
    %v1515 = vstv %s1514
    %v1516 = vmul.f32 %v1510, %v1515
    %v1517 = vmul.f32 %v1511, %v1515
    %v1518 = vmul.f32 %v1512, %v1515
    %v1519 = vmul.f32 %v1513, %v1515
    %v1520 = vadd.f32 %v1488, %v1516
    %v1521 = vadd.f32 %v1489, %v1517
    %v1522 = vadd.f32 %v1490, %v1518
    %v1523 = vadd.f32 %v1491, %v1519
    %s1524 = sld [smem:[#allocation7 + $0x1d]]
    %v1525 = vstv %s1524
    %v1526 = vmul.f32 %v118, %v1525
    %v1527 = vmul.f32 %v120, %v1525
    %v1528 = vmul.f32 %v122, %v1525
    %v1529 = vmul.f32 %v124, %v1525
    %1530 = vset.pattern.permute.xlu0 29
    %1531 = vperm.xlu0 %1530, %v597
    %v1532 = vpop.permute.xlu0 %1531
    %1534 = vset.pattern.permute.xlu0 29
    %1535 = vperm.xlu0 %1534, %v601
    %v1536 = vpop.permute.xlu0 %1535
    %v1538 = vadd.f32 %v1526, %v1532
    %v1539 = vadd.f32 %v1527, %v1532
    %v1540 = vadd.f32 %v1528, %v1536
    %v1541 = vadd.f32 %v1529, %v1536
    %v1542 = vmax.f32 %v1538, 0.0
    %v1543 = vmax.f32 %v1539, 0.0
    %v1544 = vmax.f32 %v1540, 0.0
    %v1545 = vmax.f32 %v1541, 0.0
    %s1546 = sld [smem:[#allocation8 + $0x1d]]
    %v1547 = vstv %s1546
    %v1548 = vmul.f32 %v1542, %v1547
    %v1549 = vmul.f32 %v1543, %v1547
    %v1550 = vmul.f32 %v1544, %v1547
    %v1551 = vmul.f32 %v1545, %v1547
    %v1552 = vadd.f32 %v1520, %v1548
    %v1553 = vadd.f32 %v1521, %v1549
    %v1554 = vadd.f32 %v1522, %v1550
    %v1555 = vadd.f32 %v1523, %v1551
    %s1556 = sld [smem:[#allocation7 + $0x1e]]
    %v1557 = vstv %s1556
    %v1558 = vmul.f32 %v118, %v1557
    %v1559 = vmul.f32 %v120, %v1557
    %v1560 = vmul.f32 %v122, %v1557
    %v1561 = vmul.f32 %v124, %v1557
    %1562 = vset.pattern.permute.xlu0 30
    %1563 = vperm.xlu0 %1562, %v597
    %v1564 = vpop.permute.xlu0 %1563
    %1566 = vset.pattern.permute.xlu0 30
    %1567 = vperm.xlu0 %1566, %v601
    %v1568 = vpop.permute.xlu0 %1567
    %v1570 = vadd.f32 %v1558, %v1564
    %v1571 = vadd.f32 %v1559, %v1564
    %v1572 = vadd.f32 %v1560, %v1568
    %v1573 = vadd.f32 %v1561, %v1568
    %v1574 = vmax.f32 %v1570, 0.0
    %v1575 = vmax.f32 %v1571, 0.0
    %v1576 = vmax.f32 %v1572, 0.0
    %v1577 = vmax.f32 %v1573, 0.0
    %s1578 = sld [smem:[#allocation8 + $0x1e]]
    %v1579 = vstv %s1578
    %v1580 = vmul.f32 %v1574, %v1579
    %v1581 = vmul.f32 %v1575, %v1579
    %v1582 = vmul.f32 %v1576, %v1579
    %v1583 = vmul.f32 %v1577, %v1579
    %v1584 = vadd.f32 %v1552, %v1580
    %v1585 = vadd.f32 %v1553, %v1581
    %v1586 = vadd.f32 %v1554, %v1582
    %v1587 = vadd.f32 %v1555, %v1583
    %s1588 = sld [smem:[#allocation7 + $0x1f]]
    %v1589 = vstv %s1588
    %v1590 = vmul.f32 %v118, %v1589
    %v1591 = vmul.f32 %v120, %v1589
    %v1592 = vmul.f32 %v122, %v1589
    %v1593 = vmul.f32 %v124, %v1589
    %1594 = vset.pattern.permute.xlu0 31
    %1595 = vperm.xlu0 %1594, %v597
    %v1596 = vpop.permute.xlu0 %1595
    %1598 = vset.pattern.permute.xlu0 31
    %1599 = vperm.xlu0 %1598, %v601
    %v1600 = vpop.permute.xlu0 %1599
    %v1602 = vadd.f32 %v1590, %v1596
    %v1603 = vadd.f32 %v1591, %v1596
    %v1604 = vadd.f32 %v1592, %v1600
    %v1605 = vadd.f32 %v1593, %v1600
    %v1606 = vmax.f32 %v1602, 0.0
    %v1607 = vmax.f32 %v1603, 0.0
    %v1608 = vmax.f32 %v1604, 0.0
    %v1609 = vmax.f32 %v1605, 0.0
    %s1610 = sld [smem:[#allocation8 + $0x1f]]
    %v1611 = vstv %s1610
    %v1612 = vmul.f32 %v1606, %v1611
    %v1613 = vmul.f32 %v1607, %v1611
    %v1614 = vmul.f32 %v1608, %v1611
    %v1615 = vmul.f32 %v1609, %v1611
    %v1616 = vadd.f32 %v1584, %v1612
    %v1617 = vadd.f32 %v1585, %v1613
    %v1618 = vadd.f32 %v1586, %v1614
    %v1619 = vadd.f32 %v1587, %v1615
    %s1620 = sld [smem:[#allocation2]]
    %v1621 = vstv %s1620
    %v1622 = vadd.f32 %v1616, %v1621
    %v1623 = vadd.f32 %v1617, %v1621
    %v1624 = vadd.f32 %v1618, %v1621
    %v1625 = vadd.f32 %v1619, %v1621
    %v1626 = vxor.u32 %v1622, 2147483648
    %v1627 = vxor.u32 %v1623, 2147483648
    %v1628 = vxor.u32 %v1624, 2147483648
    %v1629 = vxor.u32 %v1625, 2147483648
    %v1630 = vmul.f32 %v1626, 1.442695
    %v1631 = vpow.pop %v1630
    %v1632 = vmul.f32 %v1627, 1.442695
    %v1633 = vpow.pop %v1632
    %v1634 = vmul.f32 %v1628, 1.442695
    %v1635 = vpow.pop %v1634
    %v1636 = vmul.f32 %v1629, 1.442695
    %v1637 = vpow.pop %v1636
    %v1638 = vadd.f32 %v1631, 1.0
    %v1639 = vadd.f32 %v1633, 1.0
    %v1640 = vadd.f32 %v1635, 1.0
    %v1641 = vadd.f32 %v1637, 1.0
    %v1642 = vrcp.pop %v1638
    %v1643 = vmul.f32 1.0, %v1642
    %v1644 = vrcp.pop %v1639
    %v1645 = vmul.f32 1.0, %v1644
    %v1646 = vrcp.pop %v1640
    %v1647 = vmul.f32 1.0, %v1646
    %v1648 = vrcp.pop %v1641
    %v1649 = vmul.f32 1.0, %v1648
    %1650 = vst [vmem:[#allocation13] sm:$0xff] %v1643
    %1651 = vst [vmem:[#allocation13 + $0x8] sm:$0xff] %v1645
    %1652 = vst [vmem:[#allocation13 + $0x10] sm:$0xff] %v1647
    %1653 = vst [vmem:[#allocation13 + $0x18] sm:$0xff] %v1649
    %v1654 = vmul.f32 %v89, %v1643
    %v1655 = vmul.f32 %v90, %v1645
    %v1656 = vmul.f32 %v91, %v1647
    %v1657 = vmul.f32 %v92, %v1649
    %1658 = vst [vmem:[#allocation14] sm:$0xff] %v1654
    %1659 = vst [vmem:[#allocation14 + $0x8] sm:$0xff] %v1655
    %1660 = vst [vmem:[#allocation14 + $0x10] sm:$0xff] %v1656
    %1661 = vst [vmem:[#allocation14 + $0x18] sm:$0xff] %v1657
    %v1662 = vadd.f32 %v1654, 1e-10
    %v1663 = vadd.f32 %v1655, 1e-10
    %v1664 = vadd.f32 %v1656, 1e-10
    %v1665 = vadd.f32 %v1657, 1e-10
    %v1666 = vlog2.pop %v1662
    %v1667 = vmul.f32 %v1666, 0.6931472
    %v1668 = vlog2.pop %v1663
    %v1669 = vmul.f32 %v1668, 0.6931472
    %v1670 = vlog2.pop %v1664
    %v1671 = vmul.f32 %v1670, 0.6931472
    %v1672 = vlog2.pop %v1665
    %v1673 = vmul.f32 %v1672, 0.6931472
    %v1674 = vld [vmem:[#allocation3] sm:$0xff]
    %v1675 = vld [vmem:[#allocation3 + $0x8] sm:$0xff]
    %v1676 = vld [vmem:[#allocation3 + $0x10] sm:$0xff]
    %v1677 = vld [vmem:[#allocation3 + $0x18] sm:$0xff]
    %v1678 = vld [vmem:[#allocation3 + $0x20] sm:$0xff]
    %v1679 = vld [vmem:[#allocation3 + $0x28] sm:$0xff]
    %v1680 = vld [vmem:[#allocation3 + $0x30] sm:$0xff]
    %v1681 = vld [vmem:[#allocation3 + $0x38] sm:$0xff]
    %v1682 = vld [vmem:[#allocation3 + $0x40] sm:$0xff]
    %v1683 = vld [vmem:[#allocation3 + $0x48] sm:$0xff]
    %v1684 = vld [vmem:[#allocation3 + $0x50] sm:$0xff]
    %v1685 = vld [vmem:[#allocation3 + $0x58] sm:$0xff]
    %v1686 = vld [vmem:[#allocation3 + $0x60] sm:$0xff]
    %v1687 = vld [vmem:[#allocation3 + $0x68] sm:$0xff]
    %v1688 = vld [vmem:[#allocation3 + $0x70] sm:$0xff]
    %v1689 = vld [vmem:[#allocation3 + $0x78] sm:$0xff]
    %s1690 = scalar_lea.vmem [#allocation3], 128
    %v1691 = vld [vmem:[%s1690] sm:$0xff]
    %v1692 = vld [vmem:[%s1690 + $0x8] sm:$0xff]
    %v1693 = vld [vmem:[%s1690 + $0x10] sm:$0xff]
    %v1694 = vld [vmem:[%s1690 + $0x18] sm:$0xff]
    %v1695 = vld [vmem:[%s1690 + $0x20] sm:$0xff]
    %v1696 = vld [vmem:[%s1690 + $0x28] sm:$0xff]
    %v1697 = vld [vmem:[%s1690 + $0x30] sm:$0xff]
    %v1698 = vld [vmem:[%s1690 + $0x38] sm:$0xff]
    %v1699 = vld [vmem:[%s1690 + $0x40] sm:$0xff]
    %v1700 = vld [vmem:[%s1690 + $0x48] sm:$0xff]
    %v1701 = vld [vmem:[%s1690 + $0x50] sm:$0xff]
    %v1702 = vld [vmem:[%s1690 + $0x58] sm:$0xff]
    %v1703 = vld [vmem:[%s1690 + $0x60] sm:$0xff]
    %v1704 = vld [vmem:[%s1690 + $0x68] sm:$0xff]
    %v1705 = vld [vmem:[%s1690 + $0x70] sm:$0xff]
    %v1706 = vld [vmem:[%s1690 + $0x78] sm:$0xff]
    %v1709 = vrot.slane %v1667, 1
    %vm1710 = vcmask 1041409
    %v1711 = vsel %vm1710, %v1671, %v1709
    %1713 = vmatprep.subr.mxu0 0.0
    %1714 = vmatpush1.msra.mxu0 %v1691
    %1715 = vmatprep.subr.mxu0 0.0
    %1716 = vmatpush1.msra.mxu0 %v1692
    %1717 = vmatprep.subr.mxu0 0.0
    %1718 = vmatpush1.msra.mxu0 %v1693
    %1719 = vmatprep.subr.mxu0 0.0
    %1720 = vmatpush1.msra.mxu0 %v1694
    %1721 = vmatprep.subr.mxu0 0.0
    %1722 = vmatpush1.msra.mxu0 %v1695
    %1723 = vmatprep.subr.mxu0 0.0
    %1724 = vmatpush1.msra.mxu0 %v1696
    %1725 = vmatprep.subr.mxu0 0.0
    %1726 = vmatpush1.msra.mxu0 %v1697
    %1727 = vmatprep.subr.mxu0 0.0
    %1728 = vmatpush1.msra.mxu0 %v1698
    %1729 = vmatprep.subr.mxu0 0.0
    %1730 = vmatpush1.msra.mxu0 %v1699
    %1731 = vmatprep.subr.mxu0 0.0
    %1732 = vmatpush1.msra.mxu0 %v1700
    %1733 = vmatprep.subr.mxu0 0.0
    %1734 = vmatpush1.msra.mxu0 %v1701
    %1735 = vmatprep.subr.mxu0 0.0
    %1736 = vmatpush1.msra.mxu0 %v1702
    %1737 = vmatprep.subr.mxu0 0.0
    %1738 = vmatpush1.msra.mxu0 %v1703
    %1739 = vmatprep.subr.mxu0 0.0
    %1740 = vmatpush1.msra.mxu0 %v1704
    %1741 = vmatprep.subr.mxu0 0.0
    %1742 = vmatpush1.msra.mxu0 %v1705
    %1743 = vmatprep.subr.mxu0 0.0
    %1744 = vmatpush1.msra.mxu0 %v1706
    %1745 = vmatprep.subr.mxu0 0.0
    %1746 = vmatpush1.msra.mxu0 0.0
    %1747 = vmatprep.subr.mxu0 0.0
    %1748 = vmatpush1.msra.mxu0 0.0
    %1749 = vmatprep.subr.mxu0 0.0
    %1750 = vmatpush1.msra.mxu0 0.0
    %1751 = vmatprep.subr.mxu0 0.0
    %1752 = vmatpush1.msra.mxu0 0.0
    %1753 = vmatprep.subr.mxu0 0.0
    %1754 = vmatpush1.msra.mxu0 0.0
    %1755 = vmatprep.subr.mxu0 0.0
    %1756 = vmatpush1.msra.mxu0 0.0
    %1757 = vmatprep.subr.mxu0 0.0
    %1758 = vmatpush1.msra.mxu0 0.0
    %1759 = vmatprep.subr.mxu0 0.0
    %1760 = vmatpush1.msra.mxu0 0.0
    %1761 = vmatprep.subr.mxu0 0.0
    %1762 = vmatpush1.msra.mxu0 0.0
    %1763 = vmatprep.subr.mxu0 0.0
    %1764 = vmatpush1.msra.mxu0 0.0
    %1765 = vmatprep.subr.mxu0 0.0
    %1766 = vmatpush1.msra.mxu0 0.0
    %1767 = vmatprep.subr.mxu0 0.0
    %1768 = vmatpush1.msra.mxu0 0.0
    %1769 = vmatprep.subr.mxu0 0.0
    %1770 = vmatpush1.msra.mxu0 0.0
    %1771 = vmatprep.subr.mxu0 0.0
    %1772 = vmatpush1.msra.mxu0 0.0
    %1773 = vmatprep.subr.mxu0 0.0
    %1774 = vmatpush1.msra.mxu0 0.0
    %1775 = vmatprep.subr.mxu0 0.0
    %1776 = vmatpush1.msra.mxu0 0.0
    %1777 = vmatprep.mubr.f32.mxu0 0.0
    %1778 = vmatmul.mubr.f32.gmra.mrb[0].mxu0 %v1711
    %v1779 = vpop.f32.mrb[0].mxu0
    %v1780 = vadd.f32 0.0, %v1779
    %v1781 = vpop.f32.mrb[0].mxu0
    %1782 = vdwg.mxu0
    %v1783 = vrot.slane %v1671, 7
    %v1784 = vsel %vm1710, %v1783, %v1667
    %1786 = vmatprep.subr.mxu0 0.0
    %1787 = vmatpush1.msra.mxu0 %v1674
    %1788 = vmatprep.subr.mxu0 0.0
    %1789 = vmatpush1.msra.mxu0 %v1675
    %1790 = vmatprep.subr.mxu0 0.0
    %1791 = vmatpush1.msra.mxu0 %v1676
    %1792 = vmatprep.subr.mxu0 0.0
    %1793 = vmatpush1.msra.mxu0 %v1677
    %1794 = vmatprep.subr.mxu0 0.0
    %1795 = vmatpush1.msra.mxu0 %v1678
    %1796 = vmatprep.subr.mxu0 0.0
    %1797 = vmatpush1.msra.mxu0 %v1679
    %1798 = vmatprep.subr.mxu0 0.0
    %1799 = vmatpush1.msra.mxu0 %v1680
    %1800 = vmatprep.subr.mxu0 0.0
    %1801 = vmatpush1.msra.mxu0 %v1681
    %1802 = vmatprep.subr.mxu0 0.0
    %1803 = vmatpush1.msra.mxu0 %v1682
    %1804 = vmatprep.subr.mxu0 0.0
    %1805 = vmatpush1.msra.mxu0 %v1683
    %1806 = vmatprep.subr.mxu0 0.0
    %1807 = vmatpush1.msra.mxu0 %v1684
    %1808 = vmatprep.subr.mxu0 0.0
    %1809 = vmatpush1.msra.mxu0 %v1685
    %1810 = vmatprep.subr.mxu0 0.0
    %1811 = vmatpush1.msra.mxu0 %v1686
    %1812 = vmatprep.subr.mxu0 0.0
    %1813 = vmatpush1.msra.mxu0 %v1687
    %1814 = vmatprep.subr.mxu0 0.0
    %1815 = vmatpush1.msra.mxu0 %v1688
    %1816 = vmatprep.subr.mxu0 0.0
    %1817 = vmatpush1.msra.mxu0 %v1689
    %1818 = vmatprep.subr.mxu0 0.0
    %1819 = vmatpush1.msra.mxu0 0.0
    %1820 = vmatprep.subr.mxu0 0.0
    %1821 = vmatpush1.msra.mxu0 0.0
    %1822 = vmatprep.subr.mxu0 0.0
    %1823 = vmatpush1.msra.mxu0 0.0
    %1824 = vmatprep.subr.mxu0 0.0
    %1825 = vmatpush1.msra.mxu0 0.0
    %1826 = vmatprep.subr.mxu0 0.0
    %1827 = vmatpush1.msra.mxu0 0.0
    %1828 = vmatprep.subr.mxu0 0.0
    %1829 = vmatpush1.msra.mxu0 0.0
    %1830 = vmatprep.subr.mxu0 0.0
    %1831 = vmatpush1.msra.mxu0 0.0
    %1832 = vmatprep.subr.mxu0 0.0
    %1833 = vmatpush1.msra.mxu0 0.0
    %1834 = vmatprep.subr.mxu0 0.0
    %1835 = vmatpush1.msra.mxu0 0.0
    %1836 = vmatprep.subr.mxu0 0.0
    %1837 = vmatpush1.msra.mxu0 0.0
    %1838 = vmatprep.subr.mxu0 0.0
    %1839 = vmatpush1.msra.mxu0 0.0
    %1840 = vmatprep.subr.mxu0 0.0
    %1841 = vmatpush1.msra.mxu0 0.0
    %1842 = vmatprep.subr.mxu0 0.0
    %1843 = vmatpush1.msra.mxu0 0.0
    %1844 = vmatprep.subr.mxu0 0.0
    %1845 = vmatpush1.msra.mxu0 0.0
    %1846 = vmatprep.subr.mxu0 0.0
    %1847 = vmatpush1.msra.mxu0 0.0
    %1848 = vmatprep.subr.mxu0 0.0
    %1849 = vmatpush1.msra.mxu0 0.0
    %1850 = vmatprep.mubr.f32.mxu0 0.0
    %1851 = vmatmul.mubr.f32.gmra.mrb[0].mxu0 %v1784
    %v1852 = vpop.f32.mrb[0].mxu0
    %v1853 = vadd.f32 %v1780, %v1852
    %v1854 = vpop.f32.mrb[0].mxu0
    %1855 = vdwg.mxu0
    %s1856 = scalar_lea.vmem [#allocation3], 256
    %v1857 = vld [vmem:[%s1856] sm:$0xff]
    %v1858 = vld [vmem:[%s1856 + $0x8] sm:$0xff]
    %v1859 = vld [vmem:[%s1856 + $0x10] sm:$0xff]
    %v1860 = vld [vmem:[%s1856 + $0x18] sm:$0xff]
    %v1861 = vld [vmem:[%s1856 + $0x20] sm:$0xff]
    %v1862 = vld [vmem:[%s1856 + $0x28] sm:$0xff]
    %v1863 = vld [vmem:[%s1856 + $0x30] sm:$0xff]
    %v1864 = vld [vmem:[%s1856 + $0x38] sm:$0xff]
    %v1865 = vld [vmem:[%s1856 + $0x40] sm:$0xff]
    %v1866 = vld [vmem:[%s1856 + $0x48] sm:$0xff]
    %v1867 = vld [vmem:[%s1856 + $0x50] sm:$0xff]
    %v1868 = vld [vmem:[%s1856 + $0x58] sm:$0xff]
    %v1869 = vld [vmem:[%s1856 + $0x60] sm:$0xff]
    %v1870 = vld [vmem:[%s1856 + $0x68] sm:$0xff]
    %v1871 = vld [vmem:[%s1856 + $0x70] sm:$0xff]
    %v1872 = vld [vmem:[%s1856 + $0x78] sm:$0xff]
    %v1873 = vrot.slane %v1667, 2
    %v1874 = vrot.slane %v1671, 1
    %v1875 = vsel %vm1710, %v1874, %v1873
    %1877 = vmatprep.subr.mxu0 0.0
    %1878 = vmatpush1.msra.mxu0 %v1857
    %1879 = vmatprep.subr.mxu0 0.0
    %1880 = vmatpush1.msra.mxu0 %v1858
    %1881 = vmatprep.subr.mxu0 0.0
    %1882 = vmatpush1.msra.mxu0 %v1859
    %1883 = vmatprep.subr.mxu0 0.0
    %1884 = vmatpush1.msra.mxu0 %v1860
    %1885 = vmatprep.subr.mxu0 0.0
    %1886 = vmatpush1.msra.mxu0 %v1861
    %1887 = vmatprep.subr.mxu0 0.0
    %1888 = vmatpush1.msra.mxu0 %v1862
    %1889 = vmatprep.subr.mxu0 0.0
    %1890 = vmatpush1.msra.mxu0 %v1863
    %1891 = vmatprep.subr.mxu0 0.0
    %1892 = vmatpush1.msra.mxu0 %v1864
    %1893 = vmatprep.subr.mxu0 0.0
    %1894 = vmatpush1.msra.mxu0 %v1865
    %1895 = vmatprep.subr.mxu0 0.0
    %1896 = vmatpush1.msra.mxu0 %v1866
    %1897 = vmatprep.subr.mxu0 0.0
    %1898 = vmatpush1.msra.mxu0 %v1867
    %1899 = vmatprep.subr.mxu0 0.0
    %1900 = vmatpush1.msra.mxu0 %v1868
    %1901 = vmatprep.subr.mxu0 0.0
    %1902 = vmatpush1.msra.mxu0 %v1869
    %1903 = vmatprep.subr.mxu0 0.0
    %1904 = vmatpush1.msra.mxu0 %v1870
    %1905 = vmatprep.subr.mxu0 0.0
    %1906 = vmatpush1.msra.mxu0 %v1871
    %1907 = vmatprep.subr.mxu0 0.0
    %1908 = vmatpush1.msra.mxu0 %v1872
    %1909 = vmatprep.subr.mxu0 0.0
    %1910 = vmatpush1.msra.mxu0 0.0
    %1911 = vmatprep.subr.mxu0 0.0
    %1912 = vmatpush1.msra.mxu0 0.0
    %1913 = vmatprep.subr.mxu0 0.0
    %1914 = vmatpush1.msra.mxu0 0.0
    %1915 = vmatprep.subr.mxu0 0.0
    %1916 = vmatpush1.msra.mxu0 0.0
    %1917 = vmatprep.subr.mxu0 0.0
    %1918 = vmatpush1.msra.mxu0 0.0
    %1919 = vmatprep.subr.mxu0 0.0
    %1920 = vmatpush1.msra.mxu0 0.0
    %1921 = vmatprep.subr.mxu0 0.0
    %1922 = vmatpush1.msra.mxu0 0.0
    %1923 = vmatprep.subr.mxu0 0.0
    %1924 = vmatpush1.msra.mxu0 0.0
    %1925 = vmatprep.subr.mxu0 0.0
    %1926 = vmatpush1.msra.mxu0 0.0
    %1927 = vmatprep.subr.mxu0 0.0
    %1928 = vmatpush1.msra.mxu0 0.0
    %1929 = vmatprep.subr.mxu0 0.0
    %1930 = vmatpush1.msra.mxu0 0.0
    %1931 = vmatprep.subr.mxu0 0.0
    %1932 = vmatpush1.msra.mxu0 0.0
    %1933 = vmatprep.subr.mxu0 0.0
    %1934 = vmatpush1.msra.mxu0 0.0
    %1935 = vmatprep.subr.mxu0 0.0
    %1936 = vmatpush1.msra.mxu0 0.0
    %1937 = vmatprep.subr.mxu0 0.0
    %1938 = vmatpush1.msra.mxu0 0.0
    %1939 = vmatprep.subr.mxu0 0.0
    %1940 = vmatpush1.msra.mxu0 0.0
    %1941 = vmatprep.mubr.f32.mxu0 0.0
    %1942 = vmatmul.mubr.f32.gmra.mrb[0].mxu0 %v1875
    %v1943 = vpop.f32.mrb[0].mxu0
    %v1944 = vadd.f32 0.0, %v1943
    %v1945 = vpop.f32.mrb[0].mxu0
    %1946 = vdwg.mxu0
    %v1947 = vadd.f32 %v1853, %v1944
    %s1948 = scalar_lea.vmem [#allocation3], 384
    %v1949 = vld [vmem:[%s1948] sm:$0xff]
    %v1950 = vld [vmem:[%s1948 + $0x8] sm:$0xff]
    %v1951 = vld [vmem:[%s1948 + $0x10] sm:$0xff]
    %v1952 = vld [vmem:[%s1948 + $0x18] sm:$0xff]
    %v1953 = vld [vmem:[%s1948 + $0x20] sm:$0xff]
    %v1954 = vld [vmem:[%s1948 + $0x28] sm:$0xff]
    %v1955 = vld [vmem:[%s1948 + $0x30] sm:$0xff]
    %v1956 = vld [vmem:[%s1948 + $0x38] sm:$0xff]
    %v1957 = vld [vmem:[%s1948 + $0x40] sm:$0xff]
    %v1958 = vld [vmem:[%s1948 + $0x48] sm:$0xff]
    %v1959 = vld [vmem:[%s1948 + $0x50] sm:$0xff]
    %v1960 = vld [vmem:[%s1948 + $0x58] sm:$0xff]
    %v1961 = vld [vmem:[%s1948 + $0x60] sm:$0xff]
    %v1962 = vld [vmem:[%s1948 + $0x68] sm:$0xff]
    %v1963 = vld [vmem:[%s1948 + $0x70] sm:$0xff]
    %v1964 = vld [vmem:[%s1948 + $0x78] sm:$0xff]
    %v1965 = vrot.slane %v1667, 3
    %v1966 = vrot.slane %v1671, 2
    %v1967 = vsel %vm1710, %v1966, %v1965
    %1969 = vmatprep.subr.mxu0 0.0
    %1970 = vmatpush1.msra.mxu0 %v1949
    %1971 = vmatprep.subr.mxu0 0.0
    %1972 = vmatpush1.msra.mxu0 %v1950
    %1973 = vmatprep.subr.mxu0 0.0
    %1974 = vmatpush1.msra.mxu0 %v1951
    %1975 = vmatprep.subr.mxu0 0.0
    %1976 = vmatpush1.msra.mxu0 %v1952
    %1977 = vmatprep.subr.mxu0 0.0
    %1978 = vmatpush1.msra.mxu0 %v1953
    %1979 = vmatprep.subr.mxu0 0.0
    %1980 = vmatpush1.msra.mxu0 %v1954
    %1981 = vmatprep.subr.mxu0 0.0
    %1982 = vmatpush1.msra.mxu0 %v1955
    %1983 = vmatprep.subr.mxu0 0.0
    %1984 = vmatpush1.msra.mxu0 %v1956
    %1985 = vmatprep.subr.mxu0 0.0
    %1986 = vmatpush1.msra.mxu0 %v1957
    %1987 = vmatprep.subr.mxu0 0.0
    %1988 = vmatpush1.msra.mxu0 %v1958
    %1989 = vmatprep.subr.mxu0 0.0
    %1990 = vmatpush1.msra.mxu0 %v1959
    %1991 = vmatprep.subr.mxu0 0.0
    %1992 = vmatpush1.msra.mxu0 %v1960
    %1993 = vmatprep.subr.mxu0 0.0
    %1994 = vmatpush1.msra.mxu0 %v1961
    %1995 = vmatprep.subr.mxu0 0.0
    %1996 = vmatpush1.msra.mxu0 %v1962
    %1997 = vmatprep.subr.mxu0 0.0
    %1998 = vmatpush1.msra.mxu0 %v1963
    %1999 = vmatprep.subr.mxu0 0.0
    %2000 = vmatpush1.msra.mxu0 %v1964
    %2001 = vmatprep.subr.mxu0 0.0
    %2002 = vmatpush1.msra.mxu0 0.0
    %2003 = vmatprep.subr.mxu0 0.0
    %2004 = vmatpush1.msra.mxu0 0.0
    %2005 = vmatprep.subr.mxu0 0.0
    %2006 = vmatpush1.msra.mxu0 0.0
    %2007 = vmatprep.subr.mxu0 0.0
    %2008 = vmatpush1.msra.mxu0 0.0
    %2009 = vmatprep.subr.mxu0 0.0
    %2010 = vmatpush1.msra.mxu0 0.0
    %2011 = vmatprep.subr.mxu0 0.0
    %2012 = vmatpush1.msra.mxu0 0.0
    %2013 = vmatprep.subr.mxu0 0.0
    %2014 = vmatpush1.msra.mxu0 0.0
    %2015 = vmatprep.subr.mxu0 0.0
    %2016 = vmatpush1.msra.mxu0 0.0
    %2017 = vmatprep.subr.mxu0 0.0
    %2018 = vmatpush1.msra.mxu0 0.0
    %2019 = vmatprep.subr.mxu0 0.0
    %2020 = vmatpush1.msra.mxu0 0.0
    %2021 = vmatprep.subr.mxu0 0.0
    %2022 = vmatpush1.msra.mxu0 0.0
    %2023 = vmatprep.subr.mxu0 0.0
    %2024 = vmatpush1.msra.mxu0 0.0
    %2025 = vmatprep.subr.mxu0 0.0
    %2026 = vmatpush1.msra.mxu0 0.0
    %2027 = vmatprep.subr.mxu0 0.0
    %2028 = vmatpush1.msra.mxu0 0.0
    %2029 = vmatprep.subr.mxu0 0.0
    %2030 = vmatpush1.msra.mxu0 0.0
    %2031 = vmatprep.subr.mxu0 0.0
    %2032 = vmatpush1.msra.mxu0 0.0
    %2033 = vmatprep.mubr.f32.mxu0 0.0
    %2034 = vmatmul.mubr.f32.gmra.mrb[0].mxu0 %v1967
    %v2035 = vpop.f32.mrb[0].mxu0
    %v2036 = vadd.f32 0.0, %v2035
    %v2037 = vpop.f32.mrb[0].mxu0
    %2038 = vdwg.mxu0
    %v2039 = vadd.f32 %v1947, %v2036
    %s2040 = scalar_lea.vmem [#allocation3], 512
    %v2041 = vld [vmem:[%s2040] sm:$0xff]
    %v2042 = vld [vmem:[%s2040 + $0x8] sm:$0xff]
    %v2043 = vld [vmem:[%s2040 + $0x10] sm:$0xff]
    %v2044 = vld [vmem:[%s2040 + $0x18] sm:$0xff]
    %v2045 = vld [vmem:[%s2040 + $0x20] sm:$0xff]
    %v2046 = vld [vmem:[%s2040 + $0x28] sm:$0xff]
    %v2047 = vld [vmem:[%s2040 + $0x30] sm:$0xff]
    %v2048 = vld [vmem:[%s2040 + $0x38] sm:$0xff]
    %v2049 = vld [vmem:[%s2040 + $0x40] sm:$0xff]
    %v2050 = vld [vmem:[%s2040 + $0x48] sm:$0xff]
    %v2051 = vld [vmem:[%s2040 + $0x50] sm:$0xff]
    %v2052 = vld [vmem:[%s2040 + $0x58] sm:$0xff]
    %v2053 = vld [vmem:[%s2040 + $0x60] sm:$0xff]
    %v2054 = vld [vmem:[%s2040 + $0x68] sm:$0xff]
    %v2055 = vld [vmem:[%s2040 + $0x70] sm:$0xff]
    %v2056 = vld [vmem:[%s2040 + $0x78] sm:$0xff]
    %v2057 = vrot.slane %v1667, 4
    %v2058 = vrot.slane %v1671, 3
    %v2059 = vsel %vm1710, %v2058, %v2057
    %2061 = vmatprep.subr.mxu0 0.0
    %2062 = vmatpush1.msra.mxu0 %v2041
    %2063 = vmatprep.subr.mxu0 0.0
    %2064 = vmatpush1.msra.mxu0 %v2042
    %2065 = vmatprep.subr.mxu0 0.0
    %2066 = vmatpush1.msra.mxu0 %v2043
    %2067 = vmatprep.subr.mxu0 0.0
    %2068 = vmatpush1.msra.mxu0 %v2044
    %2069 = vmatprep.subr.mxu0 0.0
    %2070 = vmatpush1.msra.mxu0 %v2045
    %2071 = vmatprep.subr.mxu0 0.0
    %2072 = vmatpush1.msra.mxu0 %v2046
    %2073 = vmatprep.subr.mxu0 0.0
    %2074 = vmatpush1.msra.mxu0 %v2047
    %2075 = vmatprep.subr.mxu0 0.0
    %2076 = vmatpush1.msra.mxu0 %v2048
    %2077 = vmatprep.subr.mxu0 0.0
    %2078 = vmatpush1.msra.mxu0 %v2049
    %2079 = vmatprep.subr.mxu0 0.0
    %2080 = vmatpush1.msra.mxu0 %v2050
    %2081 = vmatprep.subr.mxu0 0.0
    %2082 = vmatpush1.msra.mxu0 %v2051
    %2083 = vmatprep.subr.mxu0 0.0
    %2084 = vmatpush1.msra.mxu0 %v2052
    %2085 = vmatprep.subr.mxu0 0.0
    %2086 = vmatpush1.msra.mxu0 %v2053
    %2087 = vmatprep.subr.mxu0 0.0
    %2088 = vmatpush1.msra.mxu0 %v2054
    %2089 = vmatprep.subr.mxu0 0.0
    %2090 = vmatpush1.msra.mxu0 %v2055
    %2091 = vmatprep.subr.mxu0 0.0
    %2092 = vmatpush1.msra.mxu0 %v2056
    %2093 = vmatprep.subr.mxu0 0.0
    %2094 = vmatpush1.msra.mxu0 0.0
    %2095 = vmatprep.subr.mxu0 0.0
    %2096 = vmatpush1.msra.mxu0 0.0
    %2097 = vmatprep.subr.mxu0 0.0
    %2098 = vmatpush1.msra.mxu0 0.0
    %2099 = vmatprep.subr.mxu0 0.0
    %2100 = vmatpush1.msra.mxu0 0.0
    %2101 = vmatprep.subr.mxu0 0.0
    %2102 = vmatpush1.msra.mxu0 0.0
    %2103 = vmatprep.subr.mxu0 0.0
    %2104 = vmatpush1.msra.mxu0 0.0
    %2105 = vmatprep.subr.mxu0 0.0
    %2106 = vmatpush1.msra.mxu0 0.0
    %2107 = vmatprep.subr.mxu0 0.0
    %2108 = vmatpush1.msra.mxu0 0.0
    %2109 = vmatprep.subr.mxu0 0.0
    %2110 = vmatpush1.msra.mxu0 0.0
    %2111 = vmatprep.subr.mxu0 0.0
    %2112 = vmatpush1.msra.mxu0 0.0
    %2113 = vmatprep.subr.mxu0 0.0
    %2114 = vmatpush1.msra.mxu0 0.0
    %2115 = vmatprep.subr.mxu0 0.0
    %2116 = vmatpush1.msra.mxu0 0.0
    %2117 = vmatprep.subr.mxu0 0.0
    %2118 = vmatpush1.msra.mxu0 0.0
    %2119 = vmatprep.subr.mxu0 0.0
    %2120 = vmatpush1.msra.mxu0 0.0
    %2121 = vmatprep.subr.mxu0 0.0
    %2122 = vmatpush1.msra.mxu0 0.0
    %2123 = vmatprep.subr.mxu0 0.0
    %2124 = vmatpush1.msra.mxu0 0.0
    %2125 = vmatprep.mubr.f32.mxu0 0.0
    %2126 = vmatmul.mubr.f32.gmra.mrb[0].mxu0 %v2059
    %v2127 = vpop.f32.mrb[0].mxu0
    %v2128 = vadd.f32 0.0, %v2127
    %v2129 = vpop.f32.mrb[0].mxu0
    %2130 = vdwg.mxu0
    %v2131 = vadd.f32 %v2039, %v2128
    %s2132 = scalar_lea.vmem [#allocation3], 640
    %v2133 = vld [vmem:[%s2132] sm:$0xff]
    %v2134 = vld [vmem:[%s2132 + $0x8] sm:$0xff]
    %v2135 = vld [vmem:[%s2132 + $0x10] sm:$0xff]
    %v2136 = vld [vmem:[%s2132 + $0x18] sm:$0xff]
    %v2137 = vld [vmem:[%s2132 + $0x20] sm:$0xff]
    %v2138 = vld [vmem:[%s2132 + $0x28] sm:$0xff]
    %v2139 = vld [vmem:[%s2132 + $0x30] sm:$0xff]
    %v2140 = vld [vmem:[%s2132 + $0x38] sm:$0xff]
    %v2141 = vld [vmem:[%s2132 + $0x40] sm:$0xff]
    %v2142 = vld [vmem:[%s2132 + $0x48] sm:$0xff]
    %v2143 = vld [vmem:[%s2132 + $0x50] sm:$0xff]
    %v2144 = vld [vmem:[%s2132 + $0x58] sm:$0xff]
    %v2145 = vld [vmem:[%s2132 + $0x60] sm:$0xff]
    %v2146 = vld [vmem:[%s2132 + $0x68] sm:$0xff]
    %v2147 = vld [vmem:[%s2132 + $0x70] sm:$0xff]
    %v2148 = vld [vmem:[%s2132 + $0x78] sm:$0xff]
    %v2149 = vrot.slane %v1667, 5
    %v2150 = vrot.slane %v1671, 4
    %v2151 = vsel %vm1710, %v2150, %v2149
    %2153 = vmatprep.subr.mxu0 0.0
    %2154 = vmatpush1.msra.mxu0 %v2133
    %2155 = vmatprep.subr.mxu0 0.0
    %2156 = vmatpush1.msra.mxu0 %v2134
    %2157 = vmatprep.subr.mxu0 0.0
    %2158 = vmatpush1.msra.mxu0 %v2135
    %2159 = vmatprep.subr.mxu0 0.0
    %2160 = vmatpush1.msra.mxu0 %v2136
    %2161 = vmatprep.subr.mxu0 0.0
    %2162 = vmatpush1.msra.mxu0 %v2137
    %2163 = vmatprep.subr.mxu0 0.0
    %2164 = vmatpush1.msra.mxu0 %v2138
    %2165 = vmatprep.subr.mxu0 0.0
    %2166 = vmatpush1.msra.mxu0 %v2139
    %2167 = vmatprep.subr.mxu0 0.0
    %2168 = vmatpush1.msra.mxu0 %v2140
    %2169 = vmatprep.subr.mxu0 0.0
    %2170 = vmatpush1.msra.mxu0 %v2141
    %2171 = vmatprep.subr.mxu0 0.0
    %2172 = vmatpush1.msra.mxu0 %v2142
    %2173 = vmatprep.subr.mxu0 0.0
    %2174 = vmatpush1.msra.mxu0 %v2143
    %2175 = vmatprep.subr.mxu0 0.0
    %2176 = vmatpush1.msra.mxu0 %v2144
    %2177 = vmatprep.subr.mxu0 0.0
    %2178 = vmatpush1.msra.mxu0 %v2145
    %2179 = vmatprep.subr.mxu0 0.0
    %2180 = vmatpush1.msra.mxu0 %v2146
    %2181 = vmatprep.subr.mxu0 0.0
    %2182 = vmatpush1.msra.mxu0 %v2147
    %2183 = vmatprep.subr.mxu0 0.0
    %2184 = vmatpush1.msra.mxu0 %v2148
    %2185 = vmatprep.subr.mxu0 0.0
    %2186 = vmatpush1.msra.mxu0 0.0
    %2187 = vmatprep.subr.mxu0 0.0
    %2188 = vmatpush1.msra.mxu0 0.0
    %2189 = vmatprep.subr.mxu0 0.0
    %2190 = vmatpush1.msra.mxu0 0.0
    %2191 = vmatprep.subr.mxu0 0.0
    %2192 = vmatpush1.msra.mxu0 0.0
    %2193 = vmatprep.subr.mxu0 0.0
    %2194 = vmatpush1.msra.mxu0 0.0
    %2195 = vmatprep.subr.mxu0 0.0
    %2196 = vmatpush1.msra.mxu0 0.0
    %2197 = vmatprep.subr.mxu0 0.0
    %2198 = vmatpush1.msra.mxu0 0.0
    %2199 = vmatprep.subr.mxu0 0.0
    %2200 = vmatpush1.msra.mxu0 0.0
    %2201 = vmatprep.subr.mxu0 0.0
    %2202 = vmatpush1.msra.mxu0 0.0
    %2203 = vmatprep.subr.mxu0 0.0
    %2204 = vmatpush1.msra.mxu0 0.0
    %2205 = vmatprep.subr.mxu0 0.0
    %2206 = vmatpush1.msra.mxu0 0.0
    %2207 = vmatprep.subr.mxu0 0.0
    %2208 = vmatpush1.msra.mxu0 0.0
    %2209 = vmatprep.subr.mxu0 0.0
    %2210 = vmatpush1.msra.mxu0 0.0
    %2211 = vmatprep.subr.mxu0 0.0
    %2212 = vmatpush1.msra.mxu0 0.0
    %2213 = vmatprep.subr.mxu0 0.0
    %2214 = vmatpush1.msra.mxu0 0.0
    %2215 = vmatprep.subr.mxu0 0.0
    %2216 = vmatpush1.msra.mxu0 0.0
    %2217 = vmatprep.mubr.f32.mxu0 0.0
    %2218 = vmatmul.mubr.f32.gmra.mrb[0].mxu0 %v2151
    %v2219 = vpop.f32.mrb[0].mxu0
    %v2220 = vadd.f32 0.0, %v2219
    %v2221 = vpop.f32.mrb[0].mxu0
    %2222 = vdwg.mxu0
    %v2223 = vadd.f32 %v2131, %v2220
    %s2224 = scalar_lea.vmem [#allocation3], 768
    %v2225 = vld [vmem:[%s2224] sm:$0xff]
    %v2226 = vld [vmem:[%s2224 + $0x8] sm:$0xff]
    %v2227 = vld [vmem:[%s2224 + $0x10] sm:$0xff]
    %v2228 = vld [vmem:[%s2224 + $0x18] sm:$0xff]
    %v2229 = vld [vmem:[%s2224 + $0x20] sm:$0xff]
    %v2230 = vld [vmem:[%s2224 + $0x28] sm:$0xff]
    %v2231 = vld [vmem:[%s2224 + $0x30] sm:$0xff]
    %v2232 = vld [vmem:[%s2224 + $0x38] sm:$0xff]
    %v2233 = vld [vmem:[%s2224 + $0x40] sm:$0xff]
    %v2234 = vld [vmem:[%s2224 + $0x48] sm:$0xff]
    %v2235 = vld [vmem:[%s2224 + $0x50] sm:$0xff]
    %v2236 = vld [vmem:[%s2224 + $0x58] sm:$0xff]
    %v2237 = vld [vmem:[%s2224 + $0x60] sm:$0xff]
    %v2238 = vld [vmem:[%s2224 + $0x68] sm:$0xff]
    %v2239 = vld [vmem:[%s2224 + $0x70] sm:$0xff]
    %v2240 = vld [vmem:[%s2224 + $0x78] sm:$0xff]
    %v2241 = vrot.slane %v1667, 6
    %v2242 = vrot.slane %v1671, 5
    %v2243 = vsel %vm1710, %v2242, %v2241
    %2245 = vmatprep.subr.mxu0 0.0
    %2246 = vmatpush1.msra.mxu0 %v2225
    %2247 = vmatprep.subr.mxu0 0.0
    %2248 = vmatpush1.msra.mxu0 %v2226
    %2249 = vmatprep.subr.mxu0 0.0
    %2250 = vmatpush1.msra.mxu0 %v2227
    %2251 = vmatprep.subr.mxu0 0.0
    %2252 = vmatpush1.msra.mxu0 %v2228
    %2253 = vmatprep.subr.mxu0 0.0
    %2254 = vmatpush1.msra.mxu0 %v2229
    %2255 = vmatprep.subr.mxu0 0.0
    %2256 = vmatpush1.msra.mxu0 %v2230
    %2257 = vmatprep.subr.mxu0 0.0
    %2258 = vmatpush1.msra.mxu0 %v2231
    %2259 = vmatprep.subr.mxu0 0.0
    %2260 = vmatpush1.msra.mxu0 %v2232
    %2261 = vmatprep.subr.mxu0 0.0
    %2262 = vmatpush1.msra.mxu0 %v2233
    %2263 = vmatprep.subr.mxu0 0.0
    %2264 = vmatpush1.msra.mxu0 %v2234
    %2265 = vmatprep.subr.mxu0 0.0
    %2266 = vmatpush1.msra.mxu0 %v2235
    %2267 = vmatprep.subr.mxu0 0.0
    %2268 = vmatpush1.msra.mxu0 %v2236
    %2269 = vmatprep.subr.mxu0 0.0
    %2270 = vmatpush1.msra.mxu0 %v2237
    %2271 = vmatprep.subr.mxu0 0.0
    %2272 = vmatpush1.msra.mxu0 %v2238
    %2273 = vmatprep.subr.mxu0 0.0
    %2274 = vmatpush1.msra.mxu0 %v2239
    %2275 = vmatprep.subr.mxu0 0.0
    %2276 = vmatpush1.msra.mxu0 %v2240
    %2277 = vmatprep.subr.mxu0 0.0
    %2278 = vmatpush1.msra.mxu0 0.0
    %2279 = vmatprep.subr.mxu0 0.0
    %2280 = vmatpush1.msra.mxu0 0.0
    %2281 = vmatprep.subr.mxu0 0.0
    %2282 = vmatpush1.msra.mxu0 0.0
    %2283 = vmatprep.subr.mxu0 0.0
    %2284 = vmatpush1.msra.mxu0 0.0
    %2285 = vmatprep.subr.mxu0 0.0
    %2286 = vmatpush1.msra.mxu0 0.0
    %2287 = vmatprep.subr.mxu0 0.0
    %2288 = vmatpush1.msra.mxu0 0.0
    %2289 = vmatprep.subr.mxu0 0.0
    %2290 = vmatpush1.msra.mxu0 0.0
    %2291 = vmatprep.subr.mxu0 0.0
    %2292 = vmatpush1.msra.mxu0 0.0
    %2293 = vmatprep.subr.mxu0 0.0
    %2294 = vmatpush1.msra.mxu0 0.0
    %2295 = vmatprep.subr.mxu0 0.0
    %2296 = vmatpush1.msra.mxu0 0.0
    %2297 = vmatprep.subr.mxu0 0.0
    %2298 = vmatpush1.msra.mxu0 0.0
    %2299 = vmatprep.subr.mxu0 0.0
    %2300 = vmatpush1.msra.mxu0 0.0
    %2301 = vmatprep.subr.mxu0 0.0
    %2302 = vmatpush1.msra.mxu0 0.0
    %2303 = vmatprep.subr.mxu0 0.0
    %2304 = vmatpush1.msra.mxu0 0.0
    %2305 = vmatprep.subr.mxu0 0.0
    %2306 = vmatpush1.msra.mxu0 0.0
    %2307 = vmatprep.subr.mxu0 0.0
    %2308 = vmatpush1.msra.mxu0 0.0
    %2309 = vmatprep.mubr.f32.mxu0 0.0
    %2310 = vmatmul.mubr.f32.gmra.mrb[0].mxu0 %v2243
    %v2311 = vpop.f32.mrb[0].mxu0
    %v2312 = vadd.f32 0.0, %v2311
    %v2313 = vpop.f32.mrb[0].mxu0
    %2314 = vdwg.mxu0
    %v2315 = vadd.f32 %v2223, %v2312
    %s2316 = scalar_lea.vmem [#allocation3], 896
    %v2317 = vld [vmem:[%s2316] sm:$0xff]
    %v2318 = vld [vmem:[%s2316 + $0x8] sm:$0xff]
    %v2319 = vld [vmem:[%s2316 + $0x10] sm:$0xff]
    %v2320 = vld [vmem:[%s2316 + $0x18] sm:$0xff]
    %v2321 = vld [vmem:[%s2316 + $0x20] sm:$0xff]
    %v2322 = vld [vmem:[%s2316 + $0x28] sm:$0xff]
    %v2323 = vld [vmem:[%s2316 + $0x30] sm:$0xff]
    %v2324 = vld [vmem:[%s2316 + $0x38] sm:$0xff]
    %v2325 = vld [vmem:[%s2316 + $0x40] sm:$0xff]
    %v2326 = vld [vmem:[%s2316 + $0x48] sm:$0xff]
    %v2327 = vld [vmem:[%s2316 + $0x50] sm:$0xff]
    %v2328 = vld [vmem:[%s2316 + $0x58] sm:$0xff]
    %v2329 = vld [vmem:[%s2316 + $0x60] sm:$0xff]
    %v2330 = vld [vmem:[%s2316 + $0x68] sm:$0xff]
    %v2331 = vld [vmem:[%s2316 + $0x70] sm:$0xff]
    %v2332 = vld [vmem:[%s2316 + $0x78] sm:$0xff]
    %v2333 = vrot.slane %v1667, 7
    %v2334 = vrot.slane %v1671, 6
    %v2335 = vsel %vm1710, %v2334, %v2333
    %2337 = vmatprep.subr.mxu0 0.0
    %2338 = vmatpush1.msra.mxu0 %v2317
    %2339 = vmatprep.subr.mxu0 0.0
    %2340 = vmatpush1.msra.mxu0 %v2318
    %2341 = vmatprep.subr.mxu0 0.0
    %2342 = vmatpush1.msra.mxu0 %v2319
    %2343 = vmatprep.subr.mxu0 0.0
    %2344 = vmatpush1.msra.mxu0 %v2320
    %2345 = vmatprep.subr.mxu0 0.0
    %2346 = vmatpush1.msra.mxu0 %v2321
    %2347 = vmatprep.subr.mxu0 0.0
    %2348 = vmatpush1.msra.mxu0 %v2322
    %2349 = vmatprep.subr.mxu0 0.0
    %2350 = vmatpush1.msra.mxu0 %v2323
    %2351 = vmatprep.subr.mxu0 0.0
    %2352 = vmatpush1.msra.mxu0 %v2324
    %2353 = vmatprep.subr.mxu0 0.0
    %2354 = vmatpush1.msra.mxu0 %v2325
    %2355 = vmatprep.subr.mxu0 0.0
    %2356 = vmatpush1.msra.mxu0 %v2326
    %2357 = vmatprep.subr.mxu0 0.0
    %2358 = vmatpush1.msra.mxu0 %v2327
    %2359 = vmatprep.subr.mxu0 0.0
    %2360 = vmatpush1.msra.mxu0 %v2328
    %2361 = vmatprep.subr.mxu0 0.0
    %2362 = vmatpush1.msra.mxu0 %v2329
    %2363 = vmatprep.subr.mxu0 0.0
    %2364 = vmatpush1.msra.mxu0 %v2330
    %2365 = vmatprep.subr.mxu0 0.0
    %2366 = vmatpush1.msra.mxu0 %v2331
    %2367 = vmatprep.subr.mxu0 0.0
    %2368 = vmatpush1.msra.mxu0 %v2332
    %2369 = vmatprep.subr.mxu0 0.0
    %2370 = vmatpush1.msra.mxu0 0.0
    %2371 = vmatprep.subr.mxu0 0.0
    %2372 = vmatpush1.msra.mxu0 0.0
    %2373 = vmatprep.subr.mxu0 0.0
    %2374 = vmatpush1.msra.mxu0 0.0
    %2375 = vmatprep.subr.mxu0 0.0
    %2376 = vmatpush1.msra.mxu0 0.0
    %2377 = vmatprep.subr.mxu0 0.0
    %2378 = vmatpush1.msra.mxu0 0.0
    %2379 = vmatprep.subr.mxu0 0.0
    %2380 = vmatpush1.msra.mxu0 0.0
    %2381 = vmatprep.subr.mxu0 0.0
    %2382 = vmatpush1.msra.mxu0 0.0
    %2383 = vmatprep.subr.mxu0 0.0
    %2384 = vmatpush1.msra.mxu0 0.0
    %2385 = vmatprep.subr.mxu0 0.0
    %2386 = vmatpush1.msra.mxu0 0.0
    %2387 = vmatprep.subr.mxu0 0.0
    %2388 = vmatpush1.msra.mxu0 0.0
    %2389 = vmatprep.subr.mxu0 0.0
    %2390 = vmatpush1.msra.mxu0 0.0
    %2391 = vmatprep.subr.mxu0 0.0
    %2392 = vmatpush1.msra.mxu0 0.0
    %2393 = vmatprep.subr.mxu0 0.0
    %2394 = vmatpush1.msra.mxu0 0.0
    %2395 = vmatprep.subr.mxu0 0.0
    %2396 = vmatpush1.msra.mxu0 0.0
    %2397 = vmatprep.subr.mxu0 0.0
    %2398 = vmatpush1.msra.mxu0 0.0
    %2399 = vmatprep.subr.mxu0 0.0
    %2400 = vmatpush1.msra.mxu0 0.0
    %2401 = vmatprep.mubr.f32.mxu0 0.0
    %2402 = vmatmul.mubr.f32.gmra.mrb[0].mxu0 %v2335
    %v2403 = vpop.f32.mrb[0].mxu0
    %v2404 = vadd.f32 0.0, %v2403
    %v2405 = vpop.f32.mrb[0].mxu0
    %2406 = vdwg.mxu0
    %v2407 = vadd.f32 %v2315, %v2404
    %s2408 = scalar_lea.vmem [#allocation3], 1024
    %v2409 = vld [vmem:[%s2408] sm:$0xff]
    %v2410 = vld [vmem:[%s2408 + $0x8] sm:$0xff]
    %v2411 = vld [vmem:[%s2408 + $0x10] sm:$0xff]
    %v2412 = vld [vmem:[%s2408 + $0x18] sm:$0xff]
    %v2413 = vld [vmem:[%s2408 + $0x20] sm:$0xff]
    %v2414 = vld [vmem:[%s2408 + $0x28] sm:$0xff]
    %v2415 = vld [vmem:[%s2408 + $0x30] sm:$0xff]
    %v2416 = vld [vmem:[%s2408 + $0x38] sm:$0xff]
    %v2417 = vld [vmem:[%s2408 + $0x40] sm:$0xff]
    %v2418 = vld [vmem:[%s2408 + $0x48] sm:$0xff]
    %v2419 = vld [vmem:[%s2408 + $0x50] sm:$0xff]
    %v2420 = vld [vmem:[%s2408 + $0x58] sm:$0xff]
    %v2421 = vld [vmem:[%s2408 + $0x60] sm:$0xff]
    %v2422 = vld [vmem:[%s2408 + $0x68] sm:$0xff]
    %v2423 = vld [vmem:[%s2408 + $0x70] sm:$0xff]
    %v2424 = vld [vmem:[%s2408 + $0x78] sm:$0xff]
    %v2427 = vrot.slane %v1673, 7
    %v2428 = vsel %vm1710, %v2427, %v1669
    %2430 = vmatprep.subr.mxu0 0.0
    %2431 = vmatpush1.msra.mxu0 %v2409
    %2432 = vmatprep.subr.mxu0 0.0
    %2433 = vmatpush1.msra.mxu0 %v2410
    %2434 = vmatprep.subr.mxu0 0.0
    %2435 = vmatpush1.msra.mxu0 %v2411
    %2436 = vmatprep.subr.mxu0 0.0
    %2437 = vmatpush1.msra.mxu0 %v2412
    %2438 = vmatprep.subr.mxu0 0.0
    %2439 = vmatpush1.msra.mxu0 %v2413
    %2440 = vmatprep.subr.mxu0 0.0
    %2441 = vmatpush1.msra.mxu0 %v2414
    %2442 = vmatprep.subr.mxu0 0.0
    %2443 = vmatpush1.msra.mxu0 %v2415
    %2444 = vmatprep.subr.mxu0 0.0
    %2445 = vmatpush1.msra.mxu0 %v2416
    %2446 = vmatprep.subr.mxu0 0.0
    %2447 = vmatpush1.msra.mxu0 %v2417
    %2448 = vmatprep.subr.mxu0 0.0
    %2449 = vmatpush1.msra.mxu0 %v2418
    %2450 = vmatprep.subr.mxu0 0.0
    %2451 = vmatpush1.msra.mxu0 %v2419
    %2452 = vmatprep.subr.mxu0 0.0
    %2453 = vmatpush1.msra.mxu0 %v2420
    %2454 = vmatprep.subr.mxu0 0.0
    %2455 = vmatpush1.msra.mxu0 %v2421
    %2456 = vmatprep.subr.mxu0 0.0
    %2457 = vmatpush1.msra.mxu0 %v2422
    %2458 = vmatprep.subr.mxu0 0.0
    %2459 = vmatpush1.msra.mxu0 %v2423
    %2460 = vmatprep.subr.mxu0 0.0
    %2461 = vmatpush1.msra.mxu0 %v2424
    %2462 = vmatprep.subr.mxu0 0.0
    %2463 = vmatpush1.msra.mxu0 0.0
    %2464 = vmatprep.subr.mxu0 0.0
    %2465 = vmatpush1.msra.mxu0 0.0
    %2466 = vmatprep.subr.mxu0 0.0
    %2467 = vmatpush1.msra.mxu0 0.0
    %2468 = vmatprep.subr.mxu0 0.0
    %2469 = vmatpush1.msra.mxu0 0.0
    %2470 = vmatprep.subr.mxu0 0.0
    %2471 = vmatpush1.msra.mxu0 0.0
    %2472 = vmatprep.subr.mxu0 0.0
    %2473 = vmatpush1.msra.mxu0 0.0
    %2474 = vmatprep.subr.mxu0 0.0
    %2475 = vmatpush1.msra.mxu0 0.0
    %2476 = vmatprep.subr.mxu0 0.0
    %2477 = vmatpush1.msra.mxu0 0.0
    %2478 = vmatprep.subr.mxu0 0.0
    %2479 = vmatpush1.msra.mxu0 0.0
    %2480 = vmatprep.subr.mxu0 0.0
    %2481 = vmatpush1.msra.mxu0 0.0
    %2482 = vmatprep.subr.mxu0 0.0
    %2483 = vmatpush1.msra.mxu0 0.0
    %2484 = vmatprep.subr.mxu0 0.0
    %2485 = vmatpush1.msra.mxu0 0.0
    %2486 = vmatprep.subr.mxu0 0.0
    %2487 = vmatpush1.msra.mxu0 0.0
    %2488 = vmatprep.subr.mxu0 0.0
    %2489 = vmatpush1.msra.mxu0 0.0
    %2490 = vmatprep.subr.mxu0 0.0
    %2491 = vmatpush1.msra.mxu0 0.0
    %2492 = vmatprep.subr.mxu0 0.0
    %2493 = vmatpush1.msra.mxu0 0.0
    %2494 = vmatprep.mubr.f32.mxu0 0.0
    %2495 = vmatmul.mubr.f32.gmra.mrb[0].mxu0 %v2428
    %v2496 = vpop.f32.mrb[0].mxu0
    %v2497 = vadd.f32 0.0, %v2496
    %v2498 = vpop.f32.mrb[0].mxu0
    %2499 = vdwg.mxu0
    %v2500 = vadd.f32 %v2407, %v2497
    %s2501 = scalar_lea.vmem [#allocation3], 1152
    %v2502 = vld [vmem:[%s2501] sm:$0xff]
    %v2503 = vld [vmem:[%s2501 + $0x8] sm:$0xff]
    %v2504 = vld [vmem:[%s2501 + $0x10] sm:$0xff]
    %v2505 = vld [vmem:[%s2501 + $0x18] sm:$0xff]
    %v2506 = vld [vmem:[%s2501 + $0x20] sm:$0xff]
    %v2507 = vld [vmem:[%s2501 + $0x28] sm:$0xff]
    %v2508 = vld [vmem:[%s2501 + $0x30] sm:$0xff]
    %v2509 = vld [vmem:[%s2501 + $0x38] sm:$0xff]
    %v2510 = vld [vmem:[%s2501 + $0x40] sm:$0xff]
    %v2511 = vld [vmem:[%s2501 + $0x48] sm:$0xff]
    %v2512 = vld [vmem:[%s2501 + $0x50] sm:$0xff]
    %v2513 = vld [vmem:[%s2501 + $0x58] sm:$0xff]
    %v2514 = vld [vmem:[%s2501 + $0x60] sm:$0xff]
    %v2515 = vld [vmem:[%s2501 + $0x68] sm:$0xff]
    %v2516 = vld [vmem:[%s2501 + $0x70] sm:$0xff]
    %v2517 = vld [vmem:[%s2501 + $0x78] sm:$0xff]
    %v2518 = vrot.slane %v1669, 1
    %v2519 = vsel %vm1710, %v1673, %v2518
    %2521 = vmatprep.subr.mxu0 0.0
    %2522 = vmatpush1.msra.mxu0 %v2502
    %2523 = vmatprep.subr.mxu0 0.0
    %2524 = vmatpush1.msra.mxu0 %v2503
    %2525 = vmatprep.subr.mxu0 0.0
    %2526 = vmatpush1.msra.mxu0 %v2504
    %2527 = vmatprep.subr.mxu0 0.0
    %2528 = vmatpush1.msra.mxu0 %v2505
    %2529 = vmatprep.subr.mxu0 0.0
    %2530 = vmatpush1.msra.mxu0 %v2506
    %2531 = vmatprep.subr.mxu0 0.0
    %2532 = vmatpush1.msra.mxu0 %v2507
    %2533 = vmatprep.subr.mxu0 0.0
    %2534 = vmatpush1.msra.mxu0 %v2508
    %2535 = vmatprep.subr.mxu0 0.0
    %2536 = vmatpush1.msra.mxu0 %v2509
    %2537 = vmatprep.subr.mxu0 0.0
    %2538 = vmatpush1.msra.mxu0 %v2510
    %2539 = vmatprep.subr.mxu0 0.0
    %2540 = vmatpush1.msra.mxu0 %v2511
    %2541 = vmatprep.subr.mxu0 0.0
    %2542 = vmatpush1.msra.mxu0 %v2512
    %2543 = vmatprep.subr.mxu0 0.0
    %2544 = vmatpush1.msra.mxu0 %v2513
    %2545 = vmatprep.subr.mxu0 0.0
    %2546 = vmatpush1.msra.mxu0 %v2514
    %2547 = vmatprep.subr.mxu0 0.0
    %2548 = vmatpush1.msra.mxu0 %v2515
    %2549 = vmatprep.subr.mxu0 0.0
    %2550 = vmatpush1.msra.mxu0 %v2516
    %2551 = vmatprep.subr.mxu0 0.0
    %2552 = vmatpush1.msra.mxu0 %v2517
    %2553 = vmatprep.subr.mxu0 0.0
    %2554 = vmatpush1.msra.mxu0 0.0
    %2555 = vmatprep.subr.mxu0 0.0
    %2556 = vmatpush1.msra.mxu0 0.0
    %2557 = vmatprep.subr.mxu0 0.0
    %2558 = vmatpush1.msra.mxu0 0.0
    %2559 = vmatprep.subr.mxu0 0.0
    %2560 = vmatpush1.msra.mxu0 0.0
    %2561 = vmatprep.subr.mxu0 0.0
    %2562 = vmatpush1.msra.mxu0 0.0
    %2563 = vmatprep.subr.mxu0 0.0
    %2564 = vmatpush1.msra.mxu0 0.0
    %2565 = vmatprep.subr.mxu0 0.0
    %2566 = vmatpush1.msra.mxu0 0.0
    %2567 = vmatprep.subr.mxu0 0.0
    %2568 = vmatpush1.msra.mxu0 0.0
    %2569 = vmatprep.subr.mxu0 0.0
    %2570 = vmatpush1.msra.mxu0 0.0
    %2571 = vmatprep.subr.mxu0 0.0
    %2572 = vmatpush1.msra.mxu0 0.0
    %2573 = vmatprep.subr.mxu0 0.0
    %2574 = vmatpush1.msra.mxu0 0.0
    %2575 = vmatprep.subr.mxu0 0.0
    %2576 = vmatpush1.msra.mxu0 0.0
    %2577 = vmatprep.subr.mxu0 0.0
    %2578 = vmatpush1.msra.mxu0 0.0
    %2579 = vmatprep.subr.mxu0 0.0
    %2580 = vmatpush1.msra.mxu0 0.0
    %2581 = vmatprep.subr.mxu0 0.0
    %2582 = vmatpush1.msra.mxu0 0.0
    %2583 = vmatprep.subr.mxu0 0.0
    %2584 = vmatpush1.msra.mxu0 0.0
    %2585 = vmatprep.mubr.f32.mxu0 0.0
    %2586 = vmatmul.mubr.f32.gmra.mrb[0].mxu0 %v2519
    %v2587 = vpop.f32.mrb[0].mxu0
    %v2588 = vadd.f32 0.0, %v2587
    %v2589 = vpop.f32.mrb[0].mxu0
    %2590 = vdwg.mxu0
    %v2591 = vadd.f32 %v2500, %v2588
    %s2592 = scalar_lea.vmem [#allocation3], 1280
    %v2593 = vld [vmem:[%s2592] sm:$0xff]
    %v2594 = vld [vmem:[%s2592 + $0x8] sm:$0xff]
    %v2595 = vld [vmem:[%s2592 + $0x10] sm:$0xff]
    %v2596 = vld [vmem:[%s2592 + $0x18] sm:$0xff]
    %v2597 = vld [vmem:[%s2592 + $0x20] sm:$0xff]
    %v2598 = vld [vmem:[%s2592 + $0x28] sm:$0xff]
    %v2599 = vld [vmem:[%s2592 + $0x30] sm:$0xff]
    %v2600 = vld [vmem:[%s2592 + $0x38] sm:$0xff]
    %v2601 = vld [vmem:[%s2592 + $0x40] sm:$0xff]
    %v2602 = vld [vmem:[%s2592 + $0x48] sm:$0xff]
    %v2603 = vld [vmem:[%s2592 + $0x50] sm:$0xff]
    %v2604 = vld [vmem:[%s2592 + $0x58] sm:$0xff]
    %v2605 = vld [vmem:[%s2592 + $0x60] sm:$0xff]
    %v2606 = vld [vmem:[%s2592 + $0x68] sm:$0xff]
    %v2607 = vld [vmem:[%s2592 + $0x70] sm:$0xff]
    %v2608 = vld [vmem:[%s2592 + $0x78] sm:$0xff]
    %v2609 = vrot.slane %v1669, 2
    %v2610 = vrot.slane %v1673, 1
    %v2611 = vsel %vm1710, %v2610, %v2609
    %2613 = vmatprep.subr.mxu0 0.0
    %2614 = vmatpush1.msra.mxu0 %v2593
    %2615 = vmatprep.subr.mxu0 0.0
    %2616 = vmatpush1.msra.mxu0 %v2594
    %2617 = vmatprep.subr.mxu0 0.0
    %2618 = vmatpush1.msra.mxu0 %v2595
    %2619 = vmatprep.subr.mxu0 0.0
    %2620 = vmatpush1.msra.mxu0 %v2596
    %2621 = vmatprep.subr.mxu0 0.0
    %2622 = vmatpush1.msra.mxu0 %v2597
    %2623 = vmatprep.subr.mxu0 0.0
    %2624 = vmatpush1.msra.mxu0 %v2598
    %2625 = vmatprep.subr.mxu0 0.0
    %2626 = vmatpush1.msra.mxu0 %v2599
    %2627 = vmatprep.subr.mxu0 0.0
    %2628 = vmatpush1.msra.mxu0 %v2600
    %2629 = vmatprep.subr.mxu0 0.0
    %2630 = vmatpush1.msra.mxu0 %v2601
    %2631 = vmatprep.subr.mxu0 0.0
    %2632 = vmatpush1.msra.mxu0 %v2602
    %2633 = vmatprep.subr.mxu0 0.0
    %2634 = vmatpush1.msra.mxu0 %v2603
    %2635 = vmatprep.subr.mxu0 0.0
    %2636 = vmatpush1.msra.mxu0 %v2604
    %2637 = vmatprep.subr.mxu0 0.0
    %2638 = vmatpush1.msra.mxu0 %v2605
    %2639 = vmatprep.subr.mxu0 0.0
    %2640 = vmatpush1.msra.mxu0 %v2606
    %2641 = vmatprep.subr.mxu0 0.0
    %2642 = vmatpush1.msra.mxu0 %v2607
    %2643 = vmatprep.subr.mxu0 0.0
    %2644 = vmatpush1.msra.mxu0 %v2608
    %2645 = vmatprep.subr.mxu0 0.0
    %2646 = vmatpush1.msra.mxu0 0.0
    %2647 = vmatprep.subr.mxu0 0.0
    %2648 = vmatpush1.msra.mxu0 0.0
    %2649 = vmatprep.subr.mxu0 0.0
    %2650 = vmatpush1.msra.mxu0 0.0
    %2651 = vmatprep.subr.mxu0 0.0
    %2652 = vmatpush1.msra.mxu0 0.0
    %2653 = vmatprep.subr.mxu0 0.0
    %2654 = vmatpush1.msra.mxu0 0.0
    %2655 = vmatprep.subr.mxu0 0.0
    %2656 = vmatpush1.msra.mxu0 0.0
    %2657 = vmatprep.subr.mxu0 0.0
    %2658 = vmatpush1.msra.mxu0 0.0
    %2659 = vmatprep.subr.mxu0 0.0
    %2660 = vmatpush1.msra.mxu0 0.0
    %2661 = vmatprep.subr.mxu0 0.0
    %2662 = vmatpush1.msra.mxu0 0.0
    %2663 = vmatprep.subr.mxu0 0.0
    %2664 = vmatpush1.msra.mxu0 0.0
    %2665 = vmatprep.subr.mxu0 0.0
    %2666 = vmatpush1.msra.mxu0 0.0
    %2667 = vmatprep.subr.mxu0 0.0
    %2668 = vmatpush1.msra.mxu0 0.0
    %2669 = vmatprep.subr.mxu0 0.0
    %2670 = vmatpush1.msra.mxu0 0.0
    %2671 = vmatprep.subr.mxu0 0.0
    %2672 = vmatpush1.msra.mxu0 0.0
    %2673 = vmatprep.subr.mxu0 0.0
    %2674 = vmatpush1.msra.mxu0 0.0
    %2675 = vmatprep.subr.mxu0 0.0
    %2676 = vmatpush1.msra.mxu0 0.0
    %2677 = vmatprep.mubr.f32.mxu0 0.0
    %2678 = vmatmul.mubr.f32.gmra.mrb[0].mxu0 %v2611
    %v2679 = vpop.f32.mrb[0].mxu0
    %v2680 = vadd.f32 0.0, %v2679
    %v2681 = vpop.f32.mrb[0].mxu0
    %2682 = vdwg.mxu0
    %v2683 = vadd.f32 %v2591, %v2680
    %s2684 = scalar_lea.vmem [#allocation3], 1408
    %v2685 = vld [vmem:[%s2684] sm:$0xff]
    %v2686 = vld [vmem:[%s2684 + $0x8] sm:$0xff]
    %v2687 = vld [vmem:[%s2684 + $0x10] sm:$0xff]
    %v2688 = vld [vmem:[%s2684 + $0x18] sm:$0xff]
    %v2689 = vld [vmem:[%s2684 + $0x20] sm:$0xff]
    %v2690 = vld [vmem:[%s2684 + $0x28] sm:$0xff]
    %v2691 = vld [vmem:[%s2684 + $0x30] sm:$0xff]
    %v2692 = vld [vmem:[%s2684 + $0x38] sm:$0xff]
    %v2693 = vld [vmem:[%s2684 + $0x40] sm:$0xff]
    %v2694 = vld [vmem:[%s2684 + $0x48] sm:$0xff]
    %v2695 = vld [vmem:[%s2684 + $0x50] sm:$0xff]
    %v2696 = vld [vmem:[%s2684 + $0x58] sm:$0xff]
    %v2697 = vld [vmem:[%s2684 + $0x60] sm:$0xff]
    %v2698 = vld [vmem:[%s2684 + $0x68] sm:$0xff]
    %v2699 = vld [vmem:[%s2684 + $0x70] sm:$0xff]
    %v2700 = vld [vmem:[%s2684 + $0x78] sm:$0xff]
    %v2701 = vrot.slane %v1669, 3
    %v2702 = vrot.slane %v1673, 2
    %v2703 = vsel %vm1710, %v2702, %v2701
    %2705 = vmatprep.subr.mxu0 0.0
    %2706 = vmatpush1.msra.mxu0 %v2685
    %2707 = vmatprep.subr.mxu0 0.0
    %2708 = vmatpush1.msra.mxu0 %v2686
    %2709 = vmatprep.subr.mxu0 0.0
    %2710 = vmatpush1.msra.mxu0 %v2687
    %2711 = vmatprep.subr.mxu0 0.0
    %2712 = vmatpush1.msra.mxu0 %v2688
    %2713 = vmatprep.subr.mxu0 0.0
    %2714 = vmatpush1.msra.mxu0 %v2689
    %2715 = vmatprep.subr.mxu0 0.0
    %2716 = vmatpush1.msra.mxu0 %v2690
    %2717 = vmatprep.subr.mxu0 0.0
    %2718 = vmatpush1.msra.mxu0 %v2691
    %2719 = vmatprep.subr.mxu0 0.0
    %2720 = vmatpush1.msra.mxu0 %v2692
    %2721 = vmatprep.subr.mxu0 0.0
    %2722 = vmatpush1.msra.mxu0 %v2693
    %2723 = vmatprep.subr.mxu0 0.0
    %2724 = vmatpush1.msra.mxu0 %v2694
    %2725 = vmatprep.subr.mxu0 0.0
    %2726 = vmatpush1.msra.mxu0 %v2695
    %2727 = vmatprep.subr.mxu0 0.0
    %2728 = vmatpush1.msra.mxu0 %v2696
    %2729 = vmatprep.subr.mxu0 0.0
    %2730 = vmatpush1.msra.mxu0 %v2697
    %2731 = vmatprep.subr.mxu0 0.0
    %2732 = vmatpush1.msra.mxu0 %v2698
    %2733 = vmatprep.subr.mxu0 0.0
    %2734 = vmatpush1.msra.mxu0 %v2699
    %2735 = vmatprep.subr.mxu0 0.0
    %2736 = vmatpush1.msra.mxu0 %v2700
    %2737 = vmatprep.subr.mxu0 0.0
    %2738 = vmatpush1.msra.mxu0 0.0
    %2739 = vmatprep.subr.mxu0 0.0
    %2740 = vmatpush1.msra.mxu0 0.0
    %2741 = vmatprep.subr.mxu0 0.0
    %2742 = vmatpush1.msra.mxu0 0.0
    %2743 = vmatprep.subr.mxu0 0.0
    %2744 = vmatpush1.msra.mxu0 0.0
    %2745 = vmatprep.subr.mxu0 0.0
    %2746 = vmatpush1.msra.mxu0 0.0
    %2747 = vmatprep.subr.mxu0 0.0
    %2748 = vmatpush1.msra.mxu0 0.0
    %2749 = vmatprep.subr.mxu0 0.0
    %2750 = vmatpush1.msra.mxu0 0.0
    %2751 = vmatprep.subr.mxu0 0.0
    %2752 = vmatpush1.msra.mxu0 0.0
    %2753 = vmatprep.subr.mxu0 0.0
    %2754 = vmatpush1.msra.mxu0 0.0
    %2755 = vmatprep.subr.mxu0 0.0
    %2756 = vmatpush1.msra.mxu0 0.0
    %2757 = vmatprep.subr.mxu0 0.0
    %2758 = vmatpush1.msra.mxu0 0.0
    %2759 = vmatprep.subr.mxu0 0.0
    %2760 = vmatpush1.msra.mxu0 0.0
    %2761 = vmatprep.subr.mxu0 0.0
    %2762 = vmatpush1.msra.mxu0 0.0
    %2763 = vmatprep.subr.mxu0 0.0
    %2764 = vmatpush1.msra.mxu0 0.0
    %2765 = vmatprep.subr.mxu0 0.0
    %2766 = vmatpush1.msra.mxu0 0.0
    %2767 = vmatprep.subr.mxu0 0.0
    %2768 = vmatpush1.msra.mxu0 0.0
    %2769 = vmatprep.mubr.f32.mxu0 0.0
    %2770 = vmatmul.mubr.f32.gmra.mrb[0].mxu0 %v2703
    %v2771 = vpop.f32.mrb[0].mxu0
    %v2772 = vadd.f32 0.0, %v2771
    %v2773 = vpop.f32.mrb[0].mxu0
    %2774 = vdwg.mxu0
    %v2775 = vadd.f32 %v2683, %v2772
    %s2776 = scalar_lea.vmem [#allocation3], 1536
    %v2777 = vld [vmem:[%s2776] sm:$0xff]
    %v2778 = vld [vmem:[%s2776 + $0x8] sm:$0xff]
    %v2779 = vld [vmem:[%s2776 + $0x10] sm:$0xff]
    %v2780 = vld [vmem:[%s2776 + $0x18] sm:$0xff]
    %v2781 = vld [vmem:[%s2776 + $0x20] sm:$0xff]
    %v2782 = vld [vmem:[%s2776 + $0x28] sm:$0xff]
    %v2783 = vld [vmem:[%s2776 + $0x30] sm:$0xff]
    %v2784 = vld [vmem:[%s2776 + $0x38] sm:$0xff]
    %v2785 = vld [vmem:[%s2776 + $0x40] sm:$0xff]
    %v2786 = vld [vmem:[%s2776 + $0x48] sm:$0xff]
    %v2787 = vld [vmem:[%s2776 + $0x50] sm:$0xff]
    %v2788 = vld [vmem:[%s2776 + $0x58] sm:$0xff]
    %v2789 = vld [vmem:[%s2776 + $0x60] sm:$0xff]
    %v2790 = vld [vmem:[%s2776 + $0x68] sm:$0xff]
    %v2791 = vld [vmem:[%s2776 + $0x70] sm:$0xff]
    %v2792 = vld [vmem:[%s2776 + $0x78] sm:$0xff]
    %v2793 = vrot.slane %v1669, 4
    %v2794 = vrot.slane %v1673, 3
    %v2795 = vsel %vm1710, %v2794, %v2793
    %2797 = vmatprep.subr.mxu0 0.0
    %2798 = vmatpush1.msra.mxu0 %v2777
    %2799 = vmatprep.subr.mxu0 0.0
    %2800 = vmatpush1.msra.mxu0 %v2778
    %2801 = vmatprep.subr.mxu0 0.0
    %2802 = vmatpush1.msra.mxu0 %v2779
    %2803 = vmatprep.subr.mxu0 0.0
    %2804 = vmatpush1.msra.mxu0 %v2780
    %2805 = vmatprep.subr.mxu0 0.0
    %2806 = vmatpush1.msra.mxu0 %v2781
    %2807 = vmatprep.subr.mxu0 0.0
    %2808 = vmatpush1.msra.mxu0 %v2782
    %2809 = vmatprep.subr.mxu0 0.0
    %2810 = vmatpush1.msra.mxu0 %v2783
    %2811 = vmatprep.subr.mxu0 0.0
    %2812 = vmatpush1.msra.mxu0 %v2784
    %2813 = vmatprep.subr.mxu0 0.0
    %2814 = vmatpush1.msra.mxu0 %v2785
    %2815 = vmatprep.subr.mxu0 0.0
    %2816 = vmatpush1.msra.mxu0 %v2786
    %2817 = vmatprep.subr.mxu0 0.0
    %2818 = vmatpush1.msra.mxu0 %v2787
    %2819 = vmatprep.subr.mxu0 0.0
    %2820 = vmatpush1.msra.mxu0 %v2788
    %2821 = vmatprep.subr.mxu0 0.0
    %2822 = vmatpush1.msra.mxu0 %v2789
    %2823 = vmatprep.subr.mxu0 0.0
    %2824 = vmatpush1.msra.mxu0 %v2790
    %2825 = vmatprep.subr.mxu0 0.0
    %2826 = vmatpush1.msra.mxu0 %v2791
    %2827 = vmatprep.subr.mxu0 0.0
    %2828 = vmatpush1.msra.mxu0 %v2792
    %2829 = vmatprep.subr.mxu0 0.0
    %2830 = vmatpush1.msra.mxu0 0.0
    %2831 = vmatprep.subr.mxu0 0.0
    %2832 = vmatpush1.msra.mxu0 0.0
    %2833 = vmatprep.subr.mxu0 0.0
    %2834 = vmatpush1.msra.mxu0 0.0
    %2835 = vmatprep.subr.mxu0 0.0
    %2836 = vmatpush1.msra.mxu0 0.0
    %2837 = vmatprep.subr.mxu0 0.0
    %2838 = vmatpush1.msra.mxu0 0.0
    %2839 = vmatprep.subr.mxu0 0.0
    %2840 = vmatpush1.msra.mxu0 0.0
    %2841 = vmatprep.subr.mxu0 0.0
    %2842 = vmatpush1.msra.mxu0 0.0
    %2843 = vmatprep.subr.mxu0 0.0
    %2844 = vmatpush1.msra.mxu0 0.0
    %2845 = vmatprep.subr.mxu0 0.0
    %2846 = vmatpush1.msra.mxu0 0.0
    %2847 = vmatprep.subr.mxu0 0.0
    %2848 = vmatpush1.msra.mxu0 0.0
    %2849 = vmatprep.subr.mxu0 0.0
    %2850 = vmatpush1.msra.mxu0 0.0
    %2851 = vmatprep.subr.mxu0 0.0
    %2852 = vmatpush1.msra.mxu0 0.0
    %2853 = vmatprep.subr.mxu0 0.0
    %2854 = vmatpush1.msra.mxu0 0.0
    %2855 = vmatprep.subr.mxu0 0.0
    %2856 = vmatpush1.msra.mxu0 0.0
    %2857 = vmatprep.subr.mxu0 0.0
    %2858 = vmatpush1.msra.mxu0 0.0
    %2859 = vmatprep.subr.mxu0 0.0
    %2860 = vmatpush1.msra.mxu0 0.0
    %2861 = vmatprep.mubr.f32.mxu0 0.0
    %2862 = vmatmul.mubr.f32.gmra.mrb[0].mxu0 %v2795
    %v2863 = vpop.f32.mrb[0].mxu0
    %v2864 = vadd.f32 0.0, %v2863
    %v2865 = vpop.f32.mrb[0].mxu0
    %2866 = vdwg.mxu0
    %v2867 = vadd.f32 %v2775, %v2864
    %s2868 = scalar_lea.vmem [#allocation3], 1664
    %v2869 = vld [vmem:[%s2868] sm:$0xff]
    %v2870 = vld [vmem:[%s2868 + $0x8] sm:$0xff]
    %v2871 = vld [vmem:[%s2868 + $0x10] sm:$0xff]
    %v2872 = vld [vmem:[%s2868 + $0x18] sm:$0xff]
    %v2873 = vld [vmem:[%s2868 + $0x20] sm:$0xff]
    %v2874 = vld [vmem:[%s2868 + $0x28] sm:$0xff]
    %v2875 = vld [vmem:[%s2868 + $0x30] sm:$0xff]
    %v2876 = vld [vmem:[%s2868 + $0x38] sm:$0xff]
    %v2877 = vld [vmem:[%s2868 + $0x40] sm:$0xff]
    %v2878 = vld [vmem:[%s2868 + $0x48] sm:$0xff]
    %v2879 = vld [vmem:[%s2868 + $0x50] sm:$0xff]
    %v2880 = vld [vmem:[%s2868 + $0x58] sm:$0xff]
    %v2881 = vld [vmem:[%s2868 + $0x60] sm:$0xff]
    %v2882 = vld [vmem:[%s2868 + $0x68] sm:$0xff]
    %v2883 = vld [vmem:[%s2868 + $0x70] sm:$0xff]
    %v2884 = vld [vmem:[%s2868 + $0x78] sm:$0xff]
    %v2885 = vrot.slane %v1669, 5
    %v2886 = vrot.slane %v1673, 4
    %v2887 = vsel %vm1710, %v2886, %v2885
    %2889 = vmatprep.subr.mxu0 0.0
    %2890 = vmatpush1.msra.mxu0 %v2869
    %2891 = vmatprep.subr.mxu0 0.0
    %2892 = vmatpush1.msra.mxu0 %v2870
    %2893 = vmatprep.subr.mxu0 0.0
    %2894 = vmatpush1.msra.mxu0 %v2871
    %2895 = vmatprep.subr.mxu0 0.0
    %2896 = vmatpush1.msra.mxu0 %v2872
    %2897 = vmatprep.subr.mxu0 0.0
    %2898 = vmatpush1.msra.mxu0 %v2873
    %2899 = vmatprep.subr.mxu0 0.0
    %2900 = vmatpush1.msra.mxu0 %v2874
    %2901 = vmatprep.subr.mxu0 0.0
    %2902 = vmatpush1.msra.mxu0 %v2875
    %2903 = vmatprep.subr.mxu0 0.0
    %2904 = vmatpush1.msra.mxu0 %v2876
    %2905 = vmatprep.subr.mxu0 0.0
    %2906 = vmatpush1.msra.mxu0 %v2877
    %2907 = vmatprep.subr.mxu0 0.0
    %2908 = vmatpush1.msra.mxu0 %v2878
    %2909 = vmatprep.subr.mxu0 0.0
    %2910 = vmatpush1.msra.mxu0 %v2879
    %2911 = vmatprep.subr.mxu0 0.0
    %2912 = vmatpush1.msra.mxu0 %v2880
    %2913 = vmatprep.subr.mxu0 0.0
    %2914 = vmatpush1.msra.mxu0 %v2881
    %2915 = vmatprep.subr.mxu0 0.0
    %2916 = vmatpush1.msra.mxu0 %v2882
    %2917 = vmatprep.subr.mxu0 0.0
    %2918 = vmatpush1.msra.mxu0 %v2883
    %2919 = vmatprep.subr.mxu0 0.0
    %2920 = vmatpush1.msra.mxu0 %v2884
    %2921 = vmatprep.subr.mxu0 0.0
    %2922 = vmatpush1.msra.mxu0 0.0
    %2923 = vmatprep.subr.mxu0 0.0
    %2924 = vmatpush1.msra.mxu0 0.0
    %2925 = vmatprep.subr.mxu0 0.0
    %2926 = vmatpush1.msra.mxu0 0.0
    %2927 = vmatprep.subr.mxu0 0.0
    %2928 = vmatpush1.msra.mxu0 0.0
    %2929 = vmatprep.subr.mxu0 0.0
    %2930 = vmatpush1.msra.mxu0 0.0
    %2931 = vmatprep.subr.mxu0 0.0
    %2932 = vmatpush1.msra.mxu0 0.0
    %2933 = vmatprep.subr.mxu0 0.0
    %2934 = vmatpush1.msra.mxu0 0.0
    %2935 = vmatprep.subr.mxu0 0.0
    %2936 = vmatpush1.msra.mxu0 0.0
    %2937 = vmatprep.subr.mxu0 0.0
    %2938 = vmatpush1.msra.mxu0 0.0
    %2939 = vmatprep.subr.mxu0 0.0
    %2940 = vmatpush1.msra.mxu0 0.0
    %2941 = vmatprep.subr.mxu0 0.0
    %2942 = vmatpush1.msra.mxu0 0.0
    %2943 = vmatprep.subr.mxu0 0.0
    %2944 = vmatpush1.msra.mxu0 0.0
    %2945 = vmatprep.subr.mxu0 0.0
    %2946 = vmatpush1.msra.mxu0 0.0
    %2947 = vmatprep.subr.mxu0 0.0
    %2948 = vmatpush1.msra.mxu0 0.0
    %2949 = vmatprep.subr.mxu0 0.0
    %2950 = vmatpush1.msra.mxu0 0.0
    %2951 = vmatprep.subr.mxu0 0.0
    %2952 = vmatpush1.msra.mxu0 0.0
    %2953 = vmatprep.mubr.f32.mxu0 0.0
    %2954 = vmatmul.mubr.f32.gmra.mrb[0].mxu0 %v2887
    %v2955 = vpop.f32.mrb[0].mxu0
    %v2956 = vadd.f32 0.0, %v2955
    %v2957 = vpop.f32.mrb[0].mxu0
    %2958 = vdwg.mxu0
    %v2959 = vadd.f32 %v2867, %v2956
    %s2960 = scalar_lea.vmem [#allocation3], 1792
    %v2961 = vld [vmem:[%s2960] sm:$0xff]
    %v2962 = vld [vmem:[%s2960 + $0x8] sm:$0xff]
    %v2963 = vld [vmem:[%s2960 + $0x10] sm:$0xff]
    %v2964 = vld [vmem:[%s2960 + $0x18] sm:$0xff]
    %v2965 = vld [vmem:[%s2960 + $0x20] sm:$0xff]
    %v2966 = vld [vmem:[%s2960 + $0x28] sm:$0xff]
    %v2967 = vld [vmem:[%s2960 + $0x30] sm:$0xff]
    %v2968 = vld [vmem:[%s2960 + $0x38] sm:$0xff]
    %v2969 = vld [vmem:[%s2960 + $0x40] sm:$0xff]
    %v2970 = vld [vmem:[%s2960 + $0x48] sm:$0xff]
    %v2971 = vld [vmem:[%s2960 + $0x50] sm:$0xff]
    %v2972 = vld [vmem:[%s2960 + $0x58] sm:$0xff]
    %v2973 = vld [vmem:[%s2960 + $0x60] sm:$0xff]
    %v2974 = vld [vmem:[%s2960 + $0x68] sm:$0xff]
    %v2975 = vld [vmem:[%s2960 + $0x70] sm:$0xff]
    %v2976 = vld [vmem:[%s2960 + $0x78] sm:$0xff]
    %v2977 = vrot.slane %v1669, 6
    %v2978 = vrot.slane %v1673, 5
    %v2979 = vsel %vm1710, %v2978, %v2977
    %2981 = vmatprep.subr.mxu0 0.0
    %2982 = vmatpush1.msra.mxu0 %v2961
    %2983 = vmatprep.subr.mxu0 0.0
    %2984 = vmatpush1.msra.mxu0 %v2962
    %2985 = vmatprep.subr.mxu0 0.0
    %2986 = vmatpush1.msra.mxu0 %v2963
    %2987 = vmatprep.subr.mxu0 0.0
    %2988 = vmatpush1.msra.mxu0 %v2964
    %2989 = vmatprep.subr.mxu0 0.0
    %2990 = vmatpush1.msra.mxu0 %v2965
    %2991 = vmatprep.subr.mxu0 0.0
    %2992 = vmatpush1.msra.mxu0 %v2966
    %2993 = vmatprep.subr.mxu0 0.0
    %2994 = vmatpush1.msra.mxu0 %v2967
    %2995 = vmatprep.subr.mxu0 0.0
    %2996 = vmatpush1.msra.mxu0 %v2968
    %2997 = vmatprep.subr.mxu0 0.0
    %2998 = vmatpush1.msra.mxu0 %v2969
    %2999 = vmatprep.subr.mxu0 0.0
    %3000 = vmatpush1.msra.mxu0 %v2970
    %3001 = vmatprep.subr.mxu0 0.0
    %3002 = vmatpush1.msra.mxu0 %v2971
    %3003 = vmatprep.subr.mxu0 0.0
    %3004 = vmatpush1.msra.mxu0 %v2972
    %3005 = vmatprep.subr.mxu0 0.0
    %3006 = vmatpush1.msra.mxu0 %v2973
    %3007 = vmatprep.subr.mxu0 0.0
    %3008 = vmatpush1.msra.mxu0 %v2974
    %3009 = vmatprep.subr.mxu0 0.0
    %3010 = vmatpush1.msra.mxu0 %v2975
    %3011 = vmatprep.subr.mxu0 0.0
    %3012 = vmatpush1.msra.mxu0 %v2976
    %3013 = vmatprep.subr.mxu0 0.0
    %3014 = vmatpush1.msra.mxu0 0.0
    %3015 = vmatprep.subr.mxu0 0.0
    %3016 = vmatpush1.msra.mxu0 0.0
    %3017 = vmatprep.subr.mxu0 0.0
    %3018 = vmatpush1.msra.mxu0 0.0
    %3019 = vmatprep.subr.mxu0 0.0
    %3020 = vmatpush1.msra.mxu0 0.0
    %3021 = vmatprep.subr.mxu0 0.0
    %3022 = vmatpush1.msra.mxu0 0.0
    %3023 = vmatprep.subr.mxu0 0.0
    %3024 = vmatpush1.msra.mxu0 0.0
    %3025 = vmatprep.subr.mxu0 0.0
    %3026 = vmatpush1.msra.mxu0 0.0
    %3027 = vmatprep.subr.mxu0 0.0
    %3028 = vmatpush1.msra.mxu0 0.0
    %3029 = vmatprep.subr.mxu0 0.0
    %3030 = vmatpush1.msra.mxu0 0.0
    %3031 = vmatprep.subr.mxu0 0.0
    %3032 = vmatpush1.msra.mxu0 0.0
    %3033 = vmatprep.subr.mxu0 0.0
    %3034 = vmatpush1.msra.mxu0 0.0
    %3035 = vmatprep.subr.mxu0 0.0
    %3036 = vmatpush1.msra.mxu0 0.0
    %3037 = vmatprep.subr.mxu0 0.0
    %3038 = vmatpush1.msra.mxu0 0.0
    %3039 = vmatprep.subr.mxu0 0.0
    %3040 = vmatpush1.msra.mxu0 0.0
    %3041 = vmatprep.subr.mxu0 0.0
    %3042 = vmatpush1.msra.mxu0 0.0
    %3043 = vmatprep.subr.mxu0 0.0
    %3044 = vmatpush1.msra.mxu0 0.0
    %3045 = vmatprep.mubr.f32.mxu0 0.0
    %3046 = vmatmul.mubr.f32.gmra.mrb[0].mxu0 %v2979
    %v3047 = vpop.f32.mrb[0].mxu0
    %v3048 = vadd.f32 0.0, %v3047
    %v3049 = vpop.f32.mrb[0].mxu0
    %3050 = vdwg.mxu0
    %v3051 = vadd.f32 %v2959, %v3048
    %s3052 = scalar_lea.vmem [#allocation3], 1920
    %v3053 = vld [vmem:[%s3052] sm:$0xff]
    %v3054 = vld [vmem:[%s3052 + $0x8] sm:$0xff]
    %v3055 = vld [vmem:[%s3052 + $0x10] sm:$0xff]
    %v3056 = vld [vmem:[%s3052 + $0x18] sm:$0xff]
    %v3057 = vld [vmem:[%s3052 + $0x20] sm:$0xff]
    %v3058 = vld [vmem:[%s3052 + $0x28] sm:$0xff]
    %v3059 = vld [vmem:[%s3052 + $0x30] sm:$0xff]
    %v3060 = vld [vmem:[%s3052 + $0x38] sm:$0xff]
    %v3061 = vld [vmem:[%s3052 + $0x40] sm:$0xff]
    %v3062 = vld [vmem:[%s3052 + $0x48] sm:$0xff]
    %v3063 = vld [vmem:[%s3052 + $0x50] sm:$0xff]
    %v3064 = vld [vmem:[%s3052 + $0x58] sm:$0xff]
    %v3065 = vld [vmem:[%s3052 + $0x60] sm:$0xff]
    %v3066 = vld [vmem:[%s3052 + $0x68] sm:$0xff]
    %v3067 = vld [vmem:[%s3052 + $0x70] sm:$0xff]
    %v3068 = vld [vmem:[%s3052 + $0x78] sm:$0xff]
    %v3069 = vrot.slane %v1669, 7
    %v3070 = vrot.slane %v1673, 6
    %v3071 = vsel %vm1710, %v3070, %v3069
    %3073 = vmatprep.subr.mxu0 0.0
    %3074 = vmatpush1.msra.mxu0 %v3053
    %3075 = vmatprep.subr.mxu0 0.0
    %3076 = vmatpush1.msra.mxu0 %v3054
    %3077 = vmatprep.subr.mxu0 0.0
    %3078 = vmatpush1.msra.mxu0 %v3055
    %3079 = vmatprep.subr.mxu0 0.0
    %3080 = vmatpush1.msra.mxu0 %v3056
    %3081 = vmatprep.subr.mxu0 0.0
    %3082 = vmatpush1.msra.mxu0 %v3057
    %3083 = vmatprep.subr.mxu0 0.0
    %3084 = vmatpush1.msra.mxu0 %v3058
    %3085 = vmatprep.subr.mxu0 0.0
    %3086 = vmatpush1.msra.mxu0 %v3059
    %3087 = vmatprep.subr.mxu0 0.0
    %3088 = vmatpush1.msra.mxu0 %v3060
    %3089 = vmatprep.subr.mxu0 0.0
    %3090 = vmatpush1.msra.mxu0 %v3061
    %3091 = vmatprep.subr.mxu0 0.0
    %3092 = vmatpush1.msra.mxu0 %v3062
    %3093 = vmatprep.subr.mxu0 0.0
    %3094 = vmatpush1.msra.mxu0 %v3063
    %3095 = vmatprep.subr.mxu0 0.0
    %3096 = vmatpush1.msra.mxu0 %v3064
    %3097 = vmatprep.subr.mxu0 0.0
    %3098 = vmatpush1.msra.mxu0 %v3065
    %3099 = vmatprep.subr.mxu0 0.0
    %3100 = vmatpush1.msra.mxu0 %v3066
    %3101 = vmatprep.subr.mxu0 0.0
    %3102 = vmatpush1.msra.mxu0 %v3067
    %3103 = vmatprep.subr.mxu0 0.0
    %3104 = vmatpush1.msra.mxu0 %v3068
    %3105 = vmatprep.subr.mxu0 0.0
    %3106 = vmatpush1.msra.mxu0 0.0
    %3107 = vmatprep.subr.mxu0 0.0
    %3108 = vmatpush1.msra.mxu0 0.0
    %3109 = vmatprep.subr.mxu0 0.0
    %3110 = vmatpush1.msra.mxu0 0.0
    %3111 = vmatprep.subr.mxu0 0.0
    %3112 = vmatpush1.msra.mxu0 0.0
    %3113 = vmatprep.subr.mxu0 0.0
    %3114 = vmatpush1.msra.mxu0 0.0
    %3115 = vmatprep.subr.mxu0 0.0
    %3116 = vmatpush1.msra.mxu0 0.0
    %3117 = vmatprep.subr.mxu0 0.0
    %3118 = vmatpush1.msra.mxu0 0.0
    %3119 = vmatprep.subr.mxu0 0.0
    %3120 = vmatpush1.msra.mxu0 0.0
    %3121 = vmatprep.subr.mxu0 0.0
    %3122 = vmatpush1.msra.mxu0 0.0
    %3123 = vmatprep.subr.mxu0 0.0
    %3124 = vmatpush1.msra.mxu0 0.0
    %3125 = vmatprep.subr.mxu0 0.0
    %3126 = vmatpush1.msra.mxu0 0.0
    %3127 = vmatprep.subr.mxu0 0.0
    %3128 = vmatpush1.msra.mxu0 0.0
    %3129 = vmatprep.subr.mxu0 0.0
    %3130 = vmatpush1.msra.mxu0 0.0
    %3131 = vmatprep.subr.mxu0 0.0
    %3132 = vmatpush1.msra.mxu0 0.0
    %3133 = vmatprep.subr.mxu0 0.0
    %3134 = vmatpush1.msra.mxu0 0.0
    %3135 = vmatprep.subr.mxu0 0.0
    %3136 = vmatpush1.msra.mxu0 0.0
    %3137 = vmatprep.mubr.f32.mxu0 0.0
    %3138 = vmatmul.mubr.f32.gmra.mrb[0].mxu0 %v3071
    %v3139 = vpop.f32.mrb[0].mxu0
    %v3140 = vadd.f32 0.0, %v3139
    %v3141 = vpop.f32.mrb[0].mxu0
    %3142 = vdwg.mxu0
    %v3143 = vadd.f32 %v3051, %v3140
    %v3144 = vld [vmem:[%s8] sm:$0x1]
    %v3146 = vlaneseq
    %v3147 = vshrl.u32 %v3146, 7
    %v3148 = vsub.s32 0, %v3147
    %v3149 = vrot.slane %v3144, %v3148
    %v3151 = vadd.f32 %v3143, %v3149
    %3152 = vst [vmem:[#allocation16] sm:$0x3] %v3151
    // Predicated region
    $region62: #{tpu_custom_call.1} parent=1 // pred_check
      _
    $region63: #{tpu_custom_call.1} parent=1 // pred_check_branch
      %3154 = sbr.rel (0) target = $region65
    $region64: #{tpu_custom_call.1} parent=1 // pred_region
      %s3156 = ssub.s32 512, 512
      %3157 = vsyncadd [#allocation5], %s3156
      %s3158 = sshll.u32 [#allocation10], 4
      %s3159 = int_to_ptr.vmem [resolvable:$true] %s3158
      %3164 = dma.vmem_to_hbm [thread:$0]  %s3159, 512, %s12, [#allocation5], 128, 128, 8
    $region65: #{tpu_custom_call.1} parent=1 // pred_fallthru
      _
    // Predicated region
    $region66: #{tpu_custom_call.1} parent=1 // pred_check
      _
    $region67: #{tpu_custom_call.1} parent=1 // pred_check_branch
      %3166 = sbr.rel (0) target = $region69
    $region68: #{tpu_custom_call.1} parent=1 // pred_region
      %s3168 = ssub.s32 32, 32
      %3169 = vsyncadd [#allocation12], %s3168
      %s3171 = sshll.u32 [#allocation11], 4
      %s3172 = int_to_ptr.vmem [resolvable:$true] %s3171
      %3174 = dma.vmem_to_hbm [thread:$0]  %s3172, 32, %s13, [#allocation12]
    $region69: #{tpu_custom_call.1} parent=1 // pred_fallthru
      _
    // Predicated region
    $region70: #{tpu_custom_call.1} parent=1 // pred_check
      _
    $region71: #{tpu_custom_call.1} parent=1 // pred_check_branch
      %3176 = sbr.rel (0) target = $region73
    $region72: #{tpu_custom_call.1} parent=1 // pred_region
      %s3178 = ssub.s32 512, 512
      %3179 = vsyncadd [#allocation12], %s3178
      %s3180 = sshll.u32 [#allocation13], 4
      %s3181 = int_to_ptr.vmem [resolvable:$true] %s3180
      %3186 = dma.vmem_to_hbm [thread:$0]  %s3181, 512, %s14, [#allocation12], 128, 128, 8
    $region73: #{tpu_custom_call.1} parent=1 // pred_fallthru
      _
    // Predicated region
    $region74: #{tpu_custom_call.1} parent=1 // pred_check
      _
    $region75: #{tpu_custom_call.1} parent=1 // pred_check_branch
      %3188 = sbr.rel (0) target = $region77
    $region76: #{tpu_custom_call.1} parent=1 // pred_region
      %s3190 = ssub.s32 512, 512
      %3191 = vsyncadd [#allocation15], %s3190
      %s3192 = sshll.u32 [#allocation14], 4
      %s3193 = int_to_ptr.vmem [resolvable:$true] %s3192
      %3198 = dma.vmem_to_hbm [thread:$0]  %s3193, 512, %s15, [#allocation15], 128, 128, 8
    $region77: #{tpu_custom_call.1} parent=1 // pred_fallthru
      _
    // Predicated region
    $region78: #{tpu_custom_call.1} parent=1 // pred_check
      _
    $region79: #{tpu_custom_call.1} parent=1 // pred_check_branch
      %3200 = sbr.rel (0) target = $region81
    $region80: #{tpu_custom_call.1} parent=1 // pred_region
      %s3202 = ssub.s32 32, 32
      %3203 = vsyncadd [#allocation15], %s3202
      %s3205 = sshll.u32 [#allocation16], 4
      %s3206 = int_to_ptr.vmem [resolvable:$true] %s3205
      %3208 = dma.vmem_to_hbm [thread:$0]  %s3206, 32, %s16, [#allocation15]
    $region81: #{tpu_custom_call.1} parent=1 // pred_fallthru
      _
    // Predicated region
    $region82: #{tpu_custom_call.1} parent=1 // pred_check
      _
    $region83: #{tpu_custom_call.1} parent=1 // pred_check_branch
      %3210 = sbr.rel (0) target = $region85
    $region84: #{tpu_custom_call.1} parent=1 // pred_region
      %3211 = dma.done [#allocation5], 512
    $region85: #{tpu_custom_call.1} parent=1 // pred_fallthru
      _
    // Predicated region
    $region86: #{tpu_custom_call.1} parent=1 // pred_check
      _
    $region87: #{tpu_custom_call.1} parent=1 // pred_check_branch
      %3213 = sbr.rel (0) target = $region89
    $region88: #{tpu_custom_call.1} parent=1 // pred_region
      %3214 = dma.done [#allocation12], 32
    $region89: #{tpu_custom_call.1} parent=1 // pred_fallthru
      _
    // Predicated region
    $region90: #{tpu_custom_call.1} parent=1 // pred_check
      _
    $region91: #{tpu_custom_call.1} parent=1 // pred_check_branch
      %3216 = sbr.rel (0) target = $region93
    $region92: #{tpu_custom_call.1} parent=1 // pred_region
      %3217 = dma.done [#allocation12], 512
    $region93: #{tpu_custom_call.1} parent=1 // pred_fallthru
      _
    // Predicated region
    $region94: #{tpu_custom_call.1} parent=1 // pred_check
      _
    $region95: #{tpu_custom_call.1} parent=1 // pred_check_branch
      %3219 = sbr.rel (0) target = $region97
    $region96: #{tpu_custom_call.1} parent=1 // pred_region
      %3220 = dma.done [#allocation15], 512
    $region97: #{tpu_custom_call.1} parent=1 // pred_fallthru
      _
    // Predicated region
    $region98: #{tpu_custom_call.1} parent=1 // pred_check
      _
    $region99: #{tpu_custom_call.1} parent=1 // pred_check_branch
      %3222 = sbr.rel (0) target = $region101
    $region100: #{tpu_custom_call.1} parent=1 // pred_region
      %3223 = dma.done [#allocation15], 32
    $region101: #{tpu_custom_call.1} parent=1 // pred_fallthru
      _
    %3224 = vsyncpa [#allocation4], 1
    %3225 = vsyncpa [#allocation5], 1
    %3226 = vsyncpa [#allocation12], 1
    %3227 = vsyncpa [#allocation15], 1
    %3228 = vsyncpa [#allocation6], 1
    %3229 = vsyncpa [#allocation9], 1

</llo_original>
